<compile_context>
chip_gen: v7x
topology: tpu7x:2x2x1
jax: 0.10.0
libtpu: 0.0.40
codegen_flags: <defaults>
</compile_context>

<pallas_src>
import jax
import jax.numpy as jnp
from jax.experimental import pallas as pl
from jax.experimental.pallas import tpu as pltpu


# ----------------------------------------------------------------------------
# Fused ClsNet kernel (runs once per batch element; grid=(B,), "parallel")
# ----------------------------------------------------------------------------
def _clsnet_kernel(p1_ref, w1_ref, b1_ref, gmax_ref, s2_ref, w2_ref, b2_ref,
                   wfc1_ref, bfc1_ref, wfc2_ref, bfc2_ref, out_ref):
    f32 = jnp.float32

    # ---- conv1 + ReLU: (20, 64) @ (64, 256) -> (20, 256), lanes = spatial ----
    patches = p1_ref[0]                                            # (64, 256)
    c1 = jnp.dot(w1_ref[...], patches, preferred_element_type=f32)
    c1 = jnp.maximum(c1 + b1_ref[...], 0.0)                        # (20, 256)

    # ---- 2x2 maxpool via one-hot selection matmul ----------------------------
    # gathered[:, k*64 + m] = c1[:, k-th element of the 2x2 window of output m]
    gathered = jnp.dot(c1, gmax_ref[...], preferred_element_type=f32)  # (20,256)
    mp = jnp.maximum(
        jnp.maximum(gathered[:, 0:64], gathered[:, 64:128]),
        jnp.maximum(gathered[:, 128:192], gathered[:, 192:256]))    # (20, 64)

    # ---- conv2 + ReLU: 25-tap accumulation over gathered patches -------------
    # xg[:, t*16 + m] = mp[:, input position feeding tap t at output position m]
    xg = jnp.dot(mp, s2_ref[...], preferred_element_type=f32)       # (20, 400)
    acc2 = jnp.zeros((20, 16), f32)
    for t in range(25):
        acc2 = acc2 + jnp.dot(w2_ref[t], xg[:, t * 16:(t + 1) * 16],
                              preferred_element_type=f32)
    o2 = jnp.maximum(acc2 + b2_ref[...], 0.0)                       # (20, 16)

    # ---- fc1 + ReLU: contraction over (channel, spatial) ---------------------
    acc1 = bfc1_ref[...]                                            # (1, 32)
    for c in range(20):
        acc1 = acc1 + jnp.dot(o2[c:c + 1, :], wfc1_ref[c],
                              preferred_element_type=f32)
    h1 = jnp.maximum(acc1, 0.0)                                     # (1, 32)

    # ---- fc2 + log_softmax ----------------------------------------------------
    logits = jnp.dot(h1, wfc2_ref[...], preferred_element_type=f32) + bfc2_ref[...]
    m = jnp.max(logits, axis=-1, keepdims=True)
    lse = jnp.log(jnp.sum(jnp.exp(logits - m), axis=-1, keepdims=True)) + m
    out_ref[0] = logits - lse                                       # (1, 10)


# ----------------------------------------------------------------------------
# Constant one-hot selection matrices (constant-folded at compile time)
# ----------------------------------------------------------------------------
def _maxpool_select():
    """(256, 256): col block k (of 4) / col m selects window element k of
    maxpool output m from the flattened 16x16 conv1 output."""
    s1 = jnp.arange(256)
    oy, ox = s1 // 16, s1 % 16
    j = jnp.arange(256)
    k, m = j // 64, j % 64
    a, b = k // 2, k % 2
    py, px = m // 8, m % 8
    return ((oy[:, None] == 2 * py[None, :] + a[None, :]) &
            (ox[:, None] == 2 * px[None, :] + b[None, :])).astype(jnp.float32)


def _conv2_gather_select():
    """(64, 400): col block t (of 25 taps) / col m selects the 8x8 maxpool
    position feeding conv2 tap t at output position m (4x4)."""
    r = jnp.arange(64)
    py, px = r // 8, r % 8
    j = jnp.arange(400)
    t, m = j // 16, j % 16
    dy, dx = t // 5, t % 5
    oy, ox = m // 4, m % 4
    return ((py[:, None] == oy[None, :] + dy[None, :]) &
            (px[:, None] == ox[None, :] + dx[None, :])).astype(jnp.float32)


# ----------------------------------------------------------------------------
# Forward pass
# ----------------------------------------------------------------------------
@jax.jit
def clsnet_forward(x, params):
    """x: (B, 2, 40, 40) float32 -> (B, 10) log-probabilities."""
    B = x.shape[0]
    x = x.astype(jnp.float32)

    # Host-side producer (single fused XLA chain): AvgPool2d(2,2) + conv1
    # im2col, K padded 50 -> 64, output lane-dense (B, 64, 256).
    h0 = x.reshape(B, 2, 20, 2, 20, 2).mean(axis=(3, 5))            # (B, 2, 20, 20)
    cols = []
    for c in range(2):
        for dy in range(5):
            for dx in range(5):
                cols.append(h0[:, c, dy:dy + 16, dx:dx + 16].reshape(B, 256))
    p1 = jnp.stack(cols, axis=1)                                    # (B, 50, 256)
    p1 = jnp.pad(p1, ((0, 0), (0, 14), (0, 0)))                     # (B, 64, 256)

    # Weight pre-arrangement (cheap; kept inside the trace so training updates
    # of the raw PyTorch-layout params flow through correctly).
    w1 = jnp.pad(params["conv1_w"].reshape(20, 50), ((0, 0), (0, 14)))   # (20, 64)
    b1 = params["conv1_b"].reshape(20, 1)
    w2 = jnp.transpose(params["conv2_w"], (2, 3, 0, 1)).reshape(25, 20, 20)
    b2 = params["conv2_b"].reshape(20, 1)
    wf1 = jnp.transpose(params["fc1_w"].reshape(32, 20, 16), (1, 2, 0))  # (20, 16, 32)
    bf1 = params["fc1_b"].reshape(1, 32)
    wf2 = params["fc2_w"].T                                              # (32, 10)
    bf2 = params["fc2_b"].reshape(1, 10)

    gmax = _maxpool_select()        # (256, 256) constant
    s2 = _conv2_gather_select()     # (64, 400) constant

    out = pl.pallas_call(
        _clsnet_kernel,
        out_shape=jax.ShapeDtypeStruct((B, 1, 10), jnp.float32),
        grid=(B,),
        in_specs=[
            pl.BlockSpec((1, 64, 256), lambda b: (b, 0, 0)),     # conv1 patches
            pl.BlockSpec((20, 64), lambda b: (0, 0)),            # w1
            pl.BlockSpec((20, 1), lambda b: (0, 0)),             # b1
            pl.BlockSpec((256, 256), lambda b: (0, 0)),          # maxpool select
            pl.BlockSpec((64, 400), lambda b: (0, 0)),           # conv2 gather select
            pl.BlockSpec((25, 20, 20), lambda b: (0, 0, 0)),     # w2 (per-tap)
            pl.BlockSpec((20, 1), lambda b: (0, 0)),             # b2
            pl.BlockSpec((20, 16, 32), lambda b: (0, 0, 0)),     # fc1 (per-channel)
            pl.BlockSpec((1, 32), lambda b: (0, 0)),             # fc1 bias
            pl.BlockSpec((32, 10), lambda b: (0, 0)),            # fc2 weight.T
            pl.BlockSpec((1, 10), lambda b: (0, 0)),             # fc2 bias
        ],
        out_specs=pl.BlockSpec((1, 1, 10), lambda b: (b, 0, 0)),
        compiler_params=pltpu.CompilerParams(
            dimension_semantics=("parallel",)),
    )(p1, w1, b1, gmax, s2, w2, b2, wf1, bf1, wf2, bf2)
    return out.reshape(B, 10)


# ----------------------------------------------------------------------------
# Pure-JAX reference (for validation) and params
# ----------------------------------------------------------------------------
def clsnet_reference(x, params):
    B = x.shape[0]
    x = x.astype(jnp.float32)
    h = jax.lax.reduce_window(x, 0.0, jax.lax.add,
                              (1, 1, 2, 2), (1, 1, 2, 2), "VALID") / 4.0
    h = jax.lax.conv_general_dilated(h, params["conv1_w"], (1, 1), "VALID",
                                     dimension_numbers=("NCHW", "OIHW", "NCHW"))
    h = jax.nn.relu(h + params["conv1_b"][None, :, None, None])
    h = jax.lax.reduce_window(h, -jnp.inf, jax.lax.max,
                              (1, 1, 2, 2), (1, 1, 2, 2), "VALID")
    h = jax.lax.conv_general_dilated(h, params["conv2_w"], (1, 1), "VALID",
                                     dimension_numbers=("NCHW", "OIHW", "NCHW"))
    h = jax.nn.relu(h + params["conv2_b"][None, :, None, None])
    h = h.reshape(B, 320)
    h = jax.nn.relu(h @ params["fc1_w"].T + params["fc1_b"])
    logits = h @ params["fc2_w"].T + params["fc2_b"]
    return jax.nn.log_softmax(logits, axis=-1)


def init_params(key):
    ks = jax.random.split(key, 8)

    def u(k, shape, fan_in):
        bound = 1.0 / (fan_in ** 0.5)
        return jax.random.uniform(k, shape, jnp.float32, -bound, bound)

    return {
        "conv1_w": u(ks[0], (20, 2, 5, 5), 2 * 25),
        "conv1_b": u(ks[1], (20,), 2 * 25),
        "conv2_w": u(ks[2], (20, 20, 5, 5), 20 * 25),
        "conv2_b": u(ks[3], (20,), 20 * 25),
        "fc1_w": u(ks[4], (32, 320), 320),
        "fc1_b": u(ks[5], (32,), 320),
        "fc2_w": u(ks[6], (10, 32), 32),
        "fc2_b": u(ks[7], (10,), 32),
    }


if __name__ == "__main__":
    key = jax.random.PRNGKey(0)
    kx, kp = jax.random.split(key)
    params = init_params(kp)

    # Input implied by the module: 40 -avgpool-> 20 -conv5-> 16 -maxpool-> 8
    # -conv5-> 4, so the flatten is 20*4*4 = 320.  Two-channel images, batch 2.
    x = jax.random.normal(kx, (2, 2, 40, 40), jnp.float32)

    out = jax.block_until_ready(clsnet_forward(x, params))

    assert out.shape == (2, 10), out.shape
    assert bool(jnp.all(jnp.isfinite(out)))
    # log_softmax rows should normalise to probability ~1
    assert bool(jnp.all(jnp.abs(jnp.sum(jnp.exp(out), axis=-1) - 1.0) < 1e-3))
    # match the plain-JAX reference implementation
    ref = clsnet_reference(x, params)
    assert bool(jnp.allclose(out, ref, atol=2e-2, rtol=2e-2)), (
        float(jnp.max(jnp.abs(out - ref))))

    print("KERNEL_OK")
</pallas_src>

<mosaic_0001>
module attributes {stable_mosaic.version = 11 : i64} {
  func.func @_clsnet_kernel(%arg0: i32, %arg1: memref<1x64x256xf32, #tpu.memory_space<vmem>>, %arg2: memref<20x64xf32, #tpu.memory_space<vmem>>, %arg3: memref<20x1xf32, #tpu.memory_space<vmem>>, %arg4: memref<256x256xf32, #tpu.memory_space<vmem>>, %arg5: memref<64x400xf32, #tpu.memory_space<vmem>>, %arg6: memref<25x20x20xf32, #tpu.memory_space<vmem>>, %arg7: memref<20x1xf32, #tpu.memory_space<vmem>>, %arg8: memref<20x16x32xf32, #tpu.memory_space<vmem>>, %arg9: memref<1x32xf32, #tpu.memory_space<vmem>>, %arg10: memref<32x10xf32, #tpu.memory_space<vmem>>, %arg11: memref<1x10xf32, #tpu.memory_space<vmem>>, %arg12: memref<1x1x10xf32, #tpu.memory_space<vmem>>) attributes {dimension_semantics = [#tpu.dimension_semantics<parallel>], iteration_bounds = array<i64: 2>, scalar_prefetch = 0 : i64, scratch_operands = 0 : i64, tpu.core_type = #tpu.core_type<tc>, window_params = [{transform_indices = @transform_0, window_bounds = array<i64: 1, 64, 256>}, {pipeline_mode = #tpu.pipeline_mode<synchronous>, transform_indices = @transform_1, window_bounds = array<i64: 20, 64>}, {pipeline_mode = #tpu.pipeline_mode<synchronous>, transform_indices = @transform_2, window_bounds = array<i64: 20, 1>}, {pipeline_mode = #tpu.pipeline_mode<synchronous>, transform_indices = @transform_3, window_bounds = array<i64: 256, 256>}, {pipeline_mode = #tpu.pipeline_mode<synchronous>, transform_indices = @transform_4, window_bounds = array<i64: 64, 400>}, {pipeline_mode = #tpu.pipeline_mode<synchronous>, transform_indices = @transform_5, window_bounds = array<i64: 25, 20, 20>}, {pipeline_mode = #tpu.pipeline_mode<synchronous>, transform_indices = @transform_6, window_bounds = array<i64: 20, 1>}, {pipeline_mode = #tpu.pipeline_mode<synchronous>, transform_indices = @transform_7, window_bounds = array<i64: 20, 16, 32>}, {pipeline_mode = #tpu.pipeline_mode<synchronous>, transform_indices = @transform_8, window_bounds = array<i64: 1, 32>}, {pipeline_mode = #tpu.pipeline_mode<synchronous>, transform_indices = @transform_9, window_bounds = array<i64: 32, 10>}, {pipeline_mode = #tpu.pipeline_mode<synchronous>, transform_indices = @transform_10, window_bounds = array<i64: 1, 10>}, {transform_indices = @transform_11, window_bounds = array<i64: 1, 1, 10>}]} {
    %c0 = arith.constant 0 : index
    %c0_0 = arith.constant 0 : index
    %c0_1 = arith.constant 0 : index
    %0 = vector.load %arg1[%c0, %c0_0, %c0_1] : memref<1x64x256xf32, #tpu.memory_space<vmem>>, vector<1x64x256xf32>
    %1 = vector.shape_cast %0 : vector<1x64x256xf32> to vector<64x256xf32>
    %c0_2 = arith.constant 0 : index
    %c0_3 = arith.constant 0 : index
    %2 = vector.load %arg2[%c0_2, %c0_3] : memref<20x64xf32, #tpu.memory_space<vmem>>, vector<20x64xf32>
    %cst = arith.constant dense<0.000000e+00> : vector<20x256xf32>
    %3 = tpu.matmul %2, %1, %cst {dimension_numbers = #tpu.dot_dimension_numbers<[1], [0], [0], [1], [0, 0, 1, 1], [], []>} : vector<20x64xf32>, vector<64x256xf32>, vector<20x256xf32> -> vector<20x256xf32>
    %c0_4 = arith.constant 0 : index
    %c0_5 = arith.constant 0 : index
    %4 = vector.load %arg3[%c0_4, %c0_5] : memref<20x1xf32, #tpu.memory_space<vmem>>, vector<20x1xf32>
    %5 = vector.broadcast %4 : vector<20x1xf32> to vector<20x256xf32>
    %6 = arith.addf %3, %5 : vector<20x256xf32>
    %cst_6 = arith.constant 0.000000e+00 : f32
    %7 = vector.broadcast %cst_6 : f32 to vector<20x256xf32>
    %8 = arith.maximumf %6, %7 : vector<20x256xf32>
    %c0_7 = arith.constant 0 : index
    %c0_8 = arith.constant 0 : index
    %9 = vector.load %arg4[%c0_7, %c0_8] : memref<256x256xf32, #tpu.memory_space<vmem>>, vector<256x256xf32>
    %cst_9 = arith.constant dense<0.000000e+00> : vector<20x256xf32>
    %10 = tpu.matmul %8, %9, %cst_9 {dimension_numbers = #tpu.dot_dimension_numbers<[1], [0], [0], [1], [0, 0, 1, 1], [], []>} : vector<20x256xf32>, vector<256x256xf32>, vector<20x256xf32> -> vector<20x256xf32>
    %11 = vector.extract_strided_slice %10 {offsets = [0, 0], sizes = [20, 64], strides = [1, 1]} : vector<20x256xf32> to vector<20x64xf32>
    %12 = vector.extract_strided_slice %10 {offsets = [0, 64], sizes = [20, 64], strides = [1, 1]} : vector<20x256xf32> to vector<20x64xf32>
    %13 = arith.maximumf %11, %12 : vector<20x64xf32>
    %14 = vector.extract_strided_slice %10 {offsets = [0, 128], sizes = [20, 64], strides = [1, 1]} : vector<20x256xf32> to vector<20x64xf32>
    %15 = vector.extract_strided_slice %10 {offsets = [0, 192], sizes = [20, 64], strides = [1, 1]} : vector<20x256xf32> to vector<20x64xf32>
    %16 = arith.maximumf %14, %15 : vector<20x64xf32>
    %17 = arith.maximumf %13, %16 : vector<20x64xf32>
    %c0_10 = arith.constant 0 : index
    %c0_11 = arith.constant 0 : index
    %18 = vector.load %arg5[%c0_10, %c0_11] : memref<64x400xf32, #tpu.memory_space<vmem>>, vector<64x400xf32>
    %cst_12 = arith.constant dense<0.000000e+00> : vector<20x400xf32>
    %19 = tpu.matmul %17, %18, %cst_12 {dimension_numbers = #tpu.dot_dimension_numbers<[1], [0], [0], [1], [0, 0, 1, 1], [], []>} : vector<20x64xf32>, vector<64x400xf32>, vector<20x400xf32> -> vector<20x400xf32>
    %cst_13 = arith.constant 0.000000e+00 : f32
    %20 = vector.broadcast %cst_13 : f32 to vector<20x16xf32>
    %c0_14 = arith.constant 0 : index
    %c0_15 = arith.constant 0 : index
    %c0_16 = arith.constant 0 : index
    %21 = vector.load %arg6[%c0_14, %c0_15, %c0_16] : memref<25x20x20xf32, #tpu.memory_space<vmem>>, vector<1x20x20xf32>
    %22 = vector.shape_cast %21 : vector<1x20x20xf32> to vector<20x20xf32>
    %23 = vector.extract_strided_slice %19 {offsets = [0, 0], sizes = [20, 16], strides = [1, 1]} : vector<20x400xf32> to vector<20x16xf32>
    %cst_17 = arith.constant dense<0.000000e+00> : vector<20x16xf32>
    %24 = tpu.matmul %22, %23, %cst_17 {dimension_numbers = #tpu.dot_dimension_numbers<[1], [0], [0], [1], [0, 0, 1, 1], [], []>} : vector<20x20xf32>, vector<20x16xf32>, vector<20x16xf32> -> vector<20x16xf32>
    %25 = arith.addf %20, %24 : vector<20x16xf32>
    %c1 = arith.constant 1 : index
    %c0_18 = arith.constant 0 : index
    %c0_19 = arith.constant 0 : index
    %26 = vector.load %arg6[%c1, %c0_18, %c0_19] : memref<25x20x20xf32, #tpu.memory_space<vmem>>, vector<1x20x20xf32>
    %27 = vector.shape_cast %26 : vector<1x20x20xf32> to vector<20x20xf32>
    %28 = vector.extract_strided_slice %19 {offsets = [0, 16], sizes = [20, 16], strides = [1, 1]} : vector<20x400xf32> to vector<20x16xf32>
    %cst_20 = arith.constant dense<0.000000e+00> : vector<20x16xf32>
    %29 = tpu.matmul %27, %28, %cst_20 {dimension_numbers = #tpu.dot_dimension_numbers<[1], [0], [0], [1], [0, 0, 1, 1], [], []>} : vector<20x20xf32>, vector<20x16xf32>, vector<20x16xf32> -> vector<20x16xf32>
    %30 = arith.addf %25, %29 : vector<20x16xf32>
    %c2 = arith.constant 2 : index
    %c0_21 = arith.constant 0 : index
    %c0_22 = arith.constant 0 : index
    %31 = vector.load %arg6[%c2, %c0_21, %c0_22] : memref<25x20x20xf32, #tpu.memory_space<vmem>>, vector<1x20x20xf32>
    %32 = vector.shape_cast %31 : vector<1x20x20xf32> to vector<20x20xf32>
    %33 = vector.extract_strided_slice %19 {offsets = [0, 32], sizes = [20, 16], strides = [1, 1]} : vector<20x400xf32> to vector<20x16xf32>
    %cst_23 = arith.constant dense<0.000000e+00> : vector<20x16xf32>
    %34 = tpu.matmul %32, %33, %cst_23 {dimension_numbers = #tpu.dot_dimension_numbers<[1], [0], [0], [1], [0, 0, 1, 1], [], []>} : vector<20x20xf32>, vector<20x16xf32>, vector<20x16xf32> -> vector<20x16xf32>
    %35 = arith.addf %30, %34 : vector<20x16xf32>
    %c3 = arith.constant 3 : index
    %c0_24 = arith.constant 0 : index
    %c0_25 = arith.constant 0 : index
    %36 = vector.load %arg6[%c3, %c0_24, %c0_25] : memref<25x20x20xf32, #tpu.memory_space<vmem>>, vector<1x20x20xf32>
    %37 = vector.shape_cast %36 : vector<1x20x20xf32> to vector<20x20xf32>
    %38 = vector.extract_strided_slice %19 {offsets = [0, 48], sizes = [20, 16], strides = [1, 1]} : vector<20x400xf32> to vector<20x16xf32>
    %cst_26 = arith.constant dense<0.000000e+00> : vector<20x16xf32>
    %39 = tpu.matmul %37, %38, %cst_26 {dimension_numbers = #tpu.dot_dimension_numbers<[1], [0], [0], [1], [0, 0, 1, 1], [], []>} : vector<20x20xf32>, vector<20x16xf32>, vector<20x16xf32> -> vector<20x16xf32>
    %40 = arith.addf %35, %39 : vector<20x16xf32>
    %c4 = arith.constant 4 : index
    %c0_27 = arith.constant 0 : index
    %c0_28 = arith.constant 0 : index
    %41 = vector.load %arg6[%c4, %c0_27, %c0_28] : memref<25x20x20xf32, #tpu.memory_space<vmem>>, vector<1x20x20xf32>
    %42 = vector.shape_cast %41 : vector<1x20x20xf32> to vector<20x20xf32>
    %43 = vector.extract_strided_slice %19 {offsets = [0, 64], sizes = [20, 16], strides = [1, 1]} : vector<20x400xf32> to vector<20x16xf32>
    %cst_29 = arith.constant dense<0.000000e+00> : vector<20x16xf32>
    %44 = tpu.matmul %42, %43, %cst_29 {dimension_numbers = #tpu.dot_dimension_numbers<[1], [0], [0], [1], [0, 0, 1, 1], [], []>} : vector<20x20xf32>, vector<20x16xf32>, vector<20x16xf32> -> vector<20x16xf32>
    %45 = arith.addf %40, %44 : vector<20x16xf32>
    %c5 = arith.constant 5 : index
    %c0_30 = arith.constant 0 : index
    %c0_31 = arith.constant 0 : index
    %46 = vector.load %arg6[%c5, %c0_30, %c0_31] : memref<25x20x20xf32, #tpu.memory_space<vmem>>, vector<1x20x20xf32>
    %47 = vector.shape_cast %46 : vector<1x20x20xf32> to vector<20x20xf32>
    %48 = vector.extract_strided_slice %19 {offsets = [0, 80], sizes = [20, 16], strides = [1, 1]} : vector<20x400xf32> to vector<20x16xf32>
    %cst_32 = arith.constant dense<0.000000e+00> : vector<20x16xf32>
    %49 = tpu.matmul %47, %48, %cst_32 {dimension_numbers = #tpu.dot_dimension_numbers<[1], [0], [0], [1], [0, 0, 1, 1], [], []>} : vector<20x20xf32>, vector<20x16xf32>, vector<20x16xf32> -> vector<20x16xf32>
    %50 = arith.addf %45, %49 : vector<20x16xf32>
    %c6 = arith.constant 6 : index
    %c0_33 = arith.constant 0 : index
    %c0_34 = arith.constant 0 : index
    %51 = vector.load %arg6[%c6, %c0_33, %c0_34] : memref<25x20x20xf32, #tpu.memory_space<vmem>>, vector<1x20x20xf32>
    %52 = vector.shape_cast %51 : vector<1x20x20xf32> to vector<20x20xf32>
    %53 = vector.extract_strided_slice %19 {offsets = [0, 96], sizes = [20, 16], strides = [1, 1]} : vector<20x400xf32> to vector<20x16xf32>
    %cst_35 = arith.constant dense<0.000000e+00> : vector<20x16xf32>
    %54 = tpu.matmul %52, %53, %cst_35 {dimension_numbers = #tpu.dot_dimension_numbers<[1], [0], [0], [1], [0, 0, 1, 1], [], []>} : vector<20x20xf32>, vector<20x16xf32>, vector<20x16xf32> -> vector<20x16xf32>
    %55 = arith.addf %50, %54 : vector<20x16xf32>
    %c7 = arith.constant 7 : index
    %c0_36 = arith.constant 0 : index
    %c0_37 = arith.constant 0 : index
    %56 = vector.load %arg6[%c7, %c0_36, %c0_37] : memref<25x20x20xf32, #tpu.memory_space<vmem>>, vector<1x20x20xf32>
    %57 = vector.shape_cast %56 : vector<1x20x20xf32> to vector<20x20xf32>
    %58 = vector.extract_strided_slice %19 {offsets = [0, 112], sizes = [20, 16], strides = [1, 1]} : vector<20x400xf32> to vector<20x16xf32>
    %cst_38 = arith.constant dense<0.000000e+00> : vector<20x16xf32>
    %59 = tpu.matmul %57, %58, %cst_38 {dimension_numbers = #tpu.dot_dimension_numbers<[1], [0], [0], [1], [0, 0, 1, 1], [], []>} : vector<20x20xf32>, vector<20x16xf32>, vector<20x16xf32> -> vector<20x16xf32>
    %60 = arith.addf %55, %59 : vector<20x16xf32>
    %c8 = arith.constant 8 : index
    %c0_39 = arith.constant 0 : index
    %c0_40 = arith.constant 0 : index
    %61 = vector.load %arg6[%c8, %c0_39, %c0_40] : memref<25x20x20xf32, #tpu.memory_space<vmem>>, vector<1x20x20xf32>
    %62 = vector.shape_cast %61 : vector<1x20x20xf32> to vector<20x20xf32>
    %63 = vector.extract_strided_slice %19 {offsets = [0, 128], sizes = [20, 16], strides = [1, 1]} : vector<20x400xf32> to vector<20x16xf32>
    %cst_41 = arith.constant dense<0.000000e+00> : vector<20x16xf32>
    %64 = tpu.matmul %62, %63, %cst_41 {dimension_numbers = #tpu.dot_dimension_numbers<[1], [0], [0], [1], [0, 0, 1, 1], [], []>} : vector<20x20xf32>, vector<20x16xf32>, vector<20x16xf32> -> vector<20x16xf32>
    %65 = arith.addf %60, %64 : vector<20x16xf32>
    %c9 = arith.constant 9 : index
    %c0_42 = arith.constant 0 : index
    %c0_43 = arith.constant 0 : index
    %66 = vector.load %arg6[%c9, %c0_42, %c0_43] : memref<25x20x20xf32, #tpu.memory_space<vmem>>, vector<1x20x20xf32>
    %67 = vector.shape_cast %66 : vector<1x20x20xf32> to vector<20x20xf32>
    %68 = vector.extract_strided_slice %19 {offsets = [0, 144], sizes = [20, 16], strides = [1, 1]} : vector<20x400xf32> to vector<20x16xf32>
    %cst_44 = arith.constant dense<0.000000e+00> : vector<20x16xf32>
    %69 = tpu.matmul %67, %68, %cst_44 {dimension_numbers = #tpu.dot_dimension_numbers<[1], [0], [0], [1], [0, 0, 1, 1], [], []>} : vector<20x20xf32>, vector<20x16xf32>, vector<20x16xf32> -> vector<20x16xf32>
    %70 = arith.addf %65, %69 : vector<20x16xf32>
    %c10 = arith.constant 10 : index
    %c0_45 = arith.constant 0 : index
    %c0_46 = arith.constant 0 : index
    %71 = vector.load %arg6[%c10, %c0_45, %c0_46] : memref<25x20x20xf32, #tpu.memory_space<vmem>>, vector<1x20x20xf32>
    %72 = vector.shape_cast %71 : vector<1x20x20xf32> to vector<20x20xf32>
    %73 = vector.extract_strided_slice %19 {offsets = [0, 160], sizes = [20, 16], strides = [1, 1]} : vector<20x400xf32> to vector<20x16xf32>
    %cst_47 = arith.constant dense<0.000000e+00> : vector<20x16xf32>
    %74 = tpu.matmul %72, %73, %cst_47 {dimension_numbers = #tpu.dot_dimension_numbers<[1], [0], [0], [1], [0, 0, 1, 1], [], []>} : vector<20x20xf32>, vector<20x16xf32>, vector<20x16xf32> -> vector<20x16xf32>
    %75 = arith.addf %70, %74 : vector<20x16xf32>
    %c11 = arith.constant 11 : index
    %c0_48 = arith.constant 0 : index
    %c0_49 = arith.constant 0 : index
    %76 = vector.load %arg6[%c11, %c0_48, %c0_49] : memref<25x20x20xf32, #tpu.memory_space<vmem>>, vector<1x20x20xf32>
    %77 = vector.shape_cast %76 : vector<1x20x20xf32> to vector<20x20xf32>
    %78 = vector.extract_strided_slice %19 {offsets = [0, 176], sizes = [20, 16], strides = [1, 1]} : vector<20x400xf32> to vector<20x16xf32>
    %cst_50 = arith.constant dense<0.000000e+00> : vector<20x16xf32>
    %79 = tpu.matmul %77, %78, %cst_50 {dimension_numbers = #tpu.dot_dimension_numbers<[1], [0], [0], [1], [0, 0, 1, 1], [], []>} : vector<20x20xf32>, vector<20x16xf32>, vector<20x16xf32> -> vector<20x16xf32>
    %80 = arith.addf %75, %79 : vector<20x16xf32>
    %c12 = arith.constant 12 : index
    %c0_51 = arith.constant 0 : index
    %c0_52 = arith.constant 0 : index
    %81 = vector.load %arg6[%c12, %c0_51, %c0_52] : memref<25x20x20xf32, #tpu.memory_space<vmem>>, vector<1x20x20xf32>
    %82 = vector.shape_cast %81 : vector<1x20x20xf32> to vector<20x20xf32>
    %83 = vector.extract_strided_slice %19 {offsets = [0, 192], sizes = [20, 16], strides = [1, 1]} : vector<20x400xf32> to vector<20x16xf32>
    %cst_53 = arith.constant dense<0.000000e+00> : vector<20x16xf32>
    %84 = tpu.matmul %82, %83, %cst_53 {dimension_numbers = #tpu.dot_dimension_numbers<[1], [0], [0], [1], [0, 0, 1, 1], [], []>} : vector<20x20xf32>, vector<20x16xf32>, vector<20x16xf32> -> vector<20x16xf32>
    %85 = arith.addf %80, %84 : vector<20x16xf32>
    %c13 = arith.constant 13 : index
    %c0_54 = arith.constant 0 : index
    %c0_55 = arith.constant 0 : index
    %86 = vector.load %arg6[%c13, %c0_54, %c0_55] : memref<25x20x20xf32, #tpu.memory_space<vmem>>, vector<1x20x20xf32>
    %87 = vector.shape_cast %86 : vector<1x20x20xf32> to vector<20x20xf32>
    %88 = vector.extract_strided_slice %19 {offsets = [0, 208], sizes = [20, 16], strides = [1, 1]} : vector<20x400xf32> to vector<20x16xf32>
    %cst_56 = arith.constant dense<0.000000e+00> : vector<20x16xf32>
    %89 = tpu.matmul %87, %88, %cst_56 {dimension_numbers = #tpu.dot_dimension_numbers<[1], [0], [0], [1], [0, 0, 1, 1], [], []>} : vector<20x20xf32>, vector<20x16xf32>, vector<20x16xf32> -> vector<20x16xf32>
    %90 = arith.addf %85, %89 : vector<20x16xf32>
    %c14 = arith.constant 14 : index
    %c0_57 = arith.constant 0 : index
    %c0_58 = arith.constant 0 : index
    %91 = vector.load %arg6[%c14, %c0_57, %c0_58] : memref<25x20x20xf32, #tpu.memory_space<vmem>>, vector<1x20x20xf32>
    %92 = vector.shape_cast %91 : vector<1x20x20xf32> to vector<20x20xf32>
    %93 = vector.extract_strided_slice %19 {offsets = [0, 224], sizes = [20, 16], strides = [1, 1]} : vector<20x400xf32> to vector<20x16xf32>
    %cst_59 = arith.constant dense<0.000000e+00> : vector<20x16xf32>
    %94 = tpu.matmul %92, %93, %cst_59 {dimension_numbers = #tpu.dot_dimension_numbers<[1], [0], [0], [1], [0, 0, 1, 1], [], []>} : vector<20x20xf32>, vector<20x16xf32>, vector<20x16xf32> -> vector<20x16xf32>
    %95 = arith.addf %90, %94 : vector<20x16xf32>
    %c15 = arith.constant 15 : index
    %c0_60 = arith.constant 0 : index
    %c0_61 = arith.constant 0 : index
    %96 = vector.load %arg6[%c15, %c0_60, %c0_61] : memref<25x20x20xf32, #tpu.memory_space<vmem>>, vector<1x20x20xf32>
    %97 = vector.shape_cast %96 : vector<1x20x20xf32> to vector<20x20xf32>
    %98 = vector.extract_strided_slice %19 {offsets = [0, 240], sizes = [20, 16], strides = [1, 1]} : vector<20x400xf32> to vector<20x16xf32>
    %cst_62 = arith.constant dense<0.000000e+00> : vector<20x16xf32>
    %99 = tpu.matmul %97, %98, %cst_62 {dimension_numbers = #tpu.dot_dimension_numbers<[1], [0], [0], [1], [0, 0, 1, 1], [], []>} : vector<20x20xf32>, vector<20x16xf32>, vector<20x16xf32> -> vector<20x16xf32>
    %100 = arith.addf %95, %99 : vector<20x16xf32>
    %c16 = arith.constant 16 : index
    %c0_63 = arith.constant 0 : index
    %c0_64 = arith.constant 0 : index
    %101 = vector.load %arg6[%c16, %c0_63, %c0_64] : memref<25x20x20xf32, #tpu.memory_space<vmem>>, vector<1x20x20xf32>
    %102 = vector.shape_cast %101 : vector<1x20x20xf32> to vector<20x20xf32>
    %103 = vector.extract_strided_slice %19 {offsets = [0, 256], sizes = [20, 16], strides = [1, 1]} : vector<20x400xf32> to vector<20x16xf32>
    %cst_65 = arith.constant dense<0.000000e+00> : vector<20x16xf32>
    %104 = tpu.matmul %102, %103, %cst_65 {dimension_numbers = #tpu.dot_dimension_numbers<[1], [0], [0], [1], [0, 0, 1, 1], [], []>} : vector<20x20xf32>, vector<20x16xf32>, vector<20x16xf32> -> vector<20x16xf32>
    %105 = arith.addf %100, %104 : vector<20x16xf32>
    %c17 = arith.constant 17 : index
    %c0_66 = arith.constant 0 : index
    %c0_67 = arith.constant 0 : index
    %106 = vector.load %arg6[%c17, %c0_66, %c0_67] : memref<25x20x20xf32, #tpu.memory_space<vmem>>, vector<1x20x20xf32>
    %107 = vector.shape_cast %106 : vector<1x20x20xf32> to vector<20x20xf32>
    %108 = vector.extract_strided_slice %19 {offsets = [0, 272], sizes = [20, 16], strides = [1, 1]} : vector<20x400xf32> to vector<20x16xf32>
    %cst_68 = arith.constant dense<0.000000e+00> : vector<20x16xf32>
    %109 = tpu.matmul %107, %108, %cst_68 {dimension_numbers = #tpu.dot_dimension_numbers<[1], [0], [0], [1], [0, 0, 1, 1], [], []>} : vector<20x20xf32>, vector<20x16xf32>, vector<20x16xf32> -> vector<20x16xf32>
    %110 = arith.addf %105, %109 : vector<20x16xf32>
    %c18 = arith.constant 18 : index
    %c0_69 = arith.constant 0 : index
    %c0_70 = arith.constant 0 : index
    %111 = vector.load %arg6[%c18, %c0_69, %c0_70] : memref<25x20x20xf32, #tpu.memory_space<vmem>>, vector<1x20x20xf32>
    %112 = vector.shape_cast %111 : vector<1x20x20xf32> to vector<20x20xf32>
    %113 = vector.extract_strided_slice %19 {offsets = [0, 288], sizes = [20, 16], strides = [1, 1]} : vector<20x400xf32> to vector<20x16xf32>
    %cst_71 = arith.constant dense<0.000000e+00> : vector<20x16xf32>
    %114 = tpu.matmul %112, %113, %cst_71 {dimension_numbers = #tpu.dot_dimension_numbers<[1], [0], [0], [1], [0, 0, 1, 1], [], []>} : vector<20x20xf32>, vector<20x16xf32>, vector<20x16xf32> -> vector<20x16xf32>
    %115 = arith.addf %110, %114 : vector<20x16xf32>
    %c19 = arith.constant 19 : index
    %c0_72 = arith.constant 0 : index
    %c0_73 = arith.constant 0 : index
    %116 = vector.load %arg6[%c19, %c0_72, %c0_73] : memref<25x20x20xf32, #tpu.memory_space<vmem>>, vector<1x20x20xf32>
    %117 = vector.shape_cast %116 : vector<1x20x20xf32> to vector<20x20xf32>
    %118 = vector.extract_strided_slice %19 {offsets = [0, 304], sizes = [20, 16], strides = [1, 1]} : vector<20x400xf32> to vector<20x16xf32>
    %cst_74 = arith.constant dense<0.000000e+00> : vector<20x16xf32>
    %119 = tpu.matmul %117, %118, %cst_74 {dimension_numbers = #tpu.dot_dimension_numbers<[1], [0], [0], [1], [0, 0, 1, 1], [], []>} : vector<20x20xf32>, vector<20x16xf32>, vector<20x16xf32> -> vector<20x16xf32>
    %120 = arith.addf %115, %119 : vector<20x16xf32>
    %c20 = arith.constant 20 : index
    %c0_75 = arith.constant 0 : index
    %c0_76 = arith.constant 0 : index
    %121 = vector.load %arg6[%c20, %c0_75, %c0_76] : memref<25x20x20xf32, #tpu.memory_space<vmem>>, vector<1x20x20xf32>
    %122 = vector.shape_cast %121 : vector<1x20x20xf32> to vector<20x20xf32>
    %123 = vector.extract_strided_slice %19 {offsets = [0, 320], sizes = [20, 16], strides = [1, 1]} : vector<20x400xf32> to vector<20x16xf32>
    %cst_77 = arith.constant dense<0.000000e+00> : vector<20x16xf32>
    %124 = tpu.matmul %122, %123, %cst_77 {dimension_numbers = #tpu.dot_dimension_numbers<[1], [0], [0], [1], [0, 0, 1, 1], [], []>} : vector<20x20xf32>, vector<20x16xf32>, vector<20x16xf32> -> vector<20x16xf32>
    %125 = arith.addf %120, %124 : vector<20x16xf32>
    %c21 = arith.constant 21 : index
    %c0_78 = arith.constant 0 : index
    %c0_79 = arith.constant 0 : index
    %126 = vector.load %arg6[%c21, %c0_78, %c0_79] : memref<25x20x20xf32, #tpu.memory_space<vmem>>, vector<1x20x20xf32>
    %127 = vector.shape_cast %126 : vector<1x20x20xf32> to vector<20x20xf32>
    %128 = vector.extract_strided_slice %19 {offsets = [0, 336], sizes = [20, 16], strides = [1, 1]} : vector<20x400xf32> to vector<20x16xf32>
    %cst_80 = arith.constant dense<0.000000e+00> : vector<20x16xf32>
    %129 = tpu.matmul %127, %128, %cst_80 {dimension_numbers = #tpu.dot_dimension_numbers<[1], [0], [0], [1], [0, 0, 1, 1], [], []>} : vector<20x20xf32>, vector<20x16xf32>, vector<20x16xf32> -> vector<20x16xf32>
    %130 = arith.addf %125, %129 : vector<20x16xf32>
    %c22 = arith.constant 22 : index
    %c0_81 = arith.constant 0 : index
    %c0_82 = arith.constant 0 : index
    %131 = vector.load %arg6[%c22, %c0_81, %c0_82] : memref<25x20x20xf32, #tpu.memory_space<vmem>>, vector<1x20x20xf32>
    %132 = vector.shape_cast %131 : vector<1x20x20xf32> to vector<20x20xf32>
    %133 = vector.extract_strided_slice %19 {offsets = [0, 352], sizes = [20, 16], strides = [1, 1]} : vector<20x400xf32> to vector<20x16xf32>
    %cst_83 = arith.constant dense<0.000000e+00> : vector<20x16xf32>
    %134 = tpu.matmul %132, %133, %cst_83 {dimension_numbers = #tpu.dot_dimension_numbers<[1], [0], [0], [1], [0, 0, 1, 1], [], []>} : vector<20x20xf32>, vector<20x16xf32>, vector<20x16xf32> -> vector<20x16xf32>
    %135 = arith.addf %130, %134 : vector<20x16xf32>
    %c23 = arith.constant 23 : index
    %c0_84 = arith.constant 0 : index
    %c0_85 = arith.constant 0 : index
    %136 = vector.load %arg6[%c23, %c0_84, %c0_85] : memref<25x20x20xf32, #tpu.memory_space<vmem>>, vector<1x20x20xf32>
    %137 = vector.shape_cast %136 : vector<1x20x20xf32> to vector<20x20xf32>
    %138 = vector.extract_strided_slice %19 {offsets = [0, 368], sizes = [20, 16], strides = [1, 1]} : vector<20x400xf32> to vector<20x16xf32>
    %cst_86 = arith.constant dense<0.000000e+00> : vector<20x16xf32>
    %139 = tpu.matmul %137, %138, %cst_86 {dimension_numbers = #tpu.dot_dimension_numbers<[1], [0], [0], [1], [0, 0, 1, 1], [], []>} : vector<20x20xf32>, vector<20x16xf32>, vector<20x16xf32> -> vector<20x16xf32>
    %140 = arith.addf %135, %139 : vector<20x16xf32>
    %c24 = arith.constant 24 : index
    %c0_87 = arith.constant 0 : index
    %c0_88 = arith.constant 0 : index
    %141 = vector.load %arg6[%c24, %c0_87, %c0_88] : memref<25x20x20xf32, #tpu.memory_space<vmem>>, vector<1x20x20xf32>
    %142 = vector.shape_cast %141 : vector<1x20x20xf32> to vector<20x20xf32>
    %143 = vector.extract_strided_slice %19 {offsets = [0, 384], sizes = [20, 16], strides = [1, 1]} : vector<20x400xf32> to vector<20x16xf32>
    %cst_89 = arith.constant dense<0.000000e+00> : vector<20x16xf32>
    %144 = tpu.matmul %142, %143, %cst_89 {dimension_numbers = #tpu.dot_dimension_numbers<[1], [0], [0], [1], [0, 0, 1, 1], [], []>} : vector<20x20xf32>, vector<20x16xf32>, vector<20x16xf32> -> vector<20x16xf32>
    %145 = arith.addf %140, %144 : vector<20x16xf32>
    %c0_90 = arith.constant 0 : index
    %c0_91 = arith.constant 0 : index
    %146 = vector.load %arg7[%c0_90, %c0_91] : memref<20x1xf32, #tpu.memory_space<vmem>>, vector<20x1xf32>
    %147 = vector.broadcast %146 : vector<20x1xf32> to vector<20x16xf32>
    %148 = arith.addf %145, %147 : vector<20x16xf32>
    %cst_92 = arith.constant 0.000000e+00 : f32
    %149 = vector.broadcast %cst_92 : f32 to vector<20x16xf32>
    %150 = arith.maximumf %148, %149 : vector<20x16xf32>
    %c0_93 = arith.constant 0 : index
    %c0_94 = arith.constant 0 : index
    %151 = vector.load %arg9[%c0_93, %c0_94] : memref<1x32xf32, #tpu.memory_space<vmem>>, vector<1x32xf32>
    %152 = vector.extract_strided_slice %150 {offsets = [0, 0], sizes = [1, 16], strides = [1, 1]} : vector<20x16xf32> to vector<1x16xf32>
    %c0_95 = arith.constant 0 : index
    %c0_96 = arith.constant 0 : index
    %c0_97 = arith.constant 0 : index
    %153 = vector.load %arg8[%c0_95, %c0_96, %c0_97] : memref<20x16x32xf32, #tpu.memory_space<vmem>>, vector<1x16x32xf32>
    %154 = vector.shape_cast %153 : vector<1x16x32xf32> to vector<16x32xf32>
    %cst_98 = arith.constant dense<0.000000e+00> : vector<1x32xf32>
    %155 = tpu.matmul %152, %154, %cst_98 {dimension_numbers = #tpu.dot_dimension_numbers<[1], [0], [0], [1], [0, 0, 1, 1], [], []>} : vector<1x16xf32>, vector<16x32xf32>, vector<1x32xf32> -> vector<1x32xf32>
    %156 = arith.addf %151, %155 : vector<1x32xf32>
    %157 = vector.extract_strided_slice %150 {offsets = [1, 0], sizes = [1, 16], strides = [1, 1]} : vector<20x16xf32> to vector<1x16xf32>
    %c1_99 = arith.constant 1 : index
    %c0_100 = arith.constant 0 : index
    %c0_101 = arith.constant 0 : index
    %158 = vector.load %arg8[%c1_99, %c0_100, %c0_101] : memref<20x16x32xf32, #tpu.memory_space<vmem>>, vector<1x16x32xf32>
    %159 = vector.shape_cast %158 : vector<1x16x32xf32> to vector<16x32xf32>
    %cst_102 = arith.constant dense<0.000000e+00> : vector<1x32xf32>
    %160 = tpu.matmul %157, %159, %cst_102 {dimension_numbers = #tpu.dot_dimension_numbers<[1], [0], [0], [1], [0, 0, 1, 1], [], []>} : vector<1x16xf32>, vector<16x32xf32>, vector<1x32xf32> -> vector<1x32xf32>
    %161 = arith.addf %156, %160 : vector<1x32xf32>
    %162 = vector.extract_strided_slice %150 {offsets = [2, 0], sizes = [1, 16], strides = [1, 1]} : vector<20x16xf32> to vector<1x16xf32>
    %c2_103 = arith.constant 2 : index
    %c0_104 = arith.constant 0 : index
    %c0_105 = arith.constant 0 : index
    %163 = vector.load %arg8[%c2_103, %c0_104, %c0_105] : memref<20x16x32xf32, #tpu.memory_space<vmem>>, vector<1x16x32xf32>
    %164 = vector.shape_cast %163 : vector<1x16x32xf32> to vector<16x32xf32>
    %cst_106 = arith.constant dense<0.000000e+00> : vector<1x32xf32>
    %165 = tpu.matmul %162, %164, %cst_106 {dimension_numbers = #tpu.dot_dimension_numbers<[1], [0], [0], [1], [0, 0, 1, 1], [], []>} : vector<1x16xf32>, vector<16x32xf32>, vector<1x32xf32> -> vector<1x32xf32>
    %166 = arith.addf %161, %165 : vector<1x32xf32>
    %167 = vector.extract_strided_slice %150 {offsets = [3, 0], sizes = [1, 16], strides = [1, 1]} : vector<20x16xf32> to vector<1x16xf32>
    %c3_107 = arith.constant 3 : index
    %c0_108 = arith.constant 0 : index
    %c0_109 = arith.constant 0 : index
    %168 = vector.load %arg8[%c3_107, %c0_108, %c0_109] : memref<20x16x32xf32, #tpu.memory_space<vmem>>, vector<1x16x32xf32>
    %169 = vector.shape_cast %168 : vector<1x16x32xf32> to vector<16x32xf32>
    %cst_110 = arith.constant dense<0.000000e+00> : vector<1x32xf32>
    %170 = tpu.matmul %167, %169, %cst_110 {dimension_numbers = #tpu.dot_dimension_numbers<[1], [0], [0], [1], [0, 0, 1, 1], [], []>} : vector<1x16xf32>, vector<16x32xf32>, vector<1x32xf32> -> vector<1x32xf32>
    %171 = arith.addf %166, %170 : vector<1x32xf32>
    %172 = vector.extract_strided_slice %150 {offsets = [4, 0], sizes = [1, 16], strides = [1, 1]} : vector<20x16xf32> to vector<1x16xf32>
    %c4_111 = arith.constant 4 : index
    %c0_112 = arith.constant 0 : index
    %c0_113 = arith.constant 0 : index
    %173 = vector.load %arg8[%c4_111, %c0_112, %c0_113] : memref<20x16x32xf32, #tpu.memory_space<vmem>>, vector<1x16x32xf32>
    %174 = vector.shape_cast %173 : vector<1x16x32xf32> to vector<16x32xf32>
    %cst_114 = arith.constant dense<0.000000e+00> : vector<1x32xf32>
    %175 = tpu.matmul %172, %174, %cst_114 {dimension_numbers = #tpu.dot_dimension_numbers<[1], [0], [0], [1], [0, 0, 1, 1], [], []>} : vector<1x16xf32>, vector<16x32xf32>, vector<1x32xf32> -> vector<1x32xf32>
    %176 = arith.addf %171, %175 : vector<1x32xf32>
    %177 = vector.extract_strided_slice %150 {offsets = [5, 0], sizes = [1, 16], strides = [1, 1]} : vector<20x16xf32> to vector<1x16xf32>
    %c5_115 = arith.constant 5 : index
    %c0_116 = arith.constant 0 : index
    %c0_117 = arith.constant 0 : index
    %178 = vector.load %arg8[%c5_115, %c0_116, %c0_117] : memref<20x16x32xf32, #tpu.memory_space<vmem>>, vector<1x16x32xf32>
    %179 = vector.shape_cast %178 : vector<1x16x32xf32> to vector<16x32xf32>
    %cst_118 = arith.constant dense<0.000000e+00> : vector<1x32xf32>
    %180 = tpu.matmul %177, %179, %cst_118 {dimension_numbers = #tpu.dot_dimension_numbers<[1], [0], [0], [1], [0, 0, 1, 1], [], []>} : vector<1x16xf32>, vector<16x32xf32>, vector<1x32xf32> -> vector<1x32xf32>
    %181 = arith.addf %176, %180 : vector<1x32xf32>
    %182 = vector.extract_strided_slice %150 {offsets = [6, 0], sizes = [1, 16], strides = [1, 1]} : vector<20x16xf32> to vector<1x16xf32>
    %c6_119 = arith.constant 6 : index
    %c0_120 = arith.constant 0 : index
    %c0_121 = arith.constant 0 : index
    %183 = vector.load %arg8[%c6_119, %c0_120, %c0_121] : memref<20x16x32xf32, #tpu.memory_space<vmem>>, vector<1x16x32xf32>
    %184 = vector.shape_cast %183 : vector<1x16x32xf32> to vector<16x32xf32>
    %cst_122 = arith.constant dense<0.000000e+00> : vector<1x32xf32>
    %185 = tpu.matmul %182, %184, %cst_122 {dimension_numbers = #tpu.dot_dimension_numbers<[1], [0], [0], [1], [0, 0, 1, 1], [], []>} : vector<1x16xf32>, vector<16x32xf32>, vector<1x32xf32> -> vector<1x32xf32>
    %186 = arith.addf %181, %185 : vector<1x32xf32>
    %187 = vector.extract_strided_slice %150 {offsets = [7, 0], sizes = [1, 16], strides = [1, 1]} : vector<20x16xf32> to vector<1x16xf32>
    %c7_123 = arith.constant 7 : index
    %c0_124 = arith.constant 0 : index
    %c0_125 = arith.constant 0 : index
    %188 = vector.load %arg8[%c7_123, %c0_124, %c0_125] : memref<20x16x32xf32, #tpu.memory_space<vmem>>, vector<1x16x32xf32>
    %189 = vector.shape_cast %188 : vector<1x16x32xf32> to vector<16x32xf32>
    %cst_126 = arith.constant dense<0.000000e+00> : vector<1x32xf32>
    %190 = tpu.matmul %187, %189, %cst_126 {dimension_numbers = #tpu.dot_dimension_numbers<[1], [0], [0], [1], [0, 0, 1, 1], [], []>} : vector<1x16xf32>, vector<16x32xf32>, vector<1x32xf32> -> vector<1x32xf32>
    %191 = arith.addf %186, %190 : vector<1x32xf32>
    %192 = vector.extract_strided_slice %150 {offsets = [8, 0], sizes = [1, 16], strides = [1, 1]} : vector<20x16xf32> to vector<1x16xf32>
    %c8_127 = arith.constant 8 : index
    %c0_128 = arith.constant 0 : index
    %c0_129 = arith.constant 0 : index
    %193 = vector.load %arg8[%c8_127, %c0_128, %c0_129] : memref<20x16x32xf32, #tpu.memory_space<vmem>>, vector<1x16x32xf32>
    %194 = vector.shape_cast %193 : vector<1x16x32xf32> to vector<16x32xf32>
    %cst_130 = arith.constant dense<0.000000e+00> : vector<1x32xf32>
    %195 = tpu.matmul %192, %194, %cst_130 {dimension_numbers = #tpu.dot_dimension_numbers<[1], [0], [0], [1], [0, 0, 1, 1], [], []>} : vector<1x16xf32>, vector<16x32xf32>, vector<1x32xf32> -> vector<1x32xf32>
    %196 = arith.addf %191, %195 : vector<1x32xf32>
    %197 = vector.extract_strided_slice %150 {offsets = [9, 0], sizes = [1, 16], strides = [1, 1]} : vector<20x16xf32> to vector<1x16xf32>
    %c9_131 = arith.constant 9 : index
    %c0_132 = arith.constant 0 : index
    %c0_133 = arith.constant 0 : index
    %198 = vector.load %arg8[%c9_131, %c0_132, %c0_133] : memref<20x16x32xf32, #tpu.memory_space<vmem>>, vector<1x16x32xf32>
    %199 = vector.shape_cast %198 : vector<1x16x32xf32> to vector<16x32xf32>
    %cst_134 = arith.constant dense<0.000000e+00> : vector<1x32xf32>
    %200 = tpu.matmul %197, %199, %cst_134 {dimension_numbers = #tpu.dot_dimension_numbers<[1], [0], [0], [1], [0, 0, 1, 1], [], []>} : vector<1x16xf32>, vector<16x32xf32>, vector<1x32xf32> -> vector<1x32xf32>
    %201 = arith.addf %196, %200 : vector<1x32xf32>
    %202 = vector.extract_strided_slice %150 {offsets = [10, 0], sizes = [1, 16], strides = [1, 1]} : vector<20x16xf32> to vector<1x16xf32>
    %c10_135 = arith.constant 10 : index
    %c0_136 = arith.constant 0 : index
    %c0_137 = arith.constant 0 : index
    %203 = vector.load %arg8[%c10_135, %c0_136, %c0_137] : memref<20x16x32xf32, #tpu.memory_space<vmem>>, vector<1x16x32xf32>
    %204 = vector.shape_cast %203 : vector<1x16x32xf32> to vector<16x32xf32>
    %cst_138 = arith.constant dense<0.000000e+00> : vector<1x32xf32>
    %205 = tpu.matmul %202, %204, %cst_138 {dimension_numbers = #tpu.dot_dimension_numbers<[1], [0], [0], [1], [0, 0, 1, 1], [], []>} : vector<1x16xf32>, vector<16x32xf32>, vector<1x32xf32> -> vector<1x32xf32>
    %206 = arith.addf %201, %205 : vector<1x32xf32>
    %207 = vector.extract_strided_slice %150 {offsets = [11, 0], sizes = [1, 16], strides = [1, 1]} : vector<20x16xf32> to vector<1x16xf32>
    %c11_139 = arith.constant 11 : index
    %c0_140 = arith.constant 0 : index
    %c0_141 = arith.constant 0 : index
    %208 = vector.load %arg8[%c11_139, %c0_140, %c0_141] : memref<20x16x32xf32, #tpu.memory_space<vmem>>, vector<1x16x32xf32>
    %209 = vector.shape_cast %208 : vector<1x16x32xf32> to vector<16x32xf32>
    %cst_142 = arith.constant dense<0.000000e+00> : vector<1x32xf32>
    %210 = tpu.matmul %207, %209, %cst_142 {dimension_numbers = #tpu.dot_dimension_numbers<[1], [0], [0], [1], [0, 0, 1, 1], [], []>} : vector<1x16xf32>, vector<16x32xf32>, vector<1x32xf32> -> vector<1x32xf32>
    %211 = arith.addf %206, %210 : vector<1x32xf32>
    %212 = vector.extract_strided_slice %150 {offsets = [12, 0], sizes = [1, 16], strides = [1, 1]} : vector<20x16xf32> to vector<1x16xf32>
    %c12_143 = arith.constant 12 : index
    %c0_144 = arith.constant 0 : index
    %c0_145 = arith.constant 0 : index
    %213 = vector.load %arg8[%c12_143, %c0_144, %c0_145] : memref<20x16x32xf32, #tpu.memory_space<vmem>>, vector<1x16x32xf32>
    %214 = vector.shape_cast %213 : vector<1x16x32xf32> to vector<16x32xf32>
    %cst_146 = arith.constant dense<0.000000e+00> : vector<1x32xf32>
    %215 = tpu.matmul %212, %214, %cst_146 {dimension_numbers = #tpu.dot_dimension_numbers<[1], [0], [0], [1], [0, 0, 1, 1], [], []>} : vector<1x16xf32>, vector<16x32xf32>, vector<1x32xf32> -> vector<1x32xf32>
    %216 = arith.addf %211, %215 : vector<1x32xf32>
    %217 = vector.extract_strided_slice %150 {offsets = [13, 0], sizes = [1, 16], strides = [1, 1]} : vector<20x16xf32> to vector<1x16xf32>
    %c13_147 = arith.constant 13 : index
    %c0_148 = arith.constant 0 : index
    %c0_149 = arith.constant 0 : index
    %218 = vector.load %arg8[%c13_147, %c0_148, %c0_149] : memref<20x16x32xf32, #tpu.memory_space<vmem>>, vector<1x16x32xf32>
    %219 = vector.shape_cast %218 : vector<1x16x32xf32> to vector<16x32xf32>
    %cst_150 = arith.constant dense<0.000000e+00> : vector<1x32xf32>
    %220 = tpu.matmul %217, %219, %cst_150 {dimension_numbers = #tpu.dot_dimension_numbers<[1], [0], [0], [1], [0, 0, 1, 1], [], []>} : vector<1x16xf32>, vector<16x32xf32>, vector<1x32xf32> -> vector<1x32xf32>
    %221 = arith.addf %216, %220 : vector<1x32xf32>
    %222 = vector.extract_strided_slice %150 {offsets = [14, 0], sizes = [1, 16], strides = [1, 1]} : vector<20x16xf32> to vector<1x16xf32>
    %c14_151 = arith.constant 14 : index
    %c0_152 = arith.constant 0 : index
    %c0_153 = arith.constant 0 : index
    %223 = vector.load %arg8[%c14_151, %c0_152, %c0_153] : memref<20x16x32xf32, #tpu.memory_space<vmem>>, vector<1x16x32xf32>
    %224 = vector.shape_cast %223 : vector<1x16x32xf32> to vector<16x32xf32>
    %cst_154 = arith.constant dense<0.000000e+00> : vector<1x32xf32>
    %225 = tpu.matmul %222, %224, %cst_154 {dimension_numbers = #tpu.dot_dimension_numbers<[1], [0], [0], [1], [0, 0, 1, 1], [], []>} : vector<1x16xf32>, vector<16x32xf32>, vector<1x32xf32> -> vector<1x32xf32>
    %226 = arith.addf %221, %225 : vector<1x32xf32>
    %227 = vector.extract_strided_slice %150 {offsets = [15, 0], sizes = [1, 16], strides = [1, 1]} : vector<20x16xf32> to vector<1x16xf32>
    %c15_155 = arith.constant 15 : index
    %c0_156 = arith.constant 0 : index
    %c0_157 = arith.constant 0 : index
    %228 = vector.load %arg8[%c15_155, %c0_156, %c0_157] : memref<20x16x32xf32, #tpu.memory_space<vmem>>, vector<1x16x32xf32>
    %229 = vector.shape_cast %228 : vector<1x16x32xf32> to vector<16x32xf32>
    %cst_158 = arith.constant dense<0.000000e+00> : vector<1x32xf32>
    %230 = tpu.matmul %227, %229, %cst_158 {dimension_numbers = #tpu.dot_dimension_numbers<[1], [0], [0], [1], [0, 0, 1, 1], [], []>} : vector<1x16xf32>, vector<16x32xf32>, vector<1x32xf32> -> vector<1x32xf32>
    %231 = arith.addf %226, %230 : vector<1x32xf32>
    %232 = vector.extract_strided_slice %150 {offsets = [16, 0], sizes = [1, 16], strides = [1, 1]} : vector<20x16xf32> to vector<1x16xf32>
    %c16_159 = arith.constant 16 : index
    %c0_160 = arith.constant 0 : index
    %c0_161 = arith.constant 0 : index
    %233 = vector.load %arg8[%c16_159, %c0_160, %c0_161] : memref<20x16x32xf32, #tpu.memory_space<vmem>>, vector<1x16x32xf32>
    %234 = vector.shape_cast %233 : vector<1x16x32xf32> to vector<16x32xf32>
    %cst_162 = arith.constant dense<0.000000e+00> : vector<1x32xf32>
    %235 = tpu.matmul %232, %234, %cst_162 {dimension_numbers = #tpu.dot_dimension_numbers<[1], [0], [0], [1], [0, 0, 1, 1], [], []>} : vector<1x16xf32>, vector<16x32xf32>, vector<1x32xf32> -> vector<1x32xf32>
    %236 = arith.addf %231, %235 : vector<1x32xf32>
    %237 = vector.extract_strided_slice %150 {offsets = [17, 0], sizes = [1, 16], strides = [1, 1]} : vector<20x16xf32> to vector<1x16xf32>
    %c17_163 = arith.constant 17 : index
    %c0_164 = arith.constant 0 : index
    %c0_165 = arith.constant 0 : index
    %238 = vector.load %arg8[%c17_163, %c0_164, %c0_165] : memref<20x16x32xf32, #tpu.memory_space<vmem>>, vector<1x16x32xf32>
    %239 = vector.shape_cast %238 : vector<1x16x32xf32> to vector<16x32xf32>
    %cst_166 = arith.constant dense<0.000000e+00> : vector<1x32xf32>
    %240 = tpu.matmul %237, %239, %cst_166 {dimension_numbers = #tpu.dot_dimension_numbers<[1], [0], [0], [1], [0, 0, 1, 1], [], []>} : vector<1x16xf32>, vector<16x32xf32>, vector<1x32xf32> -> vector<1x32xf32>
    %241 = arith.addf %236, %240 : vector<1x32xf32>
    %242 = vector.extract_strided_slice %150 {offsets = [18, 0], sizes = [1, 16], strides = [1, 1]} : vector<20x16xf32> to vector<1x16xf32>
    %c18_167 = arith.constant 18 : index
    %c0_168 = arith.constant 0 : index
    %c0_169 = arith.constant 0 : index
    %243 = vector.load %arg8[%c18_167, %c0_168, %c0_169] : memref<20x16x32xf32, #tpu.memory_space<vmem>>, vector<1x16x32xf32>
    %244 = vector.shape_cast %243 : vector<1x16x32xf32> to vector<16x32xf32>
    %cst_170 = arith.constant dense<0.000000e+00> : vector<1x32xf32>
    %245 = tpu.matmul %242, %244, %cst_170 {dimension_numbers = #tpu.dot_dimension_numbers<[1], [0], [0], [1], [0, 0, 1, 1], [], []>} : vector<1x16xf32>, vector<16x32xf32>, vector<1x32xf32> -> vector<1x32xf32>
    %246 = arith.addf %241, %245 : vector<1x32xf32>
    %247 = vector.extract_strided_slice %150 {offsets = [19, 0], sizes = [1, 16], strides = [1, 1]} : vector<20x16xf32> to vector<1x16xf32>
    %c19_171 = arith.constant 19 : index
    %c0_172 = arith.constant 0 : index
    %c0_173 = arith.constant 0 : index
    %248 = vector.load %arg8[%c19_171, %c0_172, %c0_173] : memref<20x16x32xf32, #tpu.memory_space<vmem>>, vector<1x16x32xf32>
    %249 = vector.shape_cast %248 : vector<1x16x32xf32> to vector<16x32xf32>
    %cst_174 = arith.constant dense<0.000000e+00> : vector<1x32xf32>
    %250 = tpu.matmul %247, %249, %cst_174 {dimension_numbers = #tpu.dot_dimension_numbers<[1], [0], [0], [1], [0, 0, 1, 1], [], []>} : vector<1x16xf32>, vector<16x32xf32>, vector<1x32xf32> -> vector<1x32xf32>
    %251 = arith.addf %246, %250 : vector<1x32xf32>
    %cst_175 = arith.constant 0.000000e+00 : f32
    %252 = vector.broadcast %cst_175 : f32 to vector<1x32xf32>
    %253 = arith.maximumf %251, %252 : vector<1x32xf32>
    %c0_176 = arith.constant 0 : index
    %c0_177 = arith.constant 0 : index
    %254 = vector.load %arg10[%c0_176, %c0_177] : memref<32x10xf32, #tpu.memory_space<vmem>>, vector<32x10xf32>
    %cst_178 = arith.constant dense<0.000000e+00> : vector<1x10xf32>
    %255 = tpu.matmul %253, %254, %cst_178 {dimension_numbers = #tpu.dot_dimension_numbers<[1], [0], [0], [1], [0, 0, 1, 1], [], []>} : vector<1x32xf32>, vector<32x10xf32>, vector<1x10xf32> -> vector<1x10xf32>
    %c0_179 = arith.constant 0 : index
    %c0_180 = arith.constant 0 : index
    %256 = vector.load %arg11[%c0_179, %c0_180] : memref<1x10xf32, #tpu.memory_space<vmem>>, vector<1x10xf32>
    %257 = arith.addf %255, %256 : vector<1x10xf32>
    %cst_181 = arith.constant dense<0xFF800000> : vector<1xf32>
    %258 = vector.multi_reduction <maximumf>, %257, %cst_181 [1] : vector<1x10xf32> to vector<1xf32>
    %259 = vector.shape_cast %258 : vector<1xf32> to vector<1x1xf32>
    %260 = vector.broadcast %259 : vector<1x1xf32> to vector<1x10xf32>
    %261 = arith.subf %257, %260 : vector<1x10xf32>
    %262 = math.exp %261 : vector<1x10xf32>
    %cst_182 = arith.constant dense<0.000000e+00> : vector<1xf32>
    %263 = vector.multi_reduction <add>, %262, %cst_182 [1] : vector<1x10xf32> to vector<1xf32>
    %264 = vector.shape_cast %263 : vector<1xf32> to vector<1x1xf32>
    %265 = math.log %264 : vector<1x1xf32>
    %266 = arith.addf %265, %259 : vector<1x1xf32>
    %267 = vector.broadcast %266 : vector<1x1xf32> to vector<1x10xf32>
    %268 = arith.subf %257, %267 : vector<1x10xf32>
    %c0_183 = arith.constant 0 : index
    %c0_184 = arith.constant 0 : index
    %c0_185 = arith.constant 0 : index
    %269 = vector.load %arg12[%c0_183, %c0_184, %c0_185] : memref<1x1x10xf32, #tpu.memory_space<vmem>>, vector<1x1x10xf32>
    %270 = vector.shape_cast %269 : vector<1x1x10xf32> to vector<1x10xf32>
    %271 = vector.shape_cast %268 : vector<1x10xf32> to vector<1x1x10xf32>
    tpu.vector_store %arg12[%c0_183, %c0_184, %c0_185], %271 {strides = array<i32>} : memref<1x1x10xf32, #tpu.memory_space<vmem>>, vector<1x1x10xf32>,
    return
  }
  func.func @transform_0(%arg0: i32) -> (i32, i32, i32) {
    %c0_i32 = arith.constant 0 : i32
    %c0_i32_0 = arith.constant 0 : i32
    %c0_i32_1 = arith.constant 0 : i32
    return %arg0, %c0_i32, %c0_i32_0 : i32, i32, i32
  }
  func.func @transform_1(%arg0: i32) -> (i32, i32) {
    %c0_i32 = arith.constant 0 : i32
    %c0_i32_0 = arith.constant 0 : i32
    %c0_i32_1 = arith.constant 0 : i32
    return %c0_i32, %c0_i32_0 : i32, i32
  }
  func.func @transform_2(%arg0: i32) -> (i32, i32) {
    %c0_i32 = arith.constant 0 : i32
    %c0_i32_0 = arith.constant 0 : i32
    %c0_i32_1 = arith.constant 0 : i32
    return %c0_i32, %c0_i32_0 : i32, i32
  }
  func.func @transform_3(%arg0: i32) -> (i32, i32) {
    %c0_i32 = arith.constant 0 : i32
    %c0_i32_0 = arith.constant 0 : i32
    %c0_i32_1 = arith.constant 0 : i32
    return %c0_i32, %c0_i32_0 : i32, i32
  }
  func.func @transform_4(%arg0: i32) -> (i32, i32) {
    %c0_i32 = arith.constant 0 : i32
    %c0_i32_0 = arith.constant 0 : i32
    %c0_i32_1 = arith.constant 0 : i32
    return %c0_i32, %c0_i32_0 : i32, i32
  }
  func.func @transform_5(%arg0: i32) -> (i32, i32, i32) {
    %c0_i32 = arith.constant 0 : i32
    %c0_i32_0 = arith.constant 0 : i32
    %c0_i32_1 = arith.constant 0 : i32
    %c0_i32_2 = arith.constant 0 : i32
    return %c0_i32, %c0_i32_0, %c0_i32_1 : i32, i32, i32
  }
  func.func @transform_6(%arg0: i32) -> (i32, i32) {
    %c0_i32 = arith.constant 0 : i32
    %c0_i32_0 = arith.constant 0 : i32
    %c0_i32_1 = arith.constant 0 : i32
    return %c0_i32, %c0_i32_0 : i32, i32
  }
  func.func @transform_7(%arg0: i32) -> (i32, i32, i32) {
    %c0_i32 = arith.constant 0 : i32
    %c0_i32_0 = arith.constant 0 : i32
    %c0_i32_1 = arith.constant 0 : i32
    %c0_i32_2 = arith.constant 0 : i32
    return %c0_i32, %c0_i32_0, %c0_i32_1 : i32, i32, i32
  }
  func.func @transform_8(%arg0: i32) -> (i32, i32) {
    %c0_i32 = arith.constant 0 : i32
    %c0_i32_0 = arith.constant 0 : i32
    %c0_i32_1 = arith.constant 0 : i32
    return %c0_i32, %c0_i32_0 : i32, i32
  }
  func.func @transform_9(%arg0: i32) -> (i32, i32) {
    %c0_i32 = arith.constant 0 : i32
    %c0_i32_0 = arith.constant 0 : i32
    %c0_i32_1 = arith.constant 0 : i32
    return %c0_i32, %c0_i32_0 : i32, i32
  }
  func.func @transform_10(%arg0: i32) -> (i32, i32) {
    %c0_i32 = arith.constant 0 : i32
    %c0_i32_0 = arith.constant 0 : i32
    %c0_i32_1 = arith.constant 0 : i32
    return %c0_i32, %c0_i32_0 : i32, i32
  }
  func.func @transform_11(%arg0: i32) -> (i32, i32, i32) {
    %c0_i32 = arith.constant 0 : i32
    %c0_i32_0 = arith.constant 0 : i32
    %c0_i32_1 = arith.constant 0 : i32
    return %arg0, %c0_i32, %c0_i32_0 : i32, i32, i32
  }
}

</mosaic_0001>

<llo_original>
// kernel: squeeze.62
$region0: #{squeeze.62}
  %s0 = inlined_call_operand.vmem [shape: f32[2,1,16,16], index: 0, kind: input, shape index: {}]
  %s1 = inlined_call_operand.vmem [shape: f32[2,1,256], index: 1, kind: output, shape index: {}]
  $region1: #{squeeze.62} parent=0
    #allocation0 [shape = 'u8[16384]{0}', space=vmem, size = 0x4000, scoped, tag = 'scoped mem for output reshape']
    %v2 = vld [vmem:[%s0] ss:$8 sm:$0xf]
    %vm3 = vcmask 130048
    %4 = vst.msk [vmem:[#allocation0] ss:$8 sm:$0xf] %vm3, %v2
    %s5 = scalar_lea.vmem %s0, 7
    %v6 = vld [vmem:[%s5] ss:$8 sm:$0xf]
    %7 = vrot.lane.b32.xlu0 %v6, 112
    %v8 = vpop.permute.xlu0 %7
    %vm9 = vcmask 1048448
    %10 = vst.msk [vmem:[#allocation0] ss:$8 sm:$0xf] %vm9, %v8
    %s11 = scalar_lea.vmem %s0, 6
    %v12 = vld [vmem:[%s11] ss:$8 sm:$0xf]
    %13 = vrot.lane.b32.xlu0 %v12, 96
    %v14 = vpop.permute.xlu0 %13
    %vm15 = vcmask 917248
    %16 = vst.msk [vmem:[#allocation0] ss:$8 sm:$0xf] %vm15, %v14
    %s17 = scalar_lea.vmem %s0, 5
    %v18 = vld [vmem:[%s17] ss:$8 sm:$0xf]
    %19 = vrot.lane.b32.xlu0 %v18, 80
    %v20 = vpop.permute.xlu0 %19
    %vm21 = vcmask 786048
    %22 = vst.msk [vmem:[#allocation0] ss:$8 sm:$0xf] %vm21, %v20
    %s23 = scalar_lea.vmem %s0, 4
    %v24 = vld [vmem:[%s23] ss:$8 sm:$0xf]
    %25 = vrot.lane.b32.xlu0 %v24, 64
    %v26 = vpop.permute.xlu0 %25
    %vm27 = vcmask 654848
    %28 = vst.msk [vmem:[#allocation0] ss:$8 sm:$0xf] %vm27, %v26
    %s29 = scalar_lea.vmem %s0, 3
    %v30 = vld [vmem:[%s29] ss:$8 sm:$0xf]
    %31 = vrot.lane.b32.xlu0 %v30, 48
    %v32 = vpop.permute.xlu0 %31
    %vm33 = vcmask 523648
    %34 = vst.msk [vmem:[#allocation0] ss:$8 sm:$0xf] %vm33, %v32
    %s35 = scalar_lea.vmem %s0, 2
    %v36 = vld [vmem:[%s35] ss:$8 sm:$0xf]
    %37 = vrot.lane.b32.xlu0 %v36, 32
    %v38 = vpop.permute.xlu0 %37
    %vm39 = vcmask 392448
    %40 = vst.msk [vmem:[#allocation0] ss:$8 sm:$0xf] %vm39, %v38
    %s41 = scalar_lea.vmem %s0, 1
    %v42 = vld [vmem:[%s41] ss:$8 sm:$0xf]
    %43 = vrot.lane.b32.xlu0 %v42, 16
    %v44 = vpop.permute.xlu0 %43
    %vm45 = vcmask 261248
    %46 = vst.msk [vmem:[#allocation0] ss:$8 sm:$0xf] %vm45, %v44
    %s48 = sshllo.u32 0, 1
    %v50 = vld [vmem:[#allocation0] sm:%s48]
    %s51 = sshllo.u32 0, 1
    %52 = vst [vmem:[%s1] sm:%s51] %v50
    %s53 = scalar_lea.vmem [#allocation0], 8
    %v54 = vld [vmem:[%s53] sm:%s48]
    %s55 = sshllo.u32 0, 1
    %s56 = scalar_lea.vmem %s1, 1
    %57 = vst [vmem:[%s56] sm:%s55] %v54
    %s58 = scalar_lea.vmem [#allocation0], 16
    %v59 = vld [vmem:[%s58] sm:%s48]
    %s60 = sshllo.u32 0, 1
    %s61 = smul.addr 1, 2
    %s62 = scalar_lea.vmem %s1, %s61
    %63 = vst [vmem:[%s62] sm:%s60] %v59
    %s64 = scalar_lea.vmem [#allocation0], 24
    %v65 = vld [vmem:[%s64] sm:%s48]
    %s66 = sshllo.u32 0, 1
    %s67 = smul.addr 1, 3
    %s68 = scalar_lea.vmem %s1, %s67
    %69 = vst [vmem:[%s68] sm:%s66] %v65

// kernel: clsnet_forward.1
$region0: #{clsnet_forward.1}
  #allocation0 [shape = 'u32[]', space=smem, size = 0x4, offset = 0x4, fixed_abs, tag = 'smem constant byte address 0x4 - core index']
  #allocation1 [shape = 'u32[144,128]{1,0:T(1,128)}', space=vmem, size = 0x12000, scoped, tag = 'internal scratch']
  %s0 = inlined_call_operand.vmem [shape: f32[2,64,256], index: 0, kind: input, shape index: {}]
  %s1 = inlined_call_operand.vmem [shape: f32[20,64], index: 1, kind: input, shape index: {}]
  %s2 = inlined_call_operand.vmem [shape: f32[20,1], index: 2, kind: input, shape index: {}]
  %s3 = inlined_call_operand.vmem [shape: f32[256,256], index: 3, kind: input, shape index: {}]
  %s4 = inlined_call_operand.vmem [shape: f32[64,400], index: 4, kind: input, shape index: {}]
  %s5 = inlined_call_operand.vmem [shape: f32[25,20,20], index: 5, kind: input, shape index: {}]
  %s6 = inlined_call_operand.vmem [shape: f32[20,1], index: 6, kind: input, shape index: {}]
  %s7 = inlined_call_operand.vmem [shape: f32[20,16,32], index: 7, kind: input, shape index: {}]
  %s8 = inlined_call_operand.vmem [shape: f32[1,32], index: 8, kind: input, shape index: {}]
  %s9 = inlined_call_operand.vmem [shape: f32[32,10], index: 9, kind: input, shape index: {}]
  %s10 = inlined_call_operand.vmem [shape: f32[1,10], index: 10, kind: input, shape index: {}]
  %s11 = inlined_call_operand.hbm [shape: f32[2,1,10], index: 11, kind: output, shape index: {}]
  %s12 = sld [smem:[#allocation0]]
  $region77: #{clsnet_forward.1} parent=0
    _
  %s14 = ssub.s32 1, %s12
  %s15 = scalar_select 0, %s14, %s12
  $region1: #{clsnet_forward.1} parent=0
    #allocation2 [shape = 'u8[1024]{0}', space=vmem, size = 0x400, scoped, tag = 'output window, operand 0']
    #allocation3 [shape = 's32[2]{0}', space=sflag, size = 0x8, scoped, tag = 'scoped memory for clsnet_forward.1']
    %16 = vsyncpa [#allocation3], 0
    %s17 = scalar_lea.sflag [#allocation3], 1
    %18 = vsyncpa %s17, 0
    loop: start=0, step=1, limit=4
    $region2: #{clsnet_forward.1} parent=1 // loop_pre_header
      _
    $region3: #{clsnet_forward.1} parent=1 // loop_header
      %s20 = sphi 0, %s24
      %p21 = scmp.ge.s32.totalorder %s20, 4
      %s30 = sphi 0, %s32
      %s33 = sphi 0, %s30
      %s34 = sphi 0, %s33
      %s50 = sphi 0, %s34
      %s54 = sphi 0, %s54
      %s56 = sphi 0, %s54
      %s57 = sphi 0, %s56
      %s71 = sphi 0, %s57
      %s75 = sphi 0, %s75
      %s77 = sphi 0, %s75
      %s78 = sphi 0, %s77
      %s92 = sphi 0, %s78
      %s96 = sphi 0, %s96
      %s98 = sphi 0, %s96
      %s99 = sphi 0, %s98
      %s113 = sphi 0, %s99
      %s117 = sphi 0, %s117
      %s119 = sphi 0, %s117
      %s120 = sphi 0, %s119
      %s134 = sphi 0, %s120
      %s138 = sphi 0, %s138
      %s140 = sphi 0, %s138
      %s141 = sphi 0, %s140
      %s155 = sphi 0, %s141
      %s159 = sphi 0, %s159
      %s161 = sphi 0, %s159
      %s162 = sphi 0, %s161
      %s176 = sphi 0, %s162
      %s180 = sphi 0, %s180
      %s182 = sphi 0, %s180
      %s183 = sphi 0, %s182
      %s197 = sphi 0, %s183
      %s201 = sphi 0, %s201
      %s203 = sphi 0, %s201
      %s204 = sphi 0, %s203
      %s218 = sphi 0, %s204
      %s222 = sphi 0, %s222
      %s224 = sphi 0, %s222
      %s225 = sphi 0, %s224
      %s239 = sphi 0, %s225
      %s243 = sphi 0, %s243
      %s245 = sphi 0, %s243
      %s246 = sphi 0, %s245
      %s260 = sphi 0, %s246
      %s266 = sphi 0, %s268
      %s269 = sphi 0, %s266
      %s270 = sphi 0, %s269
      %s286 = sphi 0, %s270
    $region4: #{clsnet_forward.1} parent=1 // loop_header_branch
      %23 = sbr.rel (%p21) target = $region8
    $region5: #{clsnet_forward.1} parent=1 // loop_body
      %s25 = ssub.s32 %s20, 1
      %s26 = ssub.s32 %s20, 2
      %s27 = sadd.s32 %s20, 1
      %s28 = ssub.s32 %s20, %s27
      %p29 = scmp.eq.s32.totalorder %s28, 0
      %s31 = sadd.s32 %s30, 1
      %s32 = scalar_select %p29, %s30, %s31
      %p35 = pneg %p29
      %p36 = scmp.eq.s32.totalorder %s20, 1
      %p37 = por %p35, %p36
      %p38 = scmp.ne.s32.totalorder %s30, %s33
      %p39 = scmp.eq.s32.totalorder %s20, 0
      %p40 = por %p38, %p39
      %p41 = scmp.ne.s32.totalorder %s30, %s33
      %p42 = scmp.eq.s32.totalorder %s25, 1
      %p43 = por %p41, %p42
      %p44 = scmp.ne.s32.totalorder %s33, %s34
      %p45 = scmp.eq.s32.totalorder %s25, 0
      %p46 = por %p44, %p45
      %p47 = scmp.ne.s32.totalorder %s33, %s34
      %p48 = scmp.eq.s32.totalorder %s26, 1
      %p49 = por %p47, %p48
      %p51 = scmp.ne.s32.totalorder %s34, %s50
      %p52 = scmp.eq.s32.totalorder %s26, 0
      %p53 = por %p51, %p52
      %s55 = sadd.s32 %s54, 1
      %p58 = scmp.eq.s32.totalorder %s20, 1
      %p59 = scmp.ne.s32.totalorder %s54, %s56
      %p60 = scmp.eq.s32.totalorder %s20, 0
      %p61 = por %p59, %p60
      %p62 = scmp.ne.s32.totalorder %s54, %s56
      %p63 = scmp.eq.s32.totalorder %s25, 1
      %p64 = por %p62, %p63
      %p65 = scmp.ne.s32.totalorder %s56, %s57
      %p66 = scmp.eq.s32.totalorder %s25, 0
      %p67 = por %p65, %p66
      %p68 = scmp.ne.s32.totalorder %s56, %s57
      %p69 = scmp.eq.s32.totalorder %s26, 1
      %p70 = por %p68, %p69
      %p72 = scmp.ne.s32.totalorder %s57, %s71
      %p73 = scmp.eq.s32.totalorder %s26, 0
      %p74 = por %p72, %p73
      %s76 = sadd.s32 %s75, 1
      %p79 = scmp.eq.s32.totalorder %s20, 1
      %p80 = scmp.ne.s32.totalorder %s75, %s77
      %p81 = scmp.eq.s32.totalorder %s20, 0
      %p82 = por %p80, %p81
      %p83 = scmp.ne.s32.totalorder %s75, %s77
      %p84 = scmp.eq.s32.totalorder %s25, 1
      %p85 = por %p83, %p84
      %p86 = scmp.ne.s32.totalorder %s77, %s78
      %p87 = scmp.eq.s32.totalorder %s25, 0
      %p88 = por %p86, %p87
      %p89 = scmp.ne.s32.totalorder %s77, %s78
      %p90 = scmp.eq.s32.totalorder %s26, 1
      %p91 = por %p89, %p90
      %p93 = scmp.ne.s32.totalorder %s78, %s92
      %p94 = scmp.eq.s32.totalorder %s26, 0
      %p95 = por %p93, %p94
      %s97 = sadd.s32 %s96, 1
      %p100 = scmp.eq.s32.totalorder %s20, 1
      %p101 = scmp.ne.s32.totalorder %s96, %s98
      %p102 = scmp.eq.s32.totalorder %s20, 0
      %p103 = por %p101, %p102
      %p104 = scmp.ne.s32.totalorder %s96, %s98
      %p105 = scmp.eq.s32.totalorder %s25, 1
      %p106 = por %p104, %p105
      %p107 = scmp.ne.s32.totalorder %s98, %s99
      %p108 = scmp.eq.s32.totalorder %s25, 0
      %p109 = por %p107, %p108
      %p110 = scmp.ne.s32.totalorder %s98, %s99
      %p111 = scmp.eq.s32.totalorder %s26, 1
      %p112 = por %p110, %p111
      %p114 = scmp.ne.s32.totalorder %s99, %s113
      %p115 = scmp.eq.s32.totalorder %s26, 0
      %p116 = por %p114, %p115
      %s118 = sadd.s32 %s117, 1
      %p121 = scmp.eq.s32.totalorder %s20, 1
      %p122 = scmp.ne.s32.totalorder %s117, %s119
      %p123 = scmp.eq.s32.totalorder %s20, 0
      %p124 = por %p122, %p123
      %p125 = scmp.ne.s32.totalorder %s117, %s119
      %p126 = scmp.eq.s32.totalorder %s25, 1
      %p127 = por %p125, %p126
      %p128 = scmp.ne.s32.totalorder %s119, %s120
      %p129 = scmp.eq.s32.totalorder %s25, 0
      %p130 = por %p128, %p129
      %p131 = scmp.ne.s32.totalorder %s119, %s120
      %p132 = scmp.eq.s32.totalorder %s26, 1
      %p133 = por %p131, %p132
      %p135 = scmp.ne.s32.totalorder %s120, %s134
      %p136 = scmp.eq.s32.totalorder %s26, 0
      %p137 = por %p135, %p136
      %s139 = sadd.s32 %s138, 1
      %p142 = scmp.eq.s32.totalorder %s20, 1
      %p143 = scmp.ne.s32.totalorder %s138, %s140
      %p144 = scmp.eq.s32.totalorder %s20, 0
      %p145 = por %p143, %p144
      %p146 = scmp.ne.s32.totalorder %s138, %s140
      %p147 = scmp.eq.s32.totalorder %s25, 1
      %p148 = por %p146, %p147
      %p149 = scmp.ne.s32.totalorder %s140, %s141
      %p150 = scmp.eq.s32.totalorder %s25, 0
      %p151 = por %p149, %p150
      %p152 = scmp.ne.s32.totalorder %s140, %s141
      %p153 = scmp.eq.s32.totalorder %s26, 1
      %p154 = por %p152, %p153
      %p156 = scmp.ne.s32.totalorder %s141, %s155
      %p157 = scmp.eq.s32.totalorder %s26, 0
      %p158 = por %p156, %p157
      %s160 = sadd.s32 %s159, 1
      %p163 = scmp.eq.s32.totalorder %s20, 1
      %p164 = scmp.ne.s32.totalorder %s159, %s161
      %p165 = scmp.eq.s32.totalorder %s20, 0
      %p166 = por %p164, %p165
      %p167 = scmp.ne.s32.totalorder %s159, %s161
      %p168 = scmp.eq.s32.totalorder %s25, 1
      %p169 = por %p167, %p168
      %p170 = scmp.ne.s32.totalorder %s161, %s162
      %p171 = scmp.eq.s32.totalorder %s25, 0
      %p172 = por %p170, %p171
      %p173 = scmp.ne.s32.totalorder %s161, %s162
      %p174 = scmp.eq.s32.totalorder %s26, 1
      %p175 = por %p173, %p174
      %p177 = scmp.ne.s32.totalorder %s162, %s176
      %p178 = scmp.eq.s32.totalorder %s26, 0
      %p179 = por %p177, %p178
      %s181 = sadd.s32 %s180, 1
      %p184 = scmp.eq.s32.totalorder %s20, 1
      %p185 = scmp.ne.s32.totalorder %s180, %s182
      %p186 = scmp.eq.s32.totalorder %s20, 0
      %p187 = por %p185, %p186
      %p188 = scmp.ne.s32.totalorder %s180, %s182
      %p189 = scmp.eq.s32.totalorder %s25, 1
      %p190 = por %p188, %p189
      %p191 = scmp.ne.s32.totalorder %s182, %s183
      %p192 = scmp.eq.s32.totalorder %s25, 0
      %p193 = por %p191, %p192
      %p194 = scmp.ne.s32.totalorder %s182, %s183
      %p195 = scmp.eq.s32.totalorder %s26, 1
      %p196 = por %p194, %p195
      %p198 = scmp.ne.s32.totalorder %s183, %s197
      %p199 = scmp.eq.s32.totalorder %s26, 0
      %p200 = por %p198, %p199
      %s202 = sadd.s32 %s201, 1
      %p205 = scmp.eq.s32.totalorder %s20, 1
      %p206 = scmp.ne.s32.totalorder %s201, %s203
      %p207 = scmp.eq.s32.totalorder %s20, 0
      %p208 = por %p206, %p207
      %p209 = scmp.ne.s32.totalorder %s201, %s203
      %p210 = scmp.eq.s32.totalorder %s25, 1
      %p211 = por %p209, %p210
      %p212 = scmp.ne.s32.totalorder %s203, %s204
      %p213 = scmp.eq.s32.totalorder %s25, 0
      %p214 = por %p212, %p213
      %p215 = scmp.ne.s32.totalorder %s203, %s204
      %p216 = scmp.eq.s32.totalorder %s26, 1
      %p217 = por %p215, %p216
      %p219 = scmp.ne.s32.totalorder %s204, %s218
      %p220 = scmp.eq.s32.totalorder %s26, 0
      %p221 = por %p219, %p220
      %s223 = sadd.s32 %s222, 1
      %p226 = scmp.eq.s32.totalorder %s20, 1
      %p227 = scmp.ne.s32.totalorder %s222, %s224
      %p228 = scmp.eq.s32.totalorder %s20, 0
      %p229 = por %p227, %p228
      %p230 = scmp.ne.s32.totalorder %s222, %s224
      %p231 = scmp.eq.s32.totalorder %s25, 1
      %p232 = por %p230, %p231
      %p233 = scmp.ne.s32.totalorder %s224, %s225
      %p234 = scmp.eq.s32.totalorder %s25, 0
      %p235 = por %p233, %p234
      %p236 = scmp.ne.s32.totalorder %s224, %s225
      %p237 = scmp.eq.s32.totalorder %s26, 1
      %p238 = por %p236, %p237
      %p240 = scmp.ne.s32.totalorder %s225, %s239
      %p241 = scmp.eq.s32.totalorder %s26, 0
      %p242 = por %p240, %p241
      %s244 = sadd.s32 %s243, 1
      %p247 = scmp.eq.s32.totalorder %s20, 1
      %p248 = scmp.ne.s32.totalorder %s243, %s245
      %p249 = scmp.eq.s32.totalorder %s20, 0
      %p250 = por %p248, %p249
      %p251 = scmp.ne.s32.totalorder %s243, %s245
      %p252 = scmp.eq.s32.totalorder %s25, 1
      %p253 = por %p251, %p252
      %p254 = scmp.ne.s32.totalorder %s245, %s246
      %p255 = scmp.eq.s32.totalorder %s25, 0
      %p256 = por %p254, %p255
      %p257 = scmp.ne.s32.totalorder %s245, %s246
      %p258 = scmp.eq.s32.totalorder %s26, 1
      %p259 = por %p257, %p258
      %p261 = scmp.ne.s32.totalorder %s246, %s260
      %p262 = scmp.eq.s32.totalorder %s26, 0
      %p263 = por %p261, %p262
      %s264 = ssub.s32 %s20, %s27
      %p265 = scmp.eq.s32.totalorder %s264, 0
      %s267 = sadd.s32 %s266, 1
      %s268 = scalar_select %p265, %s266, %s267
      %p271 = pneg %p265
      %p272 = scmp.eq.s32.totalorder %s20, 1
      %p273 = por %p271, %p272
      %p274 = scmp.ne.s32.totalorder %s266, %s269
      %p275 = scmp.eq.s32.totalorder %s20, 0
      %p276 = por %p274, %p275
      %p277 = scmp.ne.s32.totalorder %s266, %s269
      %p278 = scmp.eq.s32.totalorder %s25, 1
      %p279 = por %p277, %p278
      %p280 = scmp.ne.s32.totalorder %s269, %s270
      %p281 = scmp.eq.s32.totalorder %s25, 0
      %p282 = por %p280, %p281
      %p283 = scmp.ne.s32.totalorder %s269, %s270
      %p284 = scmp.eq.s32.totalorder %s26, 1
      %p285 = por %p283, %p284
      %p287 = scmp.ne.s32.totalorder %s270, %s286
      %p288 = scmp.eq.s32.totalorder %s26, 0
      %p289 = por %p287, %p288
      %p290 = scmp.le.s32.totalorder 1, %s20
      %p291 = scmp.lt.s32.totalorder %s20, 3
      %p292 = pnand %p290, %p291
      %p293 = pneg %p292
      // Predicated region
      $region9: #{clsnet_forward.1} parent=5 // pred_check
        _
      $region10: #{clsnet_forward.1} parent=5 // pred_check_branch
        %295 = sbr.rel (%p292) target = $region12
      $region11: #{clsnet_forward.1} parent=5 // pred_region
        %s296 = ssub.s32 %s20, 1
        // Predicated region
        $region13: #{clsnet_forward.1} parent=11 // pred_check
          %p297 = pneg %p67
        $region14: #{clsnet_forward.1} parent=11 // pred_check_branch
          %299 = sbr.rel (%p297) target = $region16
        $region15: #{clsnet_forward.1} parent=11 // pred_region
          _
        $region16: #{clsnet_forward.1} parent=11 // pred_fallthru
          _
        // Predicated region
        $region17: #{clsnet_forward.1} parent=11 // pred_check
          %p300 = pneg %p88
        $region18: #{clsnet_forward.1} parent=11 // pred_check_branch
          %302 = sbr.rel (%p300) target = $region20
        $region19: #{clsnet_forward.1} parent=11 // pred_region
          _
        $region20: #{clsnet_forward.1} parent=11 // pred_fallthru
          _
        // Predicated region
        $region21: #{clsnet_forward.1} parent=11 // pred_check
          %p303 = pneg %p109
        $region22: #{clsnet_forward.1} parent=11 // pred_check_branch
          %305 = sbr.rel (%p303) target = $region24
        $region23: #{clsnet_forward.1} parent=11 // pred_region
          _
        $region24: #{clsnet_forward.1} parent=11 // pred_fallthru
          _
        // Predicated region
        $region25: #{clsnet_forward.1} parent=11 // pred_check
          %p306 = pneg %p130
        $region26: #{clsnet_forward.1} parent=11 // pred_check_branch
          %308 = sbr.rel (%p306) target = $region28
        $region27: #{clsnet_forward.1} parent=11 // pred_region
          _
        $region28: #{clsnet_forward.1} parent=11 // pred_fallthru
          _
        // Predicated region
        $region29: #{clsnet_forward.1} parent=11 // pred_check
          %p309 = pneg %p151
        $region30: #{clsnet_forward.1} parent=11 // pred_check_branch
          %311 = sbr.rel (%p309) target = $region32
        $region31: #{clsnet_forward.1} parent=11 // pred_region
          _
        $region32: #{clsnet_forward.1} parent=11 // pred_fallthru
          _
        // Predicated region
        $region33: #{clsnet_forward.1} parent=11 // pred_check
          %p312 = pneg %p172
        $region34: #{clsnet_forward.1} parent=11 // pred_check_branch
          %314 = sbr.rel (%p312) target = $region36
        $region35: #{clsnet_forward.1} parent=11 // pred_region
          _
        $region36: #{clsnet_forward.1} parent=11 // pred_fallthru
          _
        // Predicated region
        $region37: #{clsnet_forward.1} parent=11 // pred_check
          %p315 = pneg %p193
        $region38: #{clsnet_forward.1} parent=11 // pred_check_branch
          %317 = sbr.rel (%p315) target = $region40
        $region39: #{clsnet_forward.1} parent=11 // pred_region
          _
        $region40: #{clsnet_forward.1} parent=11 // pred_fallthru
          _
        // Predicated region
        $region41: #{clsnet_forward.1} parent=11 // pred_check
          %p318 = pneg %p214
        $region42: #{clsnet_forward.1} parent=11 // pred_check_branch
          %320 = sbr.rel (%p318) target = $region44
        $region43: #{clsnet_forward.1} parent=11 // pred_region
          _
        $region44: #{clsnet_forward.1} parent=11 // pred_fallthru
          _
        // Predicated region
        $region45: #{clsnet_forward.1} parent=11 // pred_check
          %p321 = pneg %p235
        $region46: #{clsnet_forward.1} parent=11 // pred_check_branch
          %323 = sbr.rel (%p321) target = $region48
        $region47: #{clsnet_forward.1} parent=11 // pred_region
          _
        $region48: #{clsnet_forward.1} parent=11 // pred_fallthru
          _
        // Predicated region
        $region49: #{clsnet_forward.1} parent=11 // pred_check
          %p324 = pneg %p256
        $region50: #{clsnet_forward.1} parent=11 // pred_check_branch
          %326 = sbr.rel (%p324) target = $region52
        $region51: #{clsnet_forward.1} parent=11 // pred_region
          _
        $region52: #{clsnet_forward.1} parent=11 // pred_fallthru
          _
      $region12: #{clsnet_forward.1} parent=5 // pred_fallthru
        _
      %p327 = scmp.lt.s32.totalorder %s20, 2
      // Predicated region
      $region53: #{clsnet_forward.1} parent=5 // pred_check
        %p328 = pneg %p327
      $region54: #{clsnet_forward.1} parent=5 // pred_check_branch
        %330 = sbr.rel (%p328) target = $region56
      $region55: #{clsnet_forward.1} parent=5 // pred_region
        // Predicated region
        $region57: #{clsnet_forward.1} parent=55 // pred_check
          %p331 = pneg %p40
        $region58: #{clsnet_forward.1} parent=55 // pred_check_branch
          %333 = sbr.rel (%p331) target = $region60
        $region59: #{clsnet_forward.1} parent=55 // pred_region
          %p334 = scmp.lt.s32.totalorder %s20, 1
          %s335 = scalar_select %p334, %s20, 1
          %s336 = smul.addr %s335, 16
          %s337 = smul.addr %s336, 8
          %s338 = scalar_lea.vmem %s0, %s337
        $region60: #{clsnet_forward.1} parent=55 // pred_fallthru
          _
      $region56: #{clsnet_forward.1} parent=5 // pred_fallthru
        _
      %p339 = scmp.le.s32.totalorder 1, %s20
      %p340 = scmp.lt.s32.totalorder %s20, 3
      %p341 = pnand %p339, %p340
      %p342 = pneg %p341
      // Predicated region
      $region61: #{clsnet_forward.1} parent=5 // pred_check
        _
      $region62: #{clsnet_forward.1} parent=5 // pred_check_branch
        %344 = sbr.rel (%p341) target = $region64
      $region63: #{clsnet_forward.1} parent=5 // pred_region
        %s345 = ssub.s32 %s20, 1
        %p346 = scmp.lt.s32.totalorder %s25, 1
        %s347 = scalar_select %p346, %s25, 1
        %s348 = smul.addr %s347, 16
        %s349 = smul.addr %s348, 8
        %s350 = scalar_lea.vmem %s0, %s349
        %p351 = pneg %p46
        %p352 = pneg %p43
        %p353 = pneg %p67
        %p354 = pneg %p64
        %p355 = pneg %p88
        %p356 = pneg %p85
        %p357 = pneg %p109
        %p358 = pneg %p106
        %p359 = pneg %p130
        %p360 = pneg %p127
        %p361 = pneg %p151
        %p362 = pneg %p148
        %p363 = pneg %p172
        %p364 = pneg %p169
        %p365 = pneg %p193
        %p366 = pneg %p190
        %p367 = pneg %p214
        %p368 = pneg %p211
        %p369 = pneg %p235
        %p370 = pneg %p232
        %p371 = pneg %p256
        %p372 = pneg %p253
        %p373 = pneg %p282
        %p374 = pneg %p279
        %s375 = sand.u32 %s269, 1
        %s376 = scalar_lea.sflag [#allocation3], %s375
        %s377 = sand.u32 %s269, 1
        %s378 = scalar_lea.vmem [#allocation2], %s377
        %p379 = scmp.lt.s32.totalorder %s25, 1
        %s380 = scalar_select %p379, %s25, 1
        %s381 = smul.addr %s380, 16
        %s382 = smul.addr %s381, 8
        %s383 = scalar_lea.vmem %s0, %s382
        %v384 = vld [vmem:[%s383] sm:$0xff]
        %v385 = vld [vmem:[%s383 + $0x8] sm:$0xff]
        %v386 = vld [vmem:[%s383 + $0x10] sm:$0xff]
        %v387 = vld [vmem:[%s383 + $0x18] sm:$0xff]
        %v388 = vld [vmem:[%s383 + $0x20] sm:$0xff]
        %v389 = vld [vmem:[%s383 + $0x28] sm:$0xff]
        %v390 = vld [vmem:[%s383 + $0x30] sm:$0xff]
        %v391 = vld [vmem:[%s383 + $0x38] sm:$0xff]
        %v392 = vld [vmem:[%s383 + $0x40] sm:$0xff]
        %v393 = vld [vmem:[%s383 + $0x48] sm:$0xff]
        %v394 = vld [vmem:[%s383 + $0x50] sm:$0xff]
        %v395 = vld [vmem:[%s383 + $0x58] sm:$0xff]
        %v396 = vld [vmem:[%s383 + $0x60] sm:$0xff]
        %v397 = vld [vmem:[%s383 + $0x68] sm:$0xff]
        %v398 = vld [vmem:[%s383 + $0x70] sm:$0xff]
        %v399 = vld [vmem:[%s383 + $0x78] sm:$0xff]
        %v400 = vld [vmem:[%s1] sm:$0xff]
        %v401 = vld [vmem:[%s1 + $0x8] sm:$0xff]
        %v402 = vld [vmem:[%s1 + $0x10] sm:$0xf]
        %v403 = vld [vmem:[%s2] sm:$0xff]
        %v404 = vld [vmem:[%s2 + $0x8] sm:$0xff]
        %v405 = vld [vmem:[%s2 + $0x10] sm:$0xf]
        %407 = vset.pattern.permute.xlu0 0
        %408 = vperm.xlu0 %407, %v403
        %v409 = vpop.permute.xlu0 %408
        %412 = vset.pattern.permute.xlu0 0
        %413 = vperm.xlu0 %412, %v404
        %v414 = vpop.permute.xlu0 %413
        %417 = vset.pattern.permute.xlu0 0
        %418 = vperm.xlu0 %417, %v405
        %v419 = vpop.permute.xlu0 %418
        %vm421 = vcmask 523264
        %v423 = vsel %vm421, %v400, 0
        %v426 = vsel %vm421, %v401, 0
        %v429 = vsel %vm421, %v402, 0
        %431 = vmatprep.subr.mxu0 %v385
        %432 = vmatpush1.msra.mxu0 %v384
        %433 = vmatprep.subr.mxu0 %v387
        %434 = vmatpush1.msra.mxu0 %v386
        %435 = vmatprep.subr.mxu0 %v389
        %436 = vmatpush1.msra.mxu0 %v388
        %437 = vmatprep.subr.mxu0 %v391
        %438 = vmatpush1.msra.mxu0 %v390
        %439 = vmatprep.subr.mxu0 %v393
        %440 = vmatpush1.msra.mxu0 %v392
        %441 = vmatprep.subr.mxu0 %v395
        %442 = vmatpush1.msra.mxu0 %v394
        %443 = vmatprep.subr.mxu0 %v397
        %444 = vmatpush1.msra.mxu0 %v396
        %445 = vmatprep.subr.mxu0 %v399
        %446 = vmatpush1.msra.mxu0 %v398
        %447 = vmatprep.subr.mxu0 0.0
        %448 = vmatpush1.msra.mxu0 0.0
        %449 = vmatprep.subr.mxu0 0.0
        %450 = vmatpush1.msra.mxu0 0.0
        %451 = vmatprep.subr.mxu0 0.0
        %452 = vmatpush1.msra.mxu0 0.0
        %453 = vmatprep.subr.mxu0 0.0
        %454 = vmatpush1.msra.mxu0 0.0
        %455 = vmatprep.subr.mxu0 0.0
        %456 = vmatpush1.msra.mxu0 0.0
        %457 = vmatprep.subr.mxu0 0.0
        %458 = vmatpush1.msra.mxu0 0.0
        %459 = vmatprep.subr.mxu0 0.0
        %460 = vmatpush1.msra.mxu0 0.0
        %461 = vmatprep.subr.mxu0 0.0
        %462 = vmatpush1.msra.mxu0 0.0
        %463 = vmatprep.subr.mxu0 0.0
        %464 = vmatpush1.msra.mxu0 0.0
        %465 = vmatprep.subr.mxu0 0.0
        %466 = vmatpush1.msra.mxu0 0.0
        %467 = vmatprep.subr.mxu0 0.0
        %468 = vmatpush1.msra.mxu0 0.0
        %469 = vmatprep.subr.mxu0 0.0
        %470 = vmatpush1.msra.mxu0 0.0
        %471 = vmatprep.subr.mxu0 0.0
        %472 = vmatpush1.msra.mxu0 0.0
        %473 = vmatprep.subr.mxu0 0.0
        %474 = vmatpush1.msra.mxu0 0.0
        %475 = vmatprep.subr.mxu0 0.0
        %476 = vmatpush1.msra.mxu0 0.0
        %477 = vmatprep.subr.mxu0 0.0
        %478 = vmatpush1.msra.mxu0 0.0
        %479 = vmatprep.subr.mxu0 0.0
        %480 = vmatpush1.msra.mxu0 0.0
        %481 = vmatprep.subr.mxu0 0.0
        %482 = vmatpush1.msra.mxu0 0.0
        %483 = vmatprep.subr.mxu0 0.0
        %484 = vmatpush1.msra.mxu0 0.0
        %485 = vmatprep.subr.mxu0 0.0
        %486 = vmatpush1.msra.mxu0 0.0
        %487 = vmatprep.subr.mxu0 0.0
        %488 = vmatpush1.msra.mxu0 0.0
        %489 = vmatprep.subr.mxu0 0.0
        %490 = vmatpush1.msra.mxu0 0.0
        %491 = vmatprep.subr.mxu0 0.0
        %492 = vmatpush1.msra.mxu0 0.0
        %493 = vmatprep.subr.mxu0 0.0
        %494 = vmatpush1.msra.mxu0 0.0
        %495 = vmatprep.mubr.f32.mxu0 0.0
        %496 = vmatmul.mubr.f32.gmra.mrb[0].mxu0 %v423
        %v497 = vpop.f32.mrb[0].mxu0
        %v498 = vadd.f32 %v409, %v497
        %v499 = vpop.f32.mrb[0].mxu0
        %v500 = vadd.f32 %v409, %v499
        %501 = vmatprep.mubr.f32.mxu0 0.0
        %502 = vmatmul.mubr.f32.gmra.mrb[0].mxu0 %v426
        %v503 = vpop.f32.mrb[0].mxu0
        %v504 = vadd.f32 %v414, %v503
        %v505 = vpop.f32.mrb[0].mxu0
        %v506 = vadd.f32 %v414, %v505
        %507 = vmatprep.mubr.f32.mxu0 0.0
        %508 = vmatmul.mubr.f32.gmra.mrb[0].mxu0 %v429
        %v509 = vpop.f32.mrb[0].mxu0
        %v510 = vadd.f32 %v419, %v509
        %v511 = vpop.f32.mrb[0].mxu0
        %v512 = vadd.f32 %v419, %v511
        %513 = vdwg.mxu0
        %v514 = vmax.f32 %v498, 0.0
        %v515 = vmax.f32 %v500, 0.0
        %v516 = vmax.f32 %v504, 0.0
        %v517 = vmax.f32 %v506, 0.0
        %v518 = vmax.f32 %v510, 0.0
        %v519 = vmax.f32 %v512, 0.0
        %v520 = vld [vmem:[%s3] sm:$0xff]
        %v521 = vld [vmem:[%s3 + $0x8] sm:$0xff]
        %v522 = vld [vmem:[%s3 + $0x10] sm:$0xff]
        %v523 = vld [vmem:[%s3 + $0x18] sm:$0xff]
        %v524 = vld [vmem:[%s3 + $0x20] sm:$0xff]
        %v525 = vld [vmem:[%s3 + $0x28] sm:$0xff]
        %v526 = vld [vmem:[%s3 + $0x30] sm:$0xff]
        %v527 = vld [vmem:[%s3 + $0x38] sm:$0xff]
        %v528 = vld [vmem:[%s3 + $0x40] sm:$0xff]
        %v529 = vld [vmem:[%s3 + $0x48] sm:$0xff]
        %v530 = vld [vmem:[%s3 + $0x50] sm:$0xff]
        %v531 = vld [vmem:[%s3 + $0x58] sm:$0xff]
        %v532 = vld [vmem:[%s3 + $0x60] sm:$0xff]
        %v533 = vld [vmem:[%s3 + $0x68] sm:$0xff]
        %v534 = vld [vmem:[%s3 + $0x70] sm:$0xff]
        %v535 = vld [vmem:[%s3 + $0x78] sm:$0xff]
        %v536 = vld [vmem:[%s3 + $0x80] sm:$0xff]
        %v537 = vld [vmem:[%s3 + $0x88] sm:$0xff]
        %v538 = vld [vmem:[%s3 + $0x90] sm:$0xff]
        %v539 = vld [vmem:[%s3 + $0x98] sm:$0xff]
        %v540 = vld [vmem:[%s3 + $0xa0] sm:$0xff]
        %v541 = vld [vmem:[%s3 + $0xa8] sm:$0xff]
        %v542 = vld [vmem:[%s3 + $0xb0] sm:$0xff]
        %v543 = vld [vmem:[%s3 + $0xb8] sm:$0xff]
        %v544 = vld [vmem:[%s3 + $0xc0] sm:$0xff]
        %v545 = vld [vmem:[%s3 + $0xc8] sm:$0xff]
        %v546 = vld [vmem:[%s3 + $0xd0] sm:$0xff]
        %v547 = vld [vmem:[%s3 + $0xd8] sm:$0xff]
        %v548 = vld [vmem:[%s3 + $0xe0] sm:$0xff]
        %v549 = vld [vmem:[%s3 + $0xe8] sm:$0xff]
        %v550 = vld [vmem:[%s3 + $0xf0] sm:$0xff]
        %v551 = vld [vmem:[%s3 + $0xf8] sm:$0xff]
        %v552 = vld [vmem:[%s3 + $0x100] sm:$0xff]
        %v553 = vld [vmem:[%s3 + $0x108] sm:$0xff]
        %v554 = vld [vmem:[%s3 + $0x110] sm:$0xff]
        %v555 = vld [vmem:[%s3 + $0x118] sm:$0xff]
        %v556 = vld [vmem:[%s3 + $0x120] sm:$0xff]
        %v557 = vld [vmem:[%s3 + $0x128] sm:$0xff]
        %v558 = vld [vmem:[%s3 + $0x130] sm:$0xff]
        %v559 = vld [vmem:[%s3 + $0x138] sm:$0xff]
        %v560 = vld [vmem:[%s3 + $0x140] sm:$0xff]
        %v561 = vld [vmem:[%s3 + $0x148] sm:$0xff]
        %v562 = vld [vmem:[%s3 + $0x150] sm:$0xff]
        %v563 = vld [vmem:[%s3 + $0x158] sm:$0xff]
        %v564 = vld [vmem:[%s3 + $0x160] sm:$0xff]
        %v565 = vld [vmem:[%s3 + $0x168] sm:$0xff]
        %v566 = vld [vmem:[%s3 + $0x170] sm:$0xff]
        %v567 = vld [vmem:[%s3 + $0x178] sm:$0xff]
        %v568 = vld [vmem:[%s3 + $0x180] sm:$0xff]
        %v569 = vld [vmem:[%s3 + $0x188] sm:$0xff]
        %v570 = vld [vmem:[%s3 + $0x190] sm:$0xff]
        %v571 = vld [vmem:[%s3 + $0x198] sm:$0xff]
        %v572 = vld [vmem:[%s3 + $0x1a0] sm:$0xff]
        %v573 = vld [vmem:[%s3 + $0x1a8] sm:$0xff]
        %v574 = vld [vmem:[%s3 + $0x1b0] sm:$0xff]
        %v575 = vld [vmem:[%s3 + $0x1b8] sm:$0xff]
        %v576 = vld [vmem:[%s3 + $0x1c0] sm:$0xff]
        %v577 = vld [vmem:[%s3 + $0x1c8] sm:$0xff]
        %v578 = vld [vmem:[%s3 + $0x1d0] sm:$0xff]
        %v579 = vld [vmem:[%s3 + $0x1d8] sm:$0xff]
        %v580 = vld [vmem:[%s3 + $0x1e0] sm:$0xff]
        %v581 = vld [vmem:[%s3 + $0x1e8] sm:$0xff]
        %v582 = vld [vmem:[%s3 + $0x1f0] sm:$0xff]
        %v583 = vld [vmem:[%s3 + $0x1f8] sm:$0xff]
        %584 = vmatprep.subr.mxu0 %v521
        %585 = vmatpush1.msra.mxu0 %v520
        %586 = vmatprep.subr.mxu0 %v523
        %587 = vmatpush1.msra.mxu0 %v522
        %588 = vmatprep.subr.mxu0 %v525
        %589 = vmatpush1.msra.mxu0 %v524
        %590 = vmatprep.subr.mxu0 %v527
        %591 = vmatpush1.msra.mxu0 %v526
        %592 = vmatprep.subr.mxu0 %v529
        %593 = vmatpush1.msra.mxu0 %v528
        %594 = vmatprep.subr.mxu0 %v531
        %595 = vmatpush1.msra.mxu0 %v530
        %596 = vmatprep.subr.mxu0 %v533
        %597 = vmatpush1.msra.mxu0 %v532
        %598 = vmatprep.subr.mxu0 %v535
        %599 = vmatpush1.msra.mxu0 %v534
        %600 = vmatprep.subr.mxu0 %v537
        %601 = vmatpush1.msra.mxu0 %v536
        %602 = vmatprep.subr.mxu0 %v539
        %603 = vmatpush1.msra.mxu0 %v538
        %604 = vmatprep.subr.mxu0 %v541
        %605 = vmatpush1.msra.mxu0 %v540
        %606 = vmatprep.subr.mxu0 %v543
        %607 = vmatpush1.msra.mxu0 %v542
        %608 = vmatprep.subr.mxu0 %v545
        %609 = vmatpush1.msra.mxu0 %v544
        %610 = vmatprep.subr.mxu0 %v547
        %611 = vmatpush1.msra.mxu0 %v546
        %612 = vmatprep.subr.mxu0 %v549
        %613 = vmatpush1.msra.mxu0 %v548
        %614 = vmatprep.subr.mxu0 %v551
        %615 = vmatpush1.msra.mxu0 %v550
        %616 = vmatprep.subr.mxu0 %v553
        %617 = vmatpush1.msra.mxu0 %v552
        %618 = vmatprep.subr.mxu0 %v555
        %619 = vmatpush1.msra.mxu0 %v554
        %620 = vmatprep.subr.mxu0 %v557
        %621 = vmatpush1.msra.mxu0 %v556
        %622 = vmatprep.subr.mxu0 %v559
        %623 = vmatpush1.msra.mxu0 %v558
        %624 = vmatprep.subr.mxu0 %v561
        %625 = vmatpush1.msra.mxu0 %v560
        %626 = vmatprep.subr.mxu0 %v563
        %627 = vmatpush1.msra.mxu0 %v562
        %628 = vmatprep.subr.mxu0 %v565
        %629 = vmatpush1.msra.mxu0 %v564
        %630 = vmatprep.subr.mxu0 %v567
        %631 = vmatpush1.msra.mxu0 %v566
        %632 = vmatprep.subr.mxu0 %v569
        %633 = vmatpush1.msra.mxu0 %v568
        %634 = vmatprep.subr.mxu0 %v571
        %635 = vmatpush1.msra.mxu0 %v570
        %636 = vmatprep.subr.mxu0 %v573
        %637 = vmatpush1.msra.mxu0 %v572
        %638 = vmatprep.subr.mxu0 %v575
        %639 = vmatpush1.msra.mxu0 %v574
        %640 = vmatprep.subr.mxu0 %v577
        %641 = vmatpush1.msra.mxu0 %v576
        %642 = vmatprep.subr.mxu0 %v579
        %643 = vmatpush1.msra.mxu0 %v578
        %644 = vmatprep.subr.mxu0 %v581
        %645 = vmatpush1.msra.mxu0 %v580
        %646 = vmatprep.subr.mxu0 %v583
        %647 = vmatpush1.msra.mxu0 %v582
        %648 = vmatprep.mubr.f32.mxu0 %v515
        %649 = vmatmul.mubr.f32.gmra.mrb[0].mxu0 %v514
        %v650 = vpop.f32.mrb[0].mxu0
        %v651 = vadd.f32 0.0, %v650
        %v652 = vpop.f32.mrb[0].mxu0
        %v653 = vadd.f32 0.0, %v652
        %654 = vmatprep.mubr.f32.mxu0 %v517
        %655 = vmatmul.mubr.f32.gmra.mrb[0].mxu0 %v516
        %v656 = vpop.f32.mrb[0].mxu0
        %v657 = vadd.f32 0.0, %v656
        %v658 = vpop.f32.mrb[0].mxu0
        %v659 = vadd.f32 0.0, %v658
        %660 = vmatprep.mubr.f32.mxu0 %v519
        %661 = vmatmul.mubr.f32.gmra.mrb[0].mxu0 %v518
        %v662 = vpop.f32.mrb[0].mxu0
        %v663 = vadd.f32 0.0, %v662
        %v664 = vpop.f32.mrb[0].mxu0
        %v665 = vadd.f32 0.0, %v664
        %666 = vdwg.mxu0
        %670 = vrot.lane.b32.xlu0 %v651, 64
        %v671 = vpop.permute.xlu0 %670
        %672 = vrot.lane.b32.xlu0 %v657, 64
        %v673 = vpop.permute.xlu0 %672
        %674 = vrot.lane.b32.xlu0 %v663, 64
        %v675 = vpop.permute.xlu0 %674
        %v679 = vmax.f32 %v651, %v671
        %v680 = vmax.f32 %v657, %v673
        %v681 = vmax.f32 %v663, %v675
        %685 = vrot.lane.b32.xlu0 %v653, 64
        %v686 = vpop.permute.xlu0 %685
        %687 = vrot.lane.b32.xlu0 %v659, 64
        %v688 = vpop.permute.xlu0 %687
        %689 = vrot.lane.b32.xlu0 %v665, 64
        %v690 = vpop.permute.xlu0 %689
        %v694 = vmax.f32 %v653, %v686
        %v695 = vmax.f32 %v659, %v688
        %v696 = vmax.f32 %v665, %v690
        %v697 = vmax.f32 %v679, %v694
        %v698 = vmax.f32 %v680, %v695
        %v699 = vmax.f32 %v681, %v696
        %v700 = vld [vmem:[%s4] sm:$0xff]
        %v701 = vld [vmem:[%s4 + $0x8] sm:$0xff]
        %v702 = vld [vmem:[%s4 + $0x10] sm:$0xff]
        %v703 = vld [vmem:[%s4 + $0x18] sm:$0xff]
        %v704 = vld [vmem:[%s4 + $0x20] sm:$0xff]
        %v705 = vld [vmem:[%s4 + $0x28] sm:$0xff]
        %v706 = vld [vmem:[%s4 + $0x30] sm:$0xff]
        %v707 = vld [vmem:[%s4 + $0x38] sm:$0xff]
        %v708 = vld [vmem:[%s4 + $0x40] sm:$0xff]
        %v709 = vld [vmem:[%s4 + $0x48] sm:$0xff]
        %v710 = vld [vmem:[%s4 + $0x50] sm:$0xff]
        %v711 = vld [vmem:[%s4 + $0x58] sm:$0xff]
        %v712 = vld [vmem:[%s4 + $0x60] sm:$0xff]
        %v713 = vld [vmem:[%s4 + $0x68] sm:$0xff]
        %v714 = vld [vmem:[%s4 + $0x70] sm:$0xff]
        %v715 = vld [vmem:[%s4 + $0x78] sm:$0xff]
        %v716 = vld [vmem:[%s4 + $0x80] sm:$0xff]
        %v717 = vld [vmem:[%s4 + $0x88] sm:$0xff]
        %v718 = vld [vmem:[%s4 + $0x90] sm:$0xff]
        %v719 = vld [vmem:[%s4 + $0x98] sm:$0xff]
        %v720 = vld [vmem:[%s4 + $0xa0] sm:$0xff]
        %v721 = vld [vmem:[%s4 + $0xa8] sm:$0xff]
        %v722 = vld [vmem:[%s4 + $0xb0] sm:$0xff]
        %v723 = vld [vmem:[%s4 + $0xb8] sm:$0xff]
        %v724 = vld [vmem:[%s4 + $0xc0] sm:$0xff]
        %v725 = vld [vmem:[%s4 + $0xc8] sm:$0xff]
        %v726 = vld [vmem:[%s4 + $0xd0] sm:$0xff]
        %v727 = vld [vmem:[%s4 + $0xd8] sm:$0xff]
        %v728 = vld [vmem:[%s4 + $0xe0] sm:$0xff]
        %v729 = vld [vmem:[%s4 + $0xe8] sm:$0xff]
        %v730 = vld [vmem:[%s4 + $0xf0] sm:$0xff]
        %v731 = vld [vmem:[%s4 + $0xf8] sm:$0xff]
        %v733 = vsel %vm421, %v697, 0
        %v736 = vsel %vm421, %v698, 0
        %v739 = vsel %vm421, %v699, 0
        %741 = vmatprep.subr.mxu0 %v701
        %742 = vmatpush1.msra.mxu0 %v700
        %743 = vmatprep.subr.mxu0 %v705
        %744 = vmatpush1.msra.mxu0 %v704
        %745 = vmatprep.subr.mxu0 %v709
        %746 = vmatpush1.msra.mxu0 %v708
        %747 = vmatprep.subr.mxu0 %v713
        %748 = vmatpush1.msra.mxu0 %v712
        %749 = vmatprep.subr.mxu0 %v717
        %750 = vmatpush1.msra.mxu0 %v716
        %751 = vmatprep.subr.mxu0 %v721
        %752 = vmatpush1.msra.mxu0 %v720
        %753 = vmatprep.subr.mxu0 %v725
        %754 = vmatpush1.msra.mxu0 %v724
        %755 = vmatprep.subr.mxu0 %v729
        %756 = vmatpush1.msra.mxu0 %v728
        %757 = vmatprep.subr.mxu0 0.0
        %758 = vmatpush1.msra.mxu0 0.0
        %759 = vmatprep.subr.mxu0 0.0
        %760 = vmatpush1.msra.mxu0 0.0
        %761 = vmatprep.subr.mxu0 0.0
        %762 = vmatpush1.msra.mxu0 0.0
        %763 = vmatprep.subr.mxu0 0.0
        %764 = vmatpush1.msra.mxu0 0.0
        %765 = vmatprep.subr.mxu0 0.0
        %766 = vmatpush1.msra.mxu0 0.0
        %767 = vmatprep.subr.mxu0 0.0
        %768 = vmatpush1.msra.mxu0 0.0
        %769 = vmatprep.subr.mxu0 0.0
        %770 = vmatpush1.msra.mxu0 0.0
        %771 = vmatprep.subr.mxu0 0.0
        %772 = vmatpush1.msra.mxu0 0.0
        %773 = vmatprep.subr.mxu0 0.0
        %774 = vmatpush1.msra.mxu0 0.0
        %775 = vmatprep.subr.mxu0 0.0
        %776 = vmatpush1.msra.mxu0 0.0
        %777 = vmatprep.subr.mxu0 0.0
        %778 = vmatpush1.msra.mxu0 0.0
        %779 = vmatprep.subr.mxu0 0.0
        %780 = vmatpush1.msra.mxu0 0.0
        %781 = vmatprep.subr.mxu0 0.0
        %782 = vmatpush1.msra.mxu0 0.0
        %783 = vmatprep.subr.mxu0 0.0
        %784 = vmatpush1.msra.mxu0 0.0
        %785 = vmatprep.subr.mxu0 0.0
        %786 = vmatpush1.msra.mxu0 0.0
        %787 = vmatprep.subr.mxu0 0.0
        %788 = vmatpush1.msra.mxu0 0.0
        %789 = vmatprep.subr.mxu0 0.0
        %790 = vmatpush1.msra.mxu0 0.0
        %791 = vmatprep.subr.mxu0 0.0
        %792 = vmatpush1.msra.mxu0 0.0
        %793 = vmatprep.subr.mxu0 0.0
        %794 = vmatpush1.msra.mxu0 0.0
        %795 = vmatprep.subr.mxu0 0.0
        %796 = vmatpush1.msra.mxu0 0.0
        %797 = vmatprep.subr.mxu0 0.0
        %798 = vmatpush1.msra.mxu0 0.0
        %799 = vmatprep.subr.mxu0 0.0
        %800 = vmatpush1.msra.mxu0 0.0
        %801 = vmatprep.subr.mxu0 0.0
        %802 = vmatpush1.msra.mxu0 0.0
        %803 = vmatprep.subr.mxu0 0.0
        %804 = vmatpush1.msra.mxu0 0.0
        %805 = vmatprep.mubr.f32.mxu0 0.0
        %806 = vmatmul.mubr.f32.gmra.mrb[0].mxu0 %v733
        %v807 = vpop.f32.mrb[0].mxu0
        %v808 = vadd.f32 0.0, %v807
        %v809 = vpop.f32.mrb[0].mxu0
        %v810 = vadd.f32 0.0, %v809
        %811 = vmatprep.mubr.f32.mxu0 0.0
        %812 = vmatmul.mubr.f32.gmra.mrb[0].mxu0 %v736
        %v813 = vpop.f32.mrb[0].mxu0
        %v814 = vadd.f32 0.0, %v813
        %v815 = vpop.f32.mrb[0].mxu0
        %v816 = vadd.f32 0.0, %v815
        %817 = vmatprep.mubr.f32.mxu0 0.0
        %818 = vmatmul.mubr.f32.gmra.mrb[0].mxu0 %v739
        %v819 = vpop.f32.mrb[0].mxu0
        %v820 = vadd.f32 0.0, %v819
        %v821 = vpop.f32.mrb[0].mxu0
        %v822 = vadd.f32 0.0, %v821
        %823 = vdwg.mxu0
        %824 = vmatprep.subr.mxu0 %v703
        %825 = vmatpush1.msra.mxu0 %v702
        %826 = vmatprep.subr.mxu0 %v707
        %827 = vmatpush1.msra.mxu0 %v706
        %828 = vmatprep.subr.mxu0 %v711
        %829 = vmatpush1.msra.mxu0 %v710
        %830 = vmatprep.subr.mxu0 %v715
        %831 = vmatpush1.msra.mxu0 %v714
        %832 = vmatprep.subr.mxu0 %v719
        %833 = vmatpush1.msra.mxu0 %v718
        %834 = vmatprep.subr.mxu0 %v723
        %835 = vmatpush1.msra.mxu0 %v722
        %836 = vmatprep.subr.mxu0 %v727
        %837 = vmatpush1.msra.mxu0 %v726
        %838 = vmatprep.subr.mxu0 %v731
        %839 = vmatpush1.msra.mxu0 %v730
        %840 = vmatprep.subr.mxu0 0.0
        %841 = vmatpush1.msra.mxu0 0.0
        %842 = vmatprep.subr.mxu0 0.0
        %843 = vmatpush1.msra.mxu0 0.0
        %844 = vmatprep.subr.mxu0 0.0
        %845 = vmatpush1.msra.mxu0 0.0
        %846 = vmatprep.subr.mxu0 0.0
        %847 = vmatpush1.msra.mxu0 0.0
        %848 = vmatprep.subr.mxu0 0.0
        %849 = vmatpush1.msra.mxu0 0.0
        %850 = vmatprep.subr.mxu0 0.0
        %851 = vmatpush1.msra.mxu0 0.0
        %852 = vmatprep.subr.mxu0 0.0
        %853 = vmatpush1.msra.mxu0 0.0
        %854 = vmatprep.subr.mxu0 0.0
        %855 = vmatpush1.msra.mxu0 0.0
        %856 = vmatprep.subr.mxu0 0.0
        %857 = vmatpush1.msra.mxu0 0.0
        %858 = vmatprep.subr.mxu0 0.0
        %859 = vmatpush1.msra.mxu0 0.0
        %860 = vmatprep.subr.mxu0 0.0
        %861 = vmatpush1.msra.mxu0 0.0
        %862 = vmatprep.subr.mxu0 0.0
        %863 = vmatpush1.msra.mxu0 0.0
        %864 = vmatprep.subr.mxu0 0.0
        %865 = vmatpush1.msra.mxu0 0.0
        %866 = vmatprep.subr.mxu0 0.0
        %867 = vmatpush1.msra.mxu0 0.0
        %868 = vmatprep.subr.mxu0 0.0
        %869 = vmatpush1.msra.mxu0 0.0
        %870 = vmatprep.subr.mxu0 0.0
        %871 = vmatpush1.msra.mxu0 0.0
        %872 = vmatprep.subr.mxu0 0.0
        %873 = vmatpush1.msra.mxu0 0.0
        %874 = vmatprep.subr.mxu0 0.0
        %875 = vmatpush1.msra.mxu0 0.0
        %876 = vmatprep.subr.mxu0 0.0
        %877 = vmatpush1.msra.mxu0 0.0
        %878 = vmatprep.subr.mxu0 0.0
        %879 = vmatpush1.msra.mxu0 0.0
        %880 = vmatprep.subr.mxu0 0.0
        %881 = vmatpush1.msra.mxu0 0.0
        %882 = vmatprep.subr.mxu0 0.0
        %883 = vmatpush1.msra.mxu0 0.0
        %884 = vmatprep.subr.mxu0 0.0
        %885 = vmatpush1.msra.mxu0 0.0
        %886 = vmatprep.subr.mxu0 0.0
        %887 = vmatpush1.msra.mxu0 0.0
        %888 = vmatprep.mubr.f32.mxu0 0.0
        %889 = vmatmul.mubr.f32.gmra.mrb[0].mxu0 %v733
        %v890 = vpop.f32.mrb[0].mxu0
        %v891 = vadd.f32 0.0, %v890
        %v892 = vpop.f32.mrb[0].mxu0
        %v893 = vadd.f32 0.0, %v892
        %894 = vmatprep.mubr.f32.mxu0 0.0
        %895 = vmatmul.mubr.f32.gmra.mrb[0].mxu0 %v736
        %v896 = vpop.f32.mrb[0].mxu0
        %v897 = vadd.f32 0.0, %v896
        %v898 = vpop.f32.mrb[0].mxu0
        %v899 = vadd.f32 0.0, %v898
        %900 = vmatprep.mubr.f32.mxu0 0.0
        %901 = vmatmul.mubr.f32.gmra.mrb[0].mxu0 %v739
        %v902 = vpop.f32.mrb[0].mxu0
        %v903 = vadd.f32 0.0, %v902
        %v904 = vpop.f32.mrb[0].mxu0
        %v905 = vadd.f32 0.0, %v904
        %906 = vdwg.mxu0
        %v907 = vld [vmem:[%s5] sm:$0xff]
        %v908 = vld [vmem:[%s5 + $0x8] sm:$0xff]
        %v909 = vld [vmem:[%s5 + $0x10] sm:$0xf]
        %s910 = scalar_lea.vmem %s5, 24
        %v911 = vld [vmem:[%s910] sm:$0xff]
        %v912 = vld [vmem:[%s910 + $0x8] sm:$0xff]
        %v913 = vld [vmem:[%s910 + $0x10] sm:$0xf]
        %917 = vrot.lane.b32.xlu0 %v808, 112
        %v918 = vpop.permute.xlu0 %917
        %919 = vrot.lane.b32.xlu0 %v814, 112
        %v920 = vpop.permute.xlu0 %919
        %921 = vrot.lane.b32.xlu0 %v820, 112
        %v922 = vpop.permute.xlu0 %921
        %vm925 = vcmask 162816
        %v927 = vsel %vm925, %v911, 0
        %v930 = vsel %vm925, %v912, 0
        %v933 = vsel %vm925, %v913, 0
        %vm935 = vcmask 1043456
        %v936 = vsel %vm935, %v922, 0
        %938 = vmatprep.subr.mxu0 0.0
        %939 = vmatpush1.msra.mxu0 %v918
        %940 = vmatprep.subr.mxu0 0.0
        %941 = vmatpush1.msra.mxu0 %v920
        %942 = vmatprep.subr.mxu0 0.0
        %943 = vmatpush1.msra.mxu0 %v936
        %944 = vmatprep.subr.mxu0 0.0
        %945 = vmatpush1.msra.mxu0 0.0
        %946 = vmatprep.subr.mxu0 0.0
        %947 = vmatpush1.msra.mxu0 0.0
        %948 = vmatprep.subr.mxu0 0.0
        %949 = vmatpush1.msra.mxu0 0.0
        %950 = vmatprep.subr.mxu0 0.0
        %951 = vmatpush1.msra.mxu0 0.0
        %952 = vmatprep.subr.mxu0 0.0
        %953 = vmatpush1.msra.mxu0 0.0
        %954 = vmatprep.subr.mxu0 0.0
        %955 = vmatpush1.msra.mxu0 0.0
        %956 = vmatprep.subr.mxu0 0.0
        %957 = vmatpush1.msra.mxu0 0.0
        %958 = vmatprep.subr.mxu0 0.0
        %959 = vmatpush1.msra.mxu0 0.0
        %960 = vmatprep.subr.mxu0 0.0
        %961 = vmatpush1.msra.mxu0 0.0
        %962 = vmatprep.subr.mxu0 0.0
        %963 = vmatpush1.msra.mxu0 0.0
        %964 = vmatprep.subr.mxu0 0.0
        %965 = vmatpush1.msra.mxu0 0.0
        %966 = vmatprep.subr.mxu0 0.0
        %967 = vmatpush1.msra.mxu0 0.0
        %968 = vmatprep.subr.mxu0 0.0
        %969 = vmatpush1.msra.mxu0 0.0
        %970 = vmatprep.subr.mxu0 0.0
        %971 = vmatpush1.msra.mxu0 0.0
        %972 = vmatprep.subr.mxu0 0.0
        %973 = vmatpush1.msra.mxu0 0.0
        %974 = vmatprep.subr.mxu0 0.0
        %975 = vmatpush1.msra.mxu0 0.0
        %976 = vmatprep.subr.mxu0 0.0
        %977 = vmatpush1.msra.mxu0 0.0
        %978 = vmatprep.subr.mxu0 0.0
        %979 = vmatpush1.msra.mxu0 0.0
        %980 = vmatprep.subr.mxu0 0.0
        %981 = vmatpush1.msra.mxu0 0.0
        %982 = vmatprep.subr.mxu0 0.0
        %983 = vmatpush1.msra.mxu0 0.0
        %984 = vmatprep.subr.mxu0 0.0
        %985 = vmatpush1.msra.mxu0 0.0
        %986 = vmatprep.subr.mxu0 0.0
        %987 = vmatpush1.msra.mxu0 0.0
        %988 = vmatprep.subr.mxu0 0.0
        %989 = vmatpush1.msra.mxu0 0.0
        %990 = vmatprep.subr.mxu0 0.0
        %991 = vmatpush1.msra.mxu0 0.0
        %992 = vmatprep.subr.mxu0 0.0
        %993 = vmatpush1.msra.mxu0 0.0
        %994 = vmatprep.subr.mxu0 0.0
        %995 = vmatpush1.msra.mxu0 0.0
        %996 = vmatprep.subr.mxu0 0.0
        %997 = vmatpush1.msra.mxu0 0.0
        %998 = vmatprep.subr.mxu0 0.0
        %999 = vmatpush1.msra.mxu0 0.0
        %1000 = vmatprep.subr.mxu0 0.0
        %1001 = vmatpush1.msra.mxu0 0.0
        %1002 = vmatprep.mubr.f32.mxu0 0.0
        %1003 = vmatmul.mubr.f32.gmra.mrb[0].mxu0 %v927
        %v1004 = vpop.f32.mrb[0].mxu0
        %v1005 = vadd.f32 0.0, %v1004
        %v1006 = vpop.f32.mrb[0].mxu0
        %1007 = vmatprep.mubr.f32.mxu0 0.0
        %1008 = vmatmul.mubr.f32.gmra.mrb[0].mxu0 %v930
        %v1009 = vpop.f32.mrb[0].mxu0
        %v1010 = vadd.f32 0.0, %v1009
        %v1011 = vpop.f32.mrb[0].mxu0
        %1012 = vmatprep.mubr.f32.mxu0 0.0
        %1013 = vmatmul.mubr.f32.gmra.mrb[0].mxu0 %v933
        %v1014 = vpop.f32.mrb[0].mxu0
        %v1015 = vadd.f32 0.0, %v1014
        %v1016 = vpop.f32.mrb[0].mxu0
        %1017 = vdwg.mxu0
        %v1019 = vsel %vm925, %v907, 0
        %v1022 = vsel %vm925, %v908, 0
        %v1025 = vsel %vm925, %v909, 0
        %v1027 = vsel %vm935, %v820, 0
        %1029 = vmatprep.subr.mxu0 0.0
        %1030 = vmatpush1.msra.mxu0 %v808
        %1031 = vmatprep.subr.mxu0 0.0
        %1032 = vmatpush1.msra.mxu0 %v814
        %1033 = vmatprep.subr.mxu0 0.0
        %1034 = vmatpush1.msra.mxu0 %v1027
        %1035 = vmatprep.subr.mxu0 0.0
        %1036 = vmatpush1.msra.mxu0 0.0
        %1037 = vmatprep.subr.mxu0 0.0
        %1038 = vmatpush1.msra.mxu0 0.0
        %1039 = vmatprep.subr.mxu0 0.0
        %1040 = vmatpush1.msra.mxu0 0.0
        %1041 = vmatprep.subr.mxu0 0.0
        %1042 = vmatpush1.msra.mxu0 0.0
        %1043 = vmatprep.subr.mxu0 0.0
        %1044 = vmatpush1.msra.mxu0 0.0
        %1045 = vmatprep.subr.mxu0 0.0
        %1046 = vmatpush1.msra.mxu0 0.0
        %1047 = vmatprep.subr.mxu0 0.0
        %1048 = vmatpush1.msra.mxu0 0.0
        %1049 = vmatprep.subr.mxu0 0.0
        %1050 = vmatpush1.msra.mxu0 0.0
        %1051 = vmatprep.subr.mxu0 0.0
        %1052 = vmatpush1.msra.mxu0 0.0
        %1053 = vmatprep.subr.mxu0 0.0
        %1054 = vmatpush1.msra.mxu0 0.0
        %1055 = vmatprep.subr.mxu0 0.0
        %1056 = vmatpush1.msra.mxu0 0.0
        %1057 = vmatprep.subr.mxu0 0.0
        %1058 = vmatpush1.msra.mxu0 0.0
        %1059 = vmatprep.subr.mxu0 0.0
        %1060 = vmatpush1.msra.mxu0 0.0
        %1061 = vmatprep.subr.mxu0 0.0
        %1062 = vmatpush1.msra.mxu0 0.0
        %1063 = vmatprep.subr.mxu0 0.0
        %1064 = vmatpush1.msra.mxu0 0.0
        %1065 = vmatprep.subr.mxu0 0.0
        %1066 = vmatpush1.msra.mxu0 0.0
        %1067 = vmatprep.subr.mxu0 0.0
        %1068 = vmatpush1.msra.mxu0 0.0
        %1069 = vmatprep.subr.mxu0 0.0
        %1070 = vmatpush1.msra.mxu0 0.0
        %1071 = vmatprep.subr.mxu0 0.0
        %1072 = vmatpush1.msra.mxu0 0.0
        %1073 = vmatprep.subr.mxu0 0.0
        %1074 = vmatpush1.msra.mxu0 0.0
        %1075 = vmatprep.subr.mxu0 0.0
        %1076 = vmatpush1.msra.mxu0 0.0
        %1077 = vmatprep.subr.mxu0 0.0
        %1078 = vmatpush1.msra.mxu0 0.0
        %1079 = vmatprep.subr.mxu0 0.0
        %1080 = vmatpush1.msra.mxu0 0.0
        %1081 = vmatprep.subr.mxu0 0.0
        %1082 = vmatpush1.msra.mxu0 0.0
        %1083 = vmatprep.subr.mxu0 0.0
        %1084 = vmatpush1.msra.mxu0 0.0
        %1085 = vmatprep.subr.mxu0 0.0
        %1086 = vmatpush1.msra.mxu0 0.0
        %1087 = vmatprep.subr.mxu0 0.0
        %1088 = vmatpush1.msra.mxu0 0.0
        %1089 = vmatprep.subr.mxu0 0.0
        %1090 = vmatpush1.msra.mxu0 0.0
        %1091 = vmatprep.subr.mxu0 0.0
        %1092 = vmatpush1.msra.mxu0 0.0
        %1093 = vmatprep.mubr.f32.mxu0 0.0
        %1094 = vmatmul.mubr.f32.gmra.mrb[0].mxu0 %v1019
        %v1095 = vpop.f32.mrb[0].mxu0
        %v1096 = vadd.f32 %v1005, %v1095
        %v1097 = vpop.f32.mrb[0].mxu0
        %1098 = vmatprep.mubr.f32.mxu0 0.0
        %1099 = vmatmul.mubr.f32.gmra.mrb[0].mxu0 %v1022
        %v1100 = vpop.f32.mrb[0].mxu0
        %v1101 = vadd.f32 %v1010, %v1100
        %v1102 = vpop.f32.mrb[0].mxu0
        %1103 = vmatprep.mubr.f32.mxu0 0.0
        %1104 = vmatmul.mubr.f32.gmra.mrb[0].mxu0 %v1025
        %v1105 = vpop.f32.mrb[0].mxu0
        %v1106 = vadd.f32 %v1015, %v1105
        %v1107 = vpop.f32.mrb[0].mxu0
        %1108 = vdwg.mxu0
        %s1109 = scalar_lea.vmem %s5, 48
        %v1110 = vld [vmem:[%s1109] sm:$0xff]
        %v1111 = vld [vmem:[%s1109 + $0x8] sm:$0xff]
        %v1112 = vld [vmem:[%s1109 + $0x10] sm:$0xf]
        %1113 = vrot.lane.b32.xlu0 %v808, 96
        %v1114 = vpop.permute.xlu0 %1113
        %1115 = vrot.lane.b32.xlu0 %v814, 96
        %v1116 = vpop.permute.xlu0 %1115
        %1117 = vrot.lane.b32.xlu0 %v820, 96
        %v1118 = vpop.permute.xlu0 %1117
        %v1122 = vsel %vm925, %v1110, 0
        %v1125 = vsel %vm925, %v1111, 0
        %v1128 = vsel %vm925, %v1112, 0
        %v1130 = vsel %vm935, %v1118, 0
        %1132 = vmatprep.subr.mxu0 0.0
        %1133 = vmatpush1.msra.mxu0 %v1114
        %1134 = vmatprep.subr.mxu0 0.0
        %1135 = vmatpush1.msra.mxu0 %v1116
        %1136 = vmatprep.subr.mxu0 0.0
        %1137 = vmatpush1.msra.mxu0 %v1130
        %1138 = vmatprep.subr.mxu0 0.0
        %1139 = vmatpush1.msra.mxu0 0.0
        %1140 = vmatprep.subr.mxu0 0.0
        %1141 = vmatpush1.msra.mxu0 0.0
        %1142 = vmatprep.subr.mxu0 0.0
        %1143 = vmatpush1.msra.mxu0 0.0
        %1144 = vmatprep.subr.mxu0 0.0
        %1145 = vmatpush1.msra.mxu0 0.0
        %1146 = vmatprep.subr.mxu0 0.0
        %1147 = vmatpush1.msra.mxu0 0.0
        %1148 = vmatprep.subr.mxu0 0.0
        %1149 = vmatpush1.msra.mxu0 0.0
        %1150 = vmatprep.subr.mxu0 0.0
        %1151 = vmatpush1.msra.mxu0 0.0
        %1152 = vmatprep.subr.mxu0 0.0
        %1153 = vmatpush1.msra.mxu0 0.0
        %1154 = vmatprep.subr.mxu0 0.0
        %1155 = vmatpush1.msra.mxu0 0.0
        %1156 = vmatprep.subr.mxu0 0.0
        %1157 = vmatpush1.msra.mxu0 0.0
        %1158 = vmatprep.subr.mxu0 0.0
        %1159 = vmatpush1.msra.mxu0 0.0
        %1160 = vmatprep.subr.mxu0 0.0
        %1161 = vmatpush1.msra.mxu0 0.0
        %1162 = vmatprep.subr.mxu0 0.0
        %1163 = vmatpush1.msra.mxu0 0.0
        %1164 = vmatprep.subr.mxu0 0.0
        %1165 = vmatpush1.msra.mxu0 0.0
        %1166 = vmatprep.subr.mxu0 0.0
        %1167 = vmatpush1.msra.mxu0 0.0
        %1168 = vmatprep.subr.mxu0 0.0
        %1169 = vmatpush1.msra.mxu0 0.0
        %1170 = vmatprep.subr.mxu0 0.0
        %1171 = vmatpush1.msra.mxu0 0.0
        %1172 = vmatprep.subr.mxu0 0.0
        %1173 = vmatpush1.msra.mxu0 0.0
        %1174 = vmatprep.subr.mxu0 0.0
        %1175 = vmatpush1.msra.mxu0 0.0
        %1176 = vmatprep.subr.mxu0 0.0
        %1177 = vmatpush1.msra.mxu0 0.0
        %1178 = vmatprep.subr.mxu0 0.0
        %1179 = vmatpush1.msra.mxu0 0.0
        %1180 = vmatprep.subr.mxu0 0.0
        %1181 = vmatpush1.msra.mxu0 0.0
        %1182 = vmatprep.subr.mxu0 0.0
        %1183 = vmatpush1.msra.mxu0 0.0
        %1184 = vmatprep.subr.mxu0 0.0
        %1185 = vmatpush1.msra.mxu0 0.0
        %1186 = vmatprep.subr.mxu0 0.0
        %1187 = vmatpush1.msra.mxu0 0.0
        %1188 = vmatprep.subr.mxu0 0.0
        %1189 = vmatpush1.msra.mxu0 0.0
        %1190 = vmatprep.subr.mxu0 0.0
        %1191 = vmatpush1.msra.mxu0 0.0
        %1192 = vmatprep.subr.mxu0 0.0
        %1193 = vmatpush1.msra.mxu0 0.0
        %1194 = vmatprep.subr.mxu0 0.0
        %1195 = vmatpush1.msra.mxu0 0.0
        %1196 = vmatprep.mubr.f32.mxu0 0.0
        %1197 = vmatmul.mubr.f32.gmra.mrb[0].mxu0 %v1122
        %v1198 = vpop.f32.mrb[0].mxu0
        %v1199 = vadd.f32 0.0, %v1198
        %v1200 = vpop.f32.mrb[0].mxu0
        %1201 = vmatprep.mubr.f32.mxu0 0.0
        %1202 = vmatmul.mubr.f32.gmra.mrb[0].mxu0 %v1125
        %v1203 = vpop.f32.mrb[0].mxu0
        %v1204 = vadd.f32 0.0, %v1203
        %v1205 = vpop.f32.mrb[0].mxu0
        %1206 = vmatprep.mubr.f32.mxu0 0.0
        %1207 = vmatmul.mubr.f32.gmra.mrb[0].mxu0 %v1128
        %v1208 = vpop.f32.mrb[0].mxu0
        %v1209 = vadd.f32 0.0, %v1208
        %v1210 = vpop.f32.mrb[0].mxu0
        %1211 = vdwg.mxu0
        %v1212 = vadd.f32 %v1096, %v1199
        %v1213 = vadd.f32 %v1101, %v1204
        %v1214 = vadd.f32 %v1106, %v1209
        %s1215 = scalar_lea.vmem %s5, 72
        %v1216 = vld [vmem:[%s1215] sm:$0xff]
        %v1217 = vld [vmem:[%s1215 + $0x8] sm:$0xff]
        %v1218 = vld [vmem:[%s1215 + $0x10] sm:$0xf]
        %1219 = vrot.lane.b32.xlu0 %v808, 80
        %v1220 = vpop.permute.xlu0 %1219
        %1221 = vrot.lane.b32.xlu0 %v814, 80
        %v1222 = vpop.permute.xlu0 %1221
        %1223 = vrot.lane.b32.xlu0 %v820, 80
        %v1224 = vpop.permute.xlu0 %1223
        %v1228 = vsel %vm925, %v1216, 0
        %v1231 = vsel %vm925, %v1217, 0
        %v1234 = vsel %vm925, %v1218, 0
        %v1236 = vsel %vm935, %v1224, 0
        %1238 = vmatprep.subr.mxu0 0.0
        %1239 = vmatpush1.msra.mxu0 %v1220
        %1240 = vmatprep.subr.mxu0 0.0
        %1241 = vmatpush1.msra.mxu0 %v1222
        %1242 = vmatprep.subr.mxu0 0.0
        %1243 = vmatpush1.msra.mxu0 %v1236
        %1244 = vmatprep.subr.mxu0 0.0
        %1245 = vmatpush1.msra.mxu0 0.0
        %1246 = vmatprep.subr.mxu0 0.0
        %1247 = vmatpush1.msra.mxu0 0.0
        %1248 = vmatprep.subr.mxu0 0.0
        %1249 = vmatpush1.msra.mxu0 0.0
        %1250 = vmatprep.subr.mxu0 0.0
        %1251 = vmatpush1.msra.mxu0 0.0
        %1252 = vmatprep.subr.mxu0 0.0
        %1253 = vmatpush1.msra.mxu0 0.0
        %1254 = vmatprep.subr.mxu0 0.0
        %1255 = vmatpush1.msra.mxu0 0.0
        %1256 = vmatprep.subr.mxu0 0.0
        %1257 = vmatpush1.msra.mxu0 0.0
        %1258 = vmatprep.subr.mxu0 0.0
        %1259 = vmatpush1.msra.mxu0 0.0
        %1260 = vmatprep.subr.mxu0 0.0
        %1261 = vmatpush1.msra.mxu0 0.0
        %1262 = vmatprep.subr.mxu0 0.0
        %1263 = vmatpush1.msra.mxu0 0.0
        %1264 = vmatprep.subr.mxu0 0.0
        %1265 = vmatpush1.msra.mxu0 0.0
        %1266 = vmatprep.subr.mxu0 0.0
        %1267 = vmatpush1.msra.mxu0 0.0
        %1268 = vmatprep.subr.mxu0 0.0
        %1269 = vmatpush1.msra.mxu0 0.0
        %1270 = vmatprep.subr.mxu0 0.0
        %1271 = vmatpush1.msra.mxu0 0.0
        %1272 = vmatprep.subr.mxu0 0.0
        %1273 = vmatpush1.msra.mxu0 0.0
        %1274 = vmatprep.subr.mxu0 0.0
        %1275 = vmatpush1.msra.mxu0 0.0
        %1276 = vmatprep.subr.mxu0 0.0
        %1277 = vmatpush1.msra.mxu0 0.0
        %1278 = vmatprep.subr.mxu0 0.0
        %1279 = vmatpush1.msra.mxu0 0.0
        %1280 = vmatprep.subr.mxu0 0.0
        %1281 = vmatpush1.msra.mxu0 0.0
        %1282 = vmatprep.subr.mxu0 0.0
        %1283 = vmatpush1.msra.mxu0 0.0
        %1284 = vmatprep.subr.mxu0 0.0
        %1285 = vmatpush1.msra.mxu0 0.0
        %1286 = vmatprep.subr.mxu0 0.0
        %1287 = vmatpush1.msra.mxu0 0.0
        %1288 = vmatprep.subr.mxu0 0.0
        %1289 = vmatpush1.msra.mxu0 0.0
        %1290 = vmatprep.subr.mxu0 0.0
        %1291 = vmatpush1.msra.mxu0 0.0
        %1292 = vmatprep.subr.mxu0 0.0
        %1293 = vmatpush1.msra.mxu0 0.0
        %1294 = vmatprep.subr.mxu0 0.0
        %1295 = vmatpush1.msra.mxu0 0.0
        %1296 = vmatprep.subr.mxu0 0.0
        %1297 = vmatpush1.msra.mxu0 0.0
        %1298 = vmatprep.subr.mxu0 0.0
        %1299 = vmatpush1.msra.mxu0 0.0
        %1300 = vmatprep.subr.mxu0 0.0
        %1301 = vmatpush1.msra.mxu0 0.0
        %1302 = vmatprep.mubr.f32.mxu0 0.0
        %1303 = vmatmul.mubr.f32.gmra.mrb[0].mxu0 %v1228
        %v1304 = vpop.f32.mrb[0].mxu0
        %v1305 = vadd.f32 0.0, %v1304
        %v1306 = vpop.f32.mrb[0].mxu0
        %1307 = vmatprep.mubr.f32.mxu0 0.0
        %1308 = vmatmul.mubr.f32.gmra.mrb[0].mxu0 %v1231
        %v1309 = vpop.f32.mrb[0].mxu0
        %v1310 = vadd.f32 0.0, %v1309
        %v1311 = vpop.f32.mrb[0].mxu0
        %1312 = vmatprep.mubr.f32.mxu0 0.0
        %1313 = vmatmul.mubr.f32.gmra.mrb[0].mxu0 %v1234
        %v1314 = vpop.f32.mrb[0].mxu0
        %v1315 = vadd.f32 0.0, %v1314
        %v1316 = vpop.f32.mrb[0].mxu0
        %1317 = vdwg.mxu0
        %v1318 = vadd.f32 %v1212, %v1305
        %v1319 = vadd.f32 %v1213, %v1310
        %v1320 = vadd.f32 %v1214, %v1315
        %s1321 = scalar_lea.vmem %s5, 96
        %v1322 = vld [vmem:[%s1321] sm:$0xff]
        %v1323 = vld [vmem:[%s1321 + $0x8] sm:$0xff]
        %v1324 = vld [vmem:[%s1321 + $0x10] sm:$0xf]
        %1325 = vrot.lane.b32.xlu0 %v808, 64
        %v1326 = vpop.permute.xlu0 %1325
        %1327 = vrot.lane.b32.xlu0 %v814, 64
        %v1328 = vpop.permute.xlu0 %1327
        %1329 = vrot.lane.b32.xlu0 %v820, 64
        %v1330 = vpop.permute.xlu0 %1329
        %v1334 = vsel %vm925, %v1322, 0
        %v1337 = vsel %vm925, %v1323, 0
        %v1340 = vsel %vm925, %v1324, 0
        %v1342 = vsel %vm935, %v1330, 0
        %1344 = vmatprep.subr.mxu0 0.0
        %1345 = vmatpush1.msra.mxu0 %v1326
        %1346 = vmatprep.subr.mxu0 0.0
        %1347 = vmatpush1.msra.mxu0 %v1328
        %1348 = vmatprep.subr.mxu0 0.0
        %1349 = vmatpush1.msra.mxu0 %v1342
        %1350 = vmatprep.subr.mxu0 0.0
        %1351 = vmatpush1.msra.mxu0 0.0
        %1352 = vmatprep.subr.mxu0 0.0
        %1353 = vmatpush1.msra.mxu0 0.0
        %1354 = vmatprep.subr.mxu0 0.0
        %1355 = vmatpush1.msra.mxu0 0.0
        %1356 = vmatprep.subr.mxu0 0.0
        %1357 = vmatpush1.msra.mxu0 0.0
        %1358 = vmatprep.subr.mxu0 0.0
        %1359 = vmatpush1.msra.mxu0 0.0
        %1360 = vmatprep.subr.mxu0 0.0
        %1361 = vmatpush1.msra.mxu0 0.0
        %1362 = vmatprep.subr.mxu0 0.0
        %1363 = vmatpush1.msra.mxu0 0.0
        %1364 = vmatprep.subr.mxu0 0.0
        %1365 = vmatpush1.msra.mxu0 0.0
        %1366 = vmatprep.subr.mxu0 0.0
        %1367 = vmatpush1.msra.mxu0 0.0
        %1368 = vmatprep.subr.mxu0 0.0
        %1369 = vmatpush1.msra.mxu0 0.0
        %1370 = vmatprep.subr.mxu0 0.0
        %1371 = vmatpush1.msra.mxu0 0.0
        %1372 = vmatprep.subr.mxu0 0.0
        %1373 = vmatpush1.msra.mxu0 0.0
        %1374 = vmatprep.subr.mxu0 0.0
        %1375 = vmatpush1.msra.mxu0 0.0
        %1376 = vmatprep.subr.mxu0 0.0
        %1377 = vmatpush1.msra.mxu0 0.0
        %1378 = vmatprep.subr.mxu0 0.0
        %1379 = vmatpush1.msra.mxu0 0.0
        %1380 = vmatprep.subr.mxu0 0.0
        %1381 = vmatpush1.msra.mxu0 0.0
        %1382 = vmatprep.subr.mxu0 0.0
        %1383 = vmatpush1.msra.mxu0 0.0
        %1384 = vmatprep.subr.mxu0 0.0
        %1385 = vmatpush1.msra.mxu0 0.0
        %1386 = vmatprep.subr.mxu0 0.0
        %1387 = vmatpush1.msra.mxu0 0.0
        %1388 = vmatprep.subr.mxu0 0.0
        %1389 = vmatpush1.msra.mxu0 0.0
        %1390 = vmatprep.subr.mxu0 0.0
        %1391 = vmatpush1.msra.mxu0 0.0
        %1392 = vmatprep.subr.mxu0 0.0
        %1393 = vmatpush1.msra.mxu0 0.0
        %1394 = vmatprep.subr.mxu0 0.0
        %1395 = vmatpush1.msra.mxu0 0.0
        %1396 = vmatprep.subr.mxu0 0.0
        %1397 = vmatpush1.msra.mxu0 0.0
        %1398 = vmatprep.subr.mxu0 0.0
        %1399 = vmatpush1.msra.mxu0 0.0
        %1400 = vmatprep.subr.mxu0 0.0
        %1401 = vmatpush1.msra.mxu0 0.0
        %1402 = vmatprep.subr.mxu0 0.0
        %1403 = vmatpush1.msra.mxu0 0.0
        %1404 = vmatprep.subr.mxu0 0.0
        %1405 = vmatpush1.msra.mxu0 0.0
        %1406 = vmatprep.subr.mxu0 0.0
        %1407 = vmatpush1.msra.mxu0 0.0
        %1408 = vmatprep.mubr.f32.mxu0 0.0
        %1409 = vmatmul.mubr.f32.gmra.mrb[0].mxu0 %v1334
        %v1410 = vpop.f32.mrb[0].mxu0
        %v1411 = vadd.f32 0.0, %v1410
        %v1412 = vpop.f32.mrb[0].mxu0
        %1413 = vmatprep.mubr.f32.mxu0 0.0
        %1414 = vmatmul.mubr.f32.gmra.mrb[0].mxu0 %v1337
        %v1415 = vpop.f32.mrb[0].mxu0
        %v1416 = vadd.f32 0.0, %v1415
        %v1417 = vpop.f32.mrb[0].mxu0
        %1418 = vmatprep.mubr.f32.mxu0 0.0
        %1419 = vmatmul.mubr.f32.gmra.mrb[0].mxu0 %v1340
        %v1420 = vpop.f32.mrb[0].mxu0
        %v1421 = vadd.f32 0.0, %v1420
        %v1422 = vpop.f32.mrb[0].mxu0
        %1423 = vdwg.mxu0
        %v1424 = vadd.f32 %v1318, %v1411
        %v1425 = vadd.f32 %v1319, %v1416
        %v1426 = vadd.f32 %v1320, %v1421
        %s1427 = scalar_lea.vmem %s5, 120
        %v1428 = vld [vmem:[%s1427] sm:$0xff]
        %v1429 = vld [vmem:[%s1427 + $0x8] sm:$0xff]
        %v1430 = vld [vmem:[%s1427 + $0x10] sm:$0xf]
        %1431 = vrot.lane.b32.xlu0 %v808, 48
        %v1432 = vpop.permute.xlu0 %1431
        %1433 = vrot.lane.b32.xlu0 %v814, 48
        %v1434 = vpop.permute.xlu0 %1433
        %1435 = vrot.lane.b32.xlu0 %v820, 48
        %v1436 = vpop.permute.xlu0 %1435
        %v1440 = vsel %vm925, %v1428, 0
        %v1443 = vsel %vm925, %v1429, 0
        %v1446 = vsel %vm925, %v1430, 0
        %v1448 = vsel %vm935, %v1436, 0
        %1450 = vmatprep.subr.mxu0 0.0
        %1451 = vmatpush1.msra.mxu0 %v1432
        %1452 = vmatprep.subr.mxu0 0.0
        %1453 = vmatpush1.msra.mxu0 %v1434
        %1454 = vmatprep.subr.mxu0 0.0
        %1455 = vmatpush1.msra.mxu0 %v1448
        %1456 = vmatprep.subr.mxu0 0.0
        %1457 = vmatpush1.msra.mxu0 0.0
        %1458 = vmatprep.subr.mxu0 0.0
        %1459 = vmatpush1.msra.mxu0 0.0
        %1460 = vmatprep.subr.mxu0 0.0
        %1461 = vmatpush1.msra.mxu0 0.0
        %1462 = vmatprep.subr.mxu0 0.0
        %1463 = vmatpush1.msra.mxu0 0.0
        %1464 = vmatprep.subr.mxu0 0.0
        %1465 = vmatpush1.msra.mxu0 0.0
        %1466 = vmatprep.subr.mxu0 0.0
        %1467 = vmatpush1.msra.mxu0 0.0
        %1468 = vmatprep.subr.mxu0 0.0
        %1469 = vmatpush1.msra.mxu0 0.0
        %1470 = vmatprep.subr.mxu0 0.0
        %1471 = vmatpush1.msra.mxu0 0.0
        %1472 = vmatprep.subr.mxu0 0.0
        %1473 = vmatpush1.msra.mxu0 0.0
        %1474 = vmatprep.subr.mxu0 0.0
        %1475 = vmatpush1.msra.mxu0 0.0
        %1476 = vmatprep.subr.mxu0 0.0
        %1477 = vmatpush1.msra.mxu0 0.0
        %1478 = vmatprep.subr.mxu0 0.0
        %1479 = vmatpush1.msra.mxu0 0.0
        %1480 = vmatprep.subr.mxu0 0.0
        %1481 = vmatpush1.msra.mxu0 0.0
        %1482 = vmatprep.subr.mxu0 0.0
        %1483 = vmatpush1.msra.mxu0 0.0
        %1484 = vmatprep.subr.mxu0 0.0
        %1485 = vmatpush1.msra.mxu0 0.0
        %1486 = vmatprep.subr.mxu0 0.0
        %1487 = vmatpush1.msra.mxu0 0.0
        %1488 = vmatprep.subr.mxu0 0.0
        %1489 = vmatpush1.msra.mxu0 0.0
        %1490 = vmatprep.subr.mxu0 0.0
        %1491 = vmatpush1.msra.mxu0 0.0
        %1492 = vmatprep.subr.mxu0 0.0
        %1493 = vmatpush1.msra.mxu0 0.0
        %1494 = vmatprep.subr.mxu0 0.0
        %1495 = vmatpush1.msra.mxu0 0.0
        %1496 = vmatprep.subr.mxu0 0.0
        %1497 = vmatpush1.msra.mxu0 0.0
        %1498 = vmatprep.subr.mxu0 0.0
        %1499 = vmatpush1.msra.mxu0 0.0
        %1500 = vmatprep.subr.mxu0 0.0
        %1501 = vmatpush1.msra.mxu0 0.0
        %1502 = vmatprep.subr.mxu0 0.0
        %1503 = vmatpush1.msra.mxu0 0.0
        %1504 = vmatprep.subr.mxu0 0.0
        %1505 = vmatpush1.msra.mxu0 0.0
        %1506 = vmatprep.subr.mxu0 0.0
        %1507 = vmatpush1.msra.mxu0 0.0
        %1508 = vmatprep.subr.mxu0 0.0
        %1509 = vmatpush1.msra.mxu0 0.0
        %1510 = vmatprep.subr.mxu0 0.0
        %1511 = vmatpush1.msra.mxu0 0.0
        %1512 = vmatprep.subr.mxu0 0.0
        %1513 = vmatpush1.msra.mxu0 0.0
        %1514 = vmatprep.mubr.f32.mxu0 0.0
        %1515 = vmatmul.mubr.f32.gmra.mrb[0].mxu0 %v1440
        %v1516 = vpop.f32.mrb[0].mxu0
        %v1517 = vadd.f32 0.0, %v1516
        %v1518 = vpop.f32.mrb[0].mxu0
        %1519 = vmatprep.mubr.f32.mxu0 0.0
        %1520 = vmatmul.mubr.f32.gmra.mrb[0].mxu0 %v1443
        %v1521 = vpop.f32.mrb[0].mxu0
        %v1522 = vadd.f32 0.0, %v1521
        %v1523 = vpop.f32.mrb[0].mxu0
        %1524 = vmatprep.mubr.f32.mxu0 0.0
        %1525 = vmatmul.mubr.f32.gmra.mrb[0].mxu0 %v1446
        %v1526 = vpop.f32.mrb[0].mxu0
        %v1527 = vadd.f32 0.0, %v1526
        %v1528 = vpop.f32.mrb[0].mxu0
        %1529 = vdwg.mxu0
        %v1530 = vadd.f32 %v1424, %v1517
        %v1531 = vadd.f32 %v1425, %v1522
        %v1532 = vadd.f32 %v1426, %v1527
        %s1533 = scalar_lea.vmem %s5, 144
        %v1534 = vld [vmem:[%s1533] sm:$0xff]
        %v1535 = vld [vmem:[%s1533 + $0x8] sm:$0xff]
        %v1536 = vld [vmem:[%s1533 + $0x10] sm:$0xf]
        %1537 = vrot.lane.b32.xlu0 %v808, 32
        %v1538 = vpop.permute.xlu0 %1537
        %1539 = vrot.lane.b32.xlu0 %v814, 32
        %v1540 = vpop.permute.xlu0 %1539
        %1541 = vrot.lane.b32.xlu0 %v820, 32
        %v1542 = vpop.permute.xlu0 %1541
        %v1546 = vsel %vm925, %v1534, 0
        %v1549 = vsel %vm925, %v1535, 0
        %v1552 = vsel %vm925, %v1536, 0
        %v1554 = vsel %vm935, %v1542, 0
        %1556 = vmatprep.subr.mxu0 0.0
        %1557 = vmatpush1.msra.mxu0 %v1538
        %1558 = vmatprep.subr.mxu0 0.0
        %1559 = vmatpush1.msra.mxu0 %v1540
        %1560 = vmatprep.subr.mxu0 0.0
        %1561 = vmatpush1.msra.mxu0 %v1554
        %1562 = vmatprep.subr.mxu0 0.0
        %1563 = vmatpush1.msra.mxu0 0.0
        %1564 = vmatprep.subr.mxu0 0.0
        %1565 = vmatpush1.msra.mxu0 0.0
        %1566 = vmatprep.subr.mxu0 0.0
        %1567 = vmatpush1.msra.mxu0 0.0
        %1568 = vmatprep.subr.mxu0 0.0
        %1569 = vmatpush1.msra.mxu0 0.0
        %1570 = vmatprep.subr.mxu0 0.0
        %1571 = vmatpush1.msra.mxu0 0.0
        %1572 = vmatprep.subr.mxu0 0.0
        %1573 = vmatpush1.msra.mxu0 0.0
        %1574 = vmatprep.subr.mxu0 0.0
        %1575 = vmatpush1.msra.mxu0 0.0
        %1576 = vmatprep.subr.mxu0 0.0
        %1577 = vmatpush1.msra.mxu0 0.0
        %1578 = vmatprep.subr.mxu0 0.0
        %1579 = vmatpush1.msra.mxu0 0.0
        %1580 = vmatprep.subr.mxu0 0.0
        %1581 = vmatpush1.msra.mxu0 0.0
        %1582 = vmatprep.subr.mxu0 0.0
        %1583 = vmatpush1.msra.mxu0 0.0
        %1584 = vmatprep.subr.mxu0 0.0
        %1585 = vmatpush1.msra.mxu0 0.0
        %1586 = vmatprep.subr.mxu0 0.0
        %1587 = vmatpush1.msra.mxu0 0.0
        %1588 = vmatprep.subr.mxu0 0.0
        %1589 = vmatpush1.msra.mxu0 0.0
        %1590 = vmatprep.subr.mxu0 0.0
        %1591 = vmatpush1.msra.mxu0 0.0
        %1592 = vmatprep.subr.mxu0 0.0
        %1593 = vmatpush1.msra.mxu0 0.0
        %1594 = vmatprep.subr.mxu0 0.0
        %1595 = vmatpush1.msra.mxu0 0.0
        %1596 = vmatprep.subr.mxu0 0.0
        %1597 = vmatpush1.msra.mxu0 0.0
        %1598 = vmatprep.subr.mxu0 0.0
        %1599 = vmatpush1.msra.mxu0 0.0
        %1600 = vmatprep.subr.mxu0 0.0
        %1601 = vmatpush1.msra.mxu0 0.0
        %1602 = vmatprep.subr.mxu0 0.0
        %1603 = vmatpush1.msra.mxu0 0.0
        %1604 = vmatprep.subr.mxu0 0.0
        %1605 = vmatpush1.msra.mxu0 0.0
        %1606 = vmatprep.subr.mxu0 0.0
        %1607 = vmatpush1.msra.mxu0 0.0
        %1608 = vmatprep.subr.mxu0 0.0
        %1609 = vmatpush1.msra.mxu0 0.0
        %1610 = vmatprep.subr.mxu0 0.0
        %1611 = vmatpush1.msra.mxu0 0.0
        %1612 = vmatprep.subr.mxu0 0.0
        %1613 = vmatpush1.msra.mxu0 0.0
        %1614 = vmatprep.subr.mxu0 0.0
        %1615 = vmatpush1.msra.mxu0 0.0
        %1616 = vmatprep.subr.mxu0 0.0
        %1617 = vmatpush1.msra.mxu0 0.0
        %1618 = vmatprep.subr.mxu0 0.0
        %1619 = vmatpush1.msra.mxu0 0.0
        %1620 = vmatprep.mubr.f32.mxu0 0.0
        %1621 = vmatmul.mubr.f32.gmra.mrb[0].mxu0 %v1546
        %v1622 = vpop.f32.mrb[0].mxu0
        %v1623 = vadd.f32 0.0, %v1622
        %v1624 = vpop.f32.mrb[0].mxu0
        %1625 = vmatprep.mubr.f32.mxu0 0.0
        %1626 = vmatmul.mubr.f32.gmra.mrb[0].mxu0 %v1549
        %v1627 = vpop.f32.mrb[0].mxu0
        %v1628 = vadd.f32 0.0, %v1627
        %v1629 = vpop.f32.mrb[0].mxu0
        %1630 = vmatprep.mubr.f32.mxu0 0.0
        %1631 = vmatmul.mubr.f32.gmra.mrb[0].mxu0 %v1552
        %v1632 = vpop.f32.mrb[0].mxu0
        %v1633 = vadd.f32 0.0, %v1632
        %v1634 = vpop.f32.mrb[0].mxu0
        %1635 = vdwg.mxu0
        %v1636 = vadd.f32 %v1530, %v1623
        %v1637 = vadd.f32 %v1531, %v1628
        %v1638 = vadd.f32 %v1532, %v1633
        %s1639 = scalar_lea.vmem %s5, 168
        %v1640 = vld [vmem:[%s1639] sm:$0xff]
        %v1641 = vld [vmem:[%s1639 + $0x8] sm:$0xff]
        %v1642 = vld [vmem:[%s1639 + $0x10] sm:$0xf]
        %1643 = vrot.lane.b32.xlu0 %v808, 16
        %v1644 = vpop.permute.xlu0 %1643
        %1645 = vrot.lane.b32.xlu0 %v814, 16
        %v1646 = vpop.permute.xlu0 %1645
        %1647 = vrot.lane.b32.xlu0 %v820, 16
        %v1648 = vpop.permute.xlu0 %1647
        %v1652 = vsel %vm925, %v1640, 0
        %v1655 = vsel %vm925, %v1641, 0
        %v1658 = vsel %vm925, %v1642, 0
        %v1660 = vsel %vm935, %v1648, 0
        %1662 = vmatprep.subr.mxu0 0.0
        %1663 = vmatpush1.msra.mxu0 %v1644
        %1664 = vmatprep.subr.mxu0 0.0
        %1665 = vmatpush1.msra.mxu0 %v1646
        %1666 = vmatprep.subr.mxu0 0.0
        %1667 = vmatpush1.msra.mxu0 %v1660
        %1668 = vmatprep.subr.mxu0 0.0
        %1669 = vmatpush1.msra.mxu0 0.0
        %1670 = vmatprep.subr.mxu0 0.0
        %1671 = vmatpush1.msra.mxu0 0.0
        %1672 = vmatprep.subr.mxu0 0.0
        %1673 = vmatpush1.msra.mxu0 0.0
        %1674 = vmatprep.subr.mxu0 0.0
        %1675 = vmatpush1.msra.mxu0 0.0
        %1676 = vmatprep.subr.mxu0 0.0
        %1677 = vmatpush1.msra.mxu0 0.0
        %1678 = vmatprep.subr.mxu0 0.0
        %1679 = vmatpush1.msra.mxu0 0.0
        %1680 = vmatprep.subr.mxu0 0.0
        %1681 = vmatpush1.msra.mxu0 0.0
        %1682 = vmatprep.subr.mxu0 0.0
        %1683 = vmatpush1.msra.mxu0 0.0
        %1684 = vmatprep.subr.mxu0 0.0
        %1685 = vmatpush1.msra.mxu0 0.0
        %1686 = vmatprep.subr.mxu0 0.0
        %1687 = vmatpush1.msra.mxu0 0.0
        %1688 = vmatprep.subr.mxu0 0.0
        %1689 = vmatpush1.msra.mxu0 0.0
        %1690 = vmatprep.subr.mxu0 0.0
        %1691 = vmatpush1.msra.mxu0 0.0
        %1692 = vmatprep.subr.mxu0 0.0
        %1693 = vmatpush1.msra.mxu0 0.0
        %1694 = vmatprep.subr.mxu0 0.0
        %1695 = vmatpush1.msra.mxu0 0.0
        %1696 = vmatprep.subr.mxu0 0.0
        %1697 = vmatpush1.msra.mxu0 0.0
        %1698 = vmatprep.subr.mxu0 0.0
        %1699 = vmatpush1.msra.mxu0 0.0
        %1700 = vmatprep.subr.mxu0 0.0
        %1701 = vmatpush1.msra.mxu0 0.0
        %1702 = vmatprep.subr.mxu0 0.0
        %1703 = vmatpush1.msra.mxu0 0.0
        %1704 = vmatprep.subr.mxu0 0.0
        %1705 = vmatpush1.msra.mxu0 0.0
        %1706 = vmatprep.subr.mxu0 0.0
        %1707 = vmatpush1.msra.mxu0 0.0
        %1708 = vmatprep.subr.mxu0 0.0
        %1709 = vmatpush1.msra.mxu0 0.0
        %1710 = vmatprep.subr.mxu0 0.0
        %1711 = vmatpush1.msra.mxu0 0.0
        %1712 = vmatprep.subr.mxu0 0.0
        %1713 = vmatpush1.msra.mxu0 0.0
        %1714 = vmatprep.subr.mxu0 0.0
        %1715 = vmatpush1.msra.mxu0 0.0
        %1716 = vmatprep.subr.mxu0 0.0
        %1717 = vmatpush1.msra.mxu0 0.0
        %1718 = vmatprep.subr.mxu0 0.0
        %1719 = vmatpush1.msra.mxu0 0.0
        %1720 = vmatprep.subr.mxu0 0.0
        %1721 = vmatpush1.msra.mxu0 0.0
        %1722 = vmatprep.subr.mxu0 0.0
        %1723 = vmatpush1.msra.mxu0 0.0
        %1724 = vmatprep.subr.mxu0 0.0
        %1725 = vmatpush1.msra.mxu0 0.0
        %1726 = vmatprep.mubr.f32.mxu0 0.0
        %1727 = vmatmul.mubr.f32.gmra.mrb[0].mxu0 %v1652
        %v1728 = vpop.f32.mrb[0].mxu0
        %v1729 = vadd.f32 0.0, %v1728
        %v1730 = vpop.f32.mrb[0].mxu0
        %1731 = vmatprep.mubr.f32.mxu0 0.0
        %1732 = vmatmul.mubr.f32.gmra.mrb[0].mxu0 %v1655
        %v1733 = vpop.f32.mrb[0].mxu0
        %v1734 = vadd.f32 0.0, %v1733
        %v1735 = vpop.f32.mrb[0].mxu0
        %1736 = vmatprep.mubr.f32.mxu0 0.0
        %1737 = vmatmul.mubr.f32.gmra.mrb[0].mxu0 %v1658
        %v1738 = vpop.f32.mrb[0].mxu0
        %v1739 = vadd.f32 0.0, %v1738
        %v1740 = vpop.f32.mrb[0].mxu0
        %1741 = vdwg.mxu0
        %v1742 = vadd.f32 %v1636, %v1729
        %v1743 = vadd.f32 %v1637, %v1734
        %v1744 = vadd.f32 %v1638, %v1739
        %s1745 = scalar_lea.vmem %s5, 192
        %v1746 = vld [vmem:[%s1745] sm:$0xff]
        %v1747 = vld [vmem:[%s1745 + $0x8] sm:$0xff]
        %v1748 = vld [vmem:[%s1745 + $0x10] sm:$0xf]
        %v1750 = vsel %vm925, %v1746, 0
        %v1753 = vsel %vm925, %v1747, 0
        %v1756 = vsel %vm925, %v1748, 0
        %v1759 = vsel %vm935, %v822, 0
        %1761 = vmatprep.subr.mxu0 0.0
        %1762 = vmatpush1.msra.mxu0 %v810
        %1763 = vmatprep.subr.mxu0 0.0
        %1764 = vmatpush1.msra.mxu0 %v816
        %1765 = vmatprep.subr.mxu0 0.0
        %1766 = vmatpush1.msra.mxu0 %v1759
        %1767 = vmatprep.subr.mxu0 0.0
        %1768 = vmatpush1.msra.mxu0 0.0
        %1769 = vmatprep.subr.mxu0 0.0
        %1770 = vmatpush1.msra.mxu0 0.0
        %1771 = vmatprep.subr.mxu0 0.0
        %1772 = vmatpush1.msra.mxu0 0.0
        %1773 = vmatprep.subr.mxu0 0.0
        %1774 = vmatpush1.msra.mxu0 0.0
        %1775 = vmatprep.subr.mxu0 0.0
        %1776 = vmatpush1.msra.mxu0 0.0
        %1777 = vmatprep.subr.mxu0 0.0
        %1778 = vmatpush1.msra.mxu0 0.0
        %1779 = vmatprep.subr.mxu0 0.0
        %1780 = vmatpush1.msra.mxu0 0.0
        %1781 = vmatprep.subr.mxu0 0.0
        %1782 = vmatpush1.msra.mxu0 0.0
        %1783 = vmatprep.subr.mxu0 0.0
        %1784 = vmatpush1.msra.mxu0 0.0
        %1785 = vmatprep.subr.mxu0 0.0
        %1786 = vmatpush1.msra.mxu0 0.0
        %1787 = vmatprep.subr.mxu0 0.0
        %1788 = vmatpush1.msra.mxu0 0.0
        %1789 = vmatprep.subr.mxu0 0.0
        %1790 = vmatpush1.msra.mxu0 0.0
        %1791 = vmatprep.subr.mxu0 0.0
        %1792 = vmatpush1.msra.mxu0 0.0
        %1793 = vmatprep.subr.mxu0 0.0
        %1794 = vmatpush1.msra.mxu0 0.0
        %1795 = vmatprep.subr.mxu0 0.0
        %1796 = vmatpush1.msra.mxu0 0.0
        %1797 = vmatprep.subr.mxu0 0.0
        %1798 = vmatpush1.msra.mxu0 0.0
        %1799 = vmatprep.subr.mxu0 0.0
        %1800 = vmatpush1.msra.mxu0 0.0
        %1801 = vmatprep.subr.mxu0 0.0
        %1802 = vmatpush1.msra.mxu0 0.0
        %1803 = vmatprep.subr.mxu0 0.0
        %1804 = vmatpush1.msra.mxu0 0.0
        %1805 = vmatprep.subr.mxu0 0.0
        %1806 = vmatpush1.msra.mxu0 0.0
        %1807 = vmatprep.subr.mxu0 0.0
        %1808 = vmatpush1.msra.mxu0 0.0
        %1809 = vmatprep.subr.mxu0 0.0
        %1810 = vmatpush1.msra.mxu0 0.0
        %1811 = vmatprep.subr.mxu0 0.0
        %1812 = vmatpush1.msra.mxu0 0.0
        %1813 = vmatprep.subr.mxu0 0.0
        %1814 = vmatpush1.msra.mxu0 0.0
        %1815 = vmatprep.subr.mxu0 0.0
        %1816 = vmatpush1.msra.mxu0 0.0
        %1817 = vmatprep.subr.mxu0 0.0
        %1818 = vmatpush1.msra.mxu0 0.0
        %1819 = vmatprep.subr.mxu0 0.0
        %1820 = vmatpush1.msra.mxu0 0.0
        %1821 = vmatprep.subr.mxu0 0.0
        %1822 = vmatpush1.msra.mxu0 0.0
        %1823 = vmatprep.subr.mxu0 0.0
        %1824 = vmatpush1.msra.mxu0 0.0
        %1825 = vmatprep.mubr.f32.mxu0 0.0
        %1826 = vmatmul.mubr.f32.gmra.mrb[0].mxu0 %v1750
        %v1827 = vpop.f32.mrb[0].mxu0
        %v1828 = vadd.f32 0.0, %v1827
        %v1829 = vpop.f32.mrb[0].mxu0
        %1830 = vmatprep.mubr.f32.mxu0 0.0
        %1831 = vmatmul.mubr.f32.gmra.mrb[0].mxu0 %v1753
        %v1832 = vpop.f32.mrb[0].mxu0
        %v1833 = vadd.f32 0.0, %v1832
        %v1834 = vpop.f32.mrb[0].mxu0
        %1835 = vmatprep.mubr.f32.mxu0 0.0
        %1836 = vmatmul.mubr.f32.gmra.mrb[0].mxu0 %v1756
        %v1837 = vpop.f32.mrb[0].mxu0
        %v1838 = vadd.f32 0.0, %v1837
        %v1839 = vpop.f32.mrb[0].mxu0
        %1840 = vdwg.mxu0
        %v1841 = vadd.f32 %v1742, %v1828
        %v1842 = vadd.f32 %v1743, %v1833
        %v1843 = vadd.f32 %v1744, %v1838
        %s1844 = scalar_lea.vmem %s5, 216
        %v1845 = vld [vmem:[%s1844] sm:$0xff]
        %v1846 = vld [vmem:[%s1844 + $0x8] sm:$0xff]
        %v1847 = vld [vmem:[%s1844 + $0x10] sm:$0xf]
        %1850 = vrot.lane.b32.xlu0 %v810, 112
        %v1851 = vpop.permute.xlu0 %1850
        %1852 = vrot.lane.b32.xlu0 %v816, 112
        %v1853 = vpop.permute.xlu0 %1852
        %1854 = vrot.lane.b32.xlu0 %v822, 112
        %v1855 = vpop.permute.xlu0 %1854
        %v1859 = vsel %vm925, %v1845, 0
        %v1862 = vsel %vm925, %v1846, 0
        %v1865 = vsel %vm925, %v1847, 0
        %v1867 = vsel %vm935, %v1855, 0
        %1869 = vmatprep.subr.mxu0 0.0
        %1870 = vmatpush1.msra.mxu0 %v1851
        %1871 = vmatprep.subr.mxu0 0.0
        %1872 = vmatpush1.msra.mxu0 %v1853
        %1873 = vmatprep.subr.mxu0 0.0
        %1874 = vmatpush1.msra.mxu0 %v1867
        %1875 = vmatprep.subr.mxu0 0.0
        %1876 = vmatpush1.msra.mxu0 0.0
        %1877 = vmatprep.subr.mxu0 0.0
        %1878 = vmatpush1.msra.mxu0 0.0
        %1879 = vmatprep.subr.mxu0 0.0
        %1880 = vmatpush1.msra.mxu0 0.0
        %1881 = vmatprep.subr.mxu0 0.0
        %1882 = vmatpush1.msra.mxu0 0.0
        %1883 = vmatprep.subr.mxu0 0.0
        %1884 = vmatpush1.msra.mxu0 0.0
        %1885 = vmatprep.subr.mxu0 0.0
        %1886 = vmatpush1.msra.mxu0 0.0
        %1887 = vmatprep.subr.mxu0 0.0
        %1888 = vmatpush1.msra.mxu0 0.0
        %1889 = vmatprep.subr.mxu0 0.0
        %1890 = vmatpush1.msra.mxu0 0.0
        %1891 = vmatprep.subr.mxu0 0.0
        %1892 = vmatpush1.msra.mxu0 0.0
        %1893 = vmatprep.subr.mxu0 0.0
        %1894 = vmatpush1.msra.mxu0 0.0
        %1895 = vmatprep.subr.mxu0 0.0
        %1896 = vmatpush1.msra.mxu0 0.0
        %1897 = vmatprep.subr.mxu0 0.0
        %1898 = vmatpush1.msra.mxu0 0.0
        %1899 = vmatprep.subr.mxu0 0.0
        %1900 = vmatpush1.msra.mxu0 0.0
        %1901 = vmatprep.subr.mxu0 0.0
        %1902 = vmatpush1.msra.mxu0 0.0
        %1903 = vmatprep.subr.mxu0 0.0
        %1904 = vmatpush1.msra.mxu0 0.0
        %1905 = vmatprep.subr.mxu0 0.0
        %1906 = vmatpush1.msra.mxu0 0.0
        %1907 = vmatprep.subr.mxu0 0.0
        %1908 = vmatpush1.msra.mxu0 0.0
        %1909 = vmatprep.subr.mxu0 0.0
        %1910 = vmatpush1.msra.mxu0 0.0
        %1911 = vmatprep.subr.mxu0 0.0
        %1912 = vmatpush1.msra.mxu0 0.0
        %1913 = vmatprep.subr.mxu0 0.0
        %1914 = vmatpush1.msra.mxu0 0.0
        %1915 = vmatprep.subr.mxu0 0.0
        %1916 = vmatpush1.msra.mxu0 0.0
        %1917 = vmatprep.subr.mxu0 0.0
        %1918 = vmatpush1.msra.mxu0 0.0
        %1919 = vmatprep.subr.mxu0 0.0
        %1920 = vmatpush1.msra.mxu0 0.0
        %1921 = vmatprep.subr.mxu0 0.0
        %1922 = vmatpush1.msra.mxu0 0.0
        %1923 = vmatprep.subr.mxu0 0.0
        %1924 = vmatpush1.msra.mxu0 0.0
        %1925 = vmatprep.subr.mxu0 0.0
        %1926 = vmatpush1.msra.mxu0 0.0
        %1927 = vmatprep.subr.mxu0 0.0
        %1928 = vmatpush1.msra.mxu0 0.0
        %1929 = vmatprep.subr.mxu0 0.0
        %1930 = vmatpush1.msra.mxu0 0.0
        %1931 = vmatprep.subr.mxu0 0.0
        %1932 = vmatpush1.msra.mxu0 0.0
        %1933 = vmatprep.mubr.f32.mxu0 0.0
        %1934 = vmatmul.mubr.f32.gmra.mrb[0].mxu0 %v1859
        %v1935 = vpop.f32.mrb[0].mxu0
        %v1936 = vadd.f32 0.0, %v1935
        %v1937 = vpop.f32.mrb[0].mxu0
        %1938 = vmatprep.mubr.f32.mxu0 0.0
        %1939 = vmatmul.mubr.f32.gmra.mrb[0].mxu0 %v1862
        %v1940 = vpop.f32.mrb[0].mxu0
        %v1941 = vadd.f32 0.0, %v1940
        %v1942 = vpop.f32.mrb[0].mxu0
        %1943 = vmatprep.mubr.f32.mxu0 0.0
        %1944 = vmatmul.mubr.f32.gmra.mrb[0].mxu0 %v1865
        %v1945 = vpop.f32.mrb[0].mxu0
        %v1946 = vadd.f32 0.0, %v1945
        %v1947 = vpop.f32.mrb[0].mxu0
        %1948 = vdwg.mxu0
        %v1949 = vadd.f32 %v1841, %v1936
        %v1950 = vadd.f32 %v1842, %v1941
        %v1951 = vadd.f32 %v1843, %v1946
        %s1952 = scalar_lea.vmem %s5, 240
        %v1953 = vld [vmem:[%s1952] sm:$0xff]
        %v1954 = vld [vmem:[%s1952 + $0x8] sm:$0xff]
        %v1955 = vld [vmem:[%s1952 + $0x10] sm:$0xf]
        %1956 = vrot.lane.b32.xlu0 %v810, 96
        %v1957 = vpop.permute.xlu0 %1956
        %1958 = vrot.lane.b32.xlu0 %v816, 96
        %v1959 = vpop.permute.xlu0 %1958
        %1960 = vrot.lane.b32.xlu0 %v822, 96
        %v1961 = vpop.permute.xlu0 %1960
        %v1965 = vsel %vm925, %v1953, 0
        %v1968 = vsel %vm925, %v1954, 0
        %v1971 = vsel %vm925, %v1955, 0
        %v1973 = vsel %vm935, %v1961, 0
        %1975 = vmatprep.subr.mxu0 0.0
        %1976 = vmatpush1.msra.mxu0 %v1957
        %1977 = vmatprep.subr.mxu0 0.0
        %1978 = vmatpush1.msra.mxu0 %v1959
        %1979 = vmatprep.subr.mxu0 0.0
        %1980 = vmatpush1.msra.mxu0 %v1973
        %1981 = vmatprep.subr.mxu0 0.0
        %1982 = vmatpush1.msra.mxu0 0.0
        %1983 = vmatprep.subr.mxu0 0.0
        %1984 = vmatpush1.msra.mxu0 0.0
        %1985 = vmatprep.subr.mxu0 0.0
        %1986 = vmatpush1.msra.mxu0 0.0
        %1987 = vmatprep.subr.mxu0 0.0
        %1988 = vmatpush1.msra.mxu0 0.0
        %1989 = vmatprep.subr.mxu0 0.0
        %1990 = vmatpush1.msra.mxu0 0.0
        %1991 = vmatprep.subr.mxu0 0.0
        %1992 = vmatpush1.msra.mxu0 0.0
        %1993 = vmatprep.subr.mxu0 0.0
        %1994 = vmatpush1.msra.mxu0 0.0
        %1995 = vmatprep.subr.mxu0 0.0
        %1996 = vmatpush1.msra.mxu0 0.0
        %1997 = vmatprep.subr.mxu0 0.0
        %1998 = vmatpush1.msra.mxu0 0.0
        %1999 = vmatprep.subr.mxu0 0.0
        %2000 = vmatpush1.msra.mxu0 0.0
        %2001 = vmatprep.subr.mxu0 0.0
        %2002 = vmatpush1.msra.mxu0 0.0
        %2003 = vmatprep.subr.mxu0 0.0
        %2004 = vmatpush1.msra.mxu0 0.0
        %2005 = vmatprep.subr.mxu0 0.0
        %2006 = vmatpush1.msra.mxu0 0.0
        %2007 = vmatprep.subr.mxu0 0.0
        %2008 = vmatpush1.msra.mxu0 0.0
        %2009 = vmatprep.subr.mxu0 0.0
        %2010 = vmatpush1.msra.mxu0 0.0
        %2011 = vmatprep.subr.mxu0 0.0
        %2012 = vmatpush1.msra.mxu0 0.0
        %2013 = vmatprep.subr.mxu0 0.0
        %2014 = vmatpush1.msra.mxu0 0.0
        %2015 = vmatprep.subr.mxu0 0.0
        %2016 = vmatpush1.msra.mxu0 0.0
        %2017 = vmatprep.subr.mxu0 0.0
        %2018 = vmatpush1.msra.mxu0 0.0
        %2019 = vmatprep.subr.mxu0 0.0
        %2020 = vmatpush1.msra.mxu0 0.0
        %2021 = vmatprep.subr.mxu0 0.0
        %2022 = vmatpush1.msra.mxu0 0.0
        %2023 = vmatprep.subr.mxu0 0.0
        %2024 = vmatpush1.msra.mxu0 0.0
        %2025 = vmatprep.subr.mxu0 0.0
        %2026 = vmatpush1.msra.mxu0 0.0
        %2027 = vmatprep.subr.mxu0 0.0
        %2028 = vmatpush1.msra.mxu0 0.0
        %2029 = vmatprep.subr.mxu0 0.0
        %2030 = vmatpush1.msra.mxu0 0.0
        %2031 = vmatprep.subr.mxu0 0.0
        %2032 = vmatpush1.msra.mxu0 0.0
        %2033 = vmatprep.subr.mxu0 0.0
        %2034 = vmatpush1.msra.mxu0 0.0
        %2035 = vmatprep.subr.mxu0 0.0
        %2036 = vmatpush1.msra.mxu0 0.0
        %2037 = vmatprep.subr.mxu0 0.0
        %2038 = vmatpush1.msra.mxu0 0.0
        %2039 = vmatprep.mubr.f32.mxu0 0.0
        %2040 = vmatmul.mubr.f32.gmra.mrb[0].mxu0 %v1965
        %v2041 = vpop.f32.mrb[0].mxu0
        %v2042 = vadd.f32 0.0, %v2041
        %v2043 = vpop.f32.mrb[0].mxu0
        %2044 = vmatprep.mubr.f32.mxu0 0.0
        %2045 = vmatmul.mubr.f32.gmra.mrb[0].mxu0 %v1968
        %v2046 = vpop.f32.mrb[0].mxu0
        %v2047 = vadd.f32 0.0, %v2046
        %v2048 = vpop.f32.mrb[0].mxu0
        %2049 = vmatprep.mubr.f32.mxu0 0.0
        %2050 = vmatmul.mubr.f32.gmra.mrb[0].mxu0 %v1971
        %v2051 = vpop.f32.mrb[0].mxu0
        %v2052 = vadd.f32 0.0, %v2051
        %v2053 = vpop.f32.mrb[0].mxu0
        %2054 = vdwg.mxu0
        %v2055 = vadd.f32 %v1949, %v2042
        %v2056 = vadd.f32 %v1950, %v2047
        %v2057 = vadd.f32 %v1951, %v2052
        %s2058 = scalar_lea.vmem %s5, 264
        %v2059 = vld [vmem:[%s2058] sm:$0xff]
        %v2060 = vld [vmem:[%s2058 + $0x8] sm:$0xff]
        %v2061 = vld [vmem:[%s2058 + $0x10] sm:$0xf]
        %2062 = vrot.lane.b32.xlu0 %v810, 80
        %v2063 = vpop.permute.xlu0 %2062
        %2064 = vrot.lane.b32.xlu0 %v816, 80
        %v2065 = vpop.permute.xlu0 %2064
        %2066 = vrot.lane.b32.xlu0 %v822, 80
        %v2067 = vpop.permute.xlu0 %2066
        %v2071 = vsel %vm925, %v2059, 0
        %v2074 = vsel %vm925, %v2060, 0
        %v2077 = vsel %vm925, %v2061, 0
        %v2079 = vsel %vm935, %v2067, 0
        %2081 = vmatprep.subr.mxu0 0.0
        %2082 = vmatpush1.msra.mxu0 %v2063
        %2083 = vmatprep.subr.mxu0 0.0
        %2084 = vmatpush1.msra.mxu0 %v2065
        %2085 = vmatprep.subr.mxu0 0.0
        %2086 = vmatpush1.msra.mxu0 %v2079
        %2087 = vmatprep.subr.mxu0 0.0
        %2088 = vmatpush1.msra.mxu0 0.0
        %2089 = vmatprep.subr.mxu0 0.0
        %2090 = vmatpush1.msra.mxu0 0.0
        %2091 = vmatprep.subr.mxu0 0.0
        %2092 = vmatpush1.msra.mxu0 0.0
        %2093 = vmatprep.subr.mxu0 0.0
        %2094 = vmatpush1.msra.mxu0 0.0
        %2095 = vmatprep.subr.mxu0 0.0
        %2096 = vmatpush1.msra.mxu0 0.0
        %2097 = vmatprep.subr.mxu0 0.0
        %2098 = vmatpush1.msra.mxu0 0.0
        %2099 = vmatprep.subr.mxu0 0.0
        %2100 = vmatpush1.msra.mxu0 0.0
        %2101 = vmatprep.subr.mxu0 0.0
        %2102 = vmatpush1.msra.mxu0 0.0
        %2103 = vmatprep.subr.mxu0 0.0
        %2104 = vmatpush1.msra.mxu0 0.0
        %2105 = vmatprep.subr.mxu0 0.0
        %2106 = vmatpush1.msra.mxu0 0.0
        %2107 = vmatprep.subr.mxu0 0.0
        %2108 = vmatpush1.msra.mxu0 0.0
        %2109 = vmatprep.subr.mxu0 0.0
        %2110 = vmatpush1.msra.mxu0 0.0
        %2111 = vmatprep.subr.mxu0 0.0
        %2112 = vmatpush1.msra.mxu0 0.0
        %2113 = vmatprep.subr.mxu0 0.0
        %2114 = vmatpush1.msra.mxu0 0.0
        %2115 = vmatprep.subr.mxu0 0.0
        %2116 = vmatpush1.msra.mxu0 0.0
        %2117 = vmatprep.subr.mxu0 0.0
        %2118 = vmatpush1.msra.mxu0 0.0
        %2119 = vmatprep.subr.mxu0 0.0
        %2120 = vmatpush1.msra.mxu0 0.0
        %2121 = vmatprep.subr.mxu0 0.0
        %2122 = vmatpush1.msra.mxu0 0.0
        %2123 = vmatprep.subr.mxu0 0.0
        %2124 = vmatpush1.msra.mxu0 0.0
        %2125 = vmatprep.subr.mxu0 0.0
        %2126 = vmatpush1.msra.mxu0 0.0
        %2127 = vmatprep.subr.mxu0 0.0
        %2128 = vmatpush1.msra.mxu0 0.0
        %2129 = vmatprep.subr.mxu0 0.0
        %2130 = vmatpush1.msra.mxu0 0.0
        %2131 = vmatprep.subr.mxu0 0.0
        %2132 = vmatpush1.msra.mxu0 0.0
        %2133 = vmatprep.subr.mxu0 0.0
        %2134 = vmatpush1.msra.mxu0 0.0
        %2135 = vmatprep.subr.mxu0 0.0
        %2136 = vmatpush1.msra.mxu0 0.0
        %2137 = vmatprep.subr.mxu0 0.0
        %2138 = vmatpush1.msra.mxu0 0.0
        %2139 = vmatprep.subr.mxu0 0.0
        %2140 = vmatpush1.msra.mxu0 0.0
        %2141 = vmatprep.subr.mxu0 0.0
        %2142 = vmatpush1.msra.mxu0 0.0
        %2143 = vmatprep.subr.mxu0 0.0
        %2144 = vmatpush1.msra.mxu0 0.0
        %2145 = vmatprep.mubr.f32.mxu0 0.0
        %2146 = vmatmul.mubr.f32.gmra.mrb[0].mxu0 %v2071
        %v2147 = vpop.f32.mrb[0].mxu0
        %v2148 = vadd.f32 0.0, %v2147
        %v2149 = vpop.f32.mrb[0].mxu0
        %2150 = vmatprep.mubr.f32.mxu0 0.0
        %2151 = vmatmul.mubr.f32.gmra.mrb[0].mxu0 %v2074
        %v2152 = vpop.f32.mrb[0].mxu0
        %v2153 = vadd.f32 0.0, %v2152
        %v2154 = vpop.f32.mrb[0].mxu0
        %2155 = vmatprep.mubr.f32.mxu0 0.0
        %2156 = vmatmul.mubr.f32.gmra.mrb[0].mxu0 %v2077
        %v2157 = vpop.f32.mrb[0].mxu0
        %v2158 = vadd.f32 0.0, %v2157
        %v2159 = vpop.f32.mrb[0].mxu0
        %2160 = vdwg.mxu0
        %v2161 = vadd.f32 %v2055, %v2148
        %v2162 = vadd.f32 %v2056, %v2153
        %v2163 = vadd.f32 %v2057, %v2158
        %s2164 = scalar_lea.vmem %s5, 288
        %v2165 = vld [vmem:[%s2164] sm:$0xff]
        %v2166 = vld [vmem:[%s2164 + $0x8] sm:$0xff]
        %v2167 = vld [vmem:[%s2164 + $0x10] sm:$0xf]
        %2168 = vrot.lane.b32.xlu0 %v810, 64
        %v2169 = vpop.permute.xlu0 %2168
        %2170 = vrot.lane.b32.xlu0 %v816, 64
        %v2171 = vpop.permute.xlu0 %2170
        %2172 = vrot.lane.b32.xlu0 %v822, 64
        %v2173 = vpop.permute.xlu0 %2172
        %v2177 = vsel %vm925, %v2165, 0
        %v2180 = vsel %vm925, %v2166, 0
        %v2183 = vsel %vm925, %v2167, 0
        %v2185 = vsel %vm935, %v2173, 0
        %2187 = vmatprep.subr.mxu0 0.0
        %2188 = vmatpush1.msra.mxu0 %v2169
        %2189 = vmatprep.subr.mxu0 0.0
        %2190 = vmatpush1.msra.mxu0 %v2171
        %2191 = vmatprep.subr.mxu0 0.0
        %2192 = vmatpush1.msra.mxu0 %v2185
        %2193 = vmatprep.subr.mxu0 0.0
        %2194 = vmatpush1.msra.mxu0 0.0
        %2195 = vmatprep.subr.mxu0 0.0
        %2196 = vmatpush1.msra.mxu0 0.0
        %2197 = vmatprep.subr.mxu0 0.0
        %2198 = vmatpush1.msra.mxu0 0.0
        %2199 = vmatprep.subr.mxu0 0.0
        %2200 = vmatpush1.msra.mxu0 0.0
        %2201 = vmatprep.subr.mxu0 0.0
        %2202 = vmatpush1.msra.mxu0 0.0
        %2203 = vmatprep.subr.mxu0 0.0
        %2204 = vmatpush1.msra.mxu0 0.0
        %2205 = vmatprep.subr.mxu0 0.0
        %2206 = vmatpush1.msra.mxu0 0.0
        %2207 = vmatprep.subr.mxu0 0.0
        %2208 = vmatpush1.msra.mxu0 0.0
        %2209 = vmatprep.subr.mxu0 0.0
        %2210 = vmatpush1.msra.mxu0 0.0
        %2211 = vmatprep.subr.mxu0 0.0
        %2212 = vmatpush1.msra.mxu0 0.0
        %2213 = vmatprep.subr.mxu0 0.0
        %2214 = vmatpush1.msra.mxu0 0.0
        %2215 = vmatprep.subr.mxu0 0.0
        %2216 = vmatpush1.msra.mxu0 0.0
        %2217 = vmatprep.subr.mxu0 0.0
        %2218 = vmatpush1.msra.mxu0 0.0
        %2219 = vmatprep.subr.mxu0 0.0
        %2220 = vmatpush1.msra.mxu0 0.0
        %2221 = vmatprep.subr.mxu0 0.0
        %2222 = vmatpush1.msra.mxu0 0.0
        %2223 = vmatprep.subr.mxu0 0.0
        %2224 = vmatpush1.msra.mxu0 0.0
        %2225 = vmatprep.subr.mxu0 0.0
        %2226 = vmatpush1.msra.mxu0 0.0
        %2227 = vmatprep.subr.mxu0 0.0
        %2228 = vmatpush1.msra.mxu0 0.0
        %2229 = vmatprep.subr.mxu0 0.0
        %2230 = vmatpush1.msra.mxu0 0.0
        %2231 = vmatprep.subr.mxu0 0.0
        %2232 = vmatpush1.msra.mxu0 0.0
        %2233 = vmatprep.subr.mxu0 0.0
        %2234 = vmatpush1.msra.mxu0 0.0
        %2235 = vmatprep.subr.mxu0 0.0
        %2236 = vmatpush1.msra.mxu0 0.0
        %2237 = vmatprep.subr.mxu0 0.0
        %2238 = vmatpush1.msra.mxu0 0.0
        %2239 = vmatprep.subr.mxu0 0.0
        %2240 = vmatpush1.msra.mxu0 0.0
        %2241 = vmatprep.subr.mxu0 0.0
        %2242 = vmatpush1.msra.mxu0 0.0
        %2243 = vmatprep.subr.mxu0 0.0
        %2244 = vmatpush1.msra.mxu0 0.0
        %2245 = vmatprep.subr.mxu0 0.0
        %2246 = vmatpush1.msra.mxu0 0.0
        %2247 = vmatprep.subr.mxu0 0.0
        %2248 = vmatpush1.msra.mxu0 0.0
        %2249 = vmatprep.subr.mxu0 0.0
        %2250 = vmatpush1.msra.mxu0 0.0
        %2251 = vmatprep.mubr.f32.mxu0 0.0
        %2252 = vmatmul.mubr.f32.gmra.mrb[0].mxu0 %v2177
        %v2253 = vpop.f32.mrb[0].mxu0
        %v2254 = vadd.f32 0.0, %v2253
        %v2255 = vpop.f32.mrb[0].mxu0
        %2256 = vmatprep.mubr.f32.mxu0 0.0
        %2257 = vmatmul.mubr.f32.gmra.mrb[0].mxu0 %v2180
        %v2258 = vpop.f32.mrb[0].mxu0
        %v2259 = vadd.f32 0.0, %v2258
        %v2260 = vpop.f32.mrb[0].mxu0
        %2261 = vmatprep.mubr.f32.mxu0 0.0
        %2262 = vmatmul.mubr.f32.gmra.mrb[0].mxu0 %v2183
        %v2263 = vpop.f32.mrb[0].mxu0
        %v2264 = vadd.f32 0.0, %v2263
        %v2265 = vpop.f32.mrb[0].mxu0
        %2266 = vdwg.mxu0
        %v2267 = vadd.f32 %v2161, %v2254
        %v2268 = vadd.f32 %v2162, %v2259
        %v2269 = vadd.f32 %v2163, %v2264
        %s2270 = scalar_lea.vmem %s5, 312
        %v2271 = vld [vmem:[%s2270] sm:$0xff]
        %v2272 = vld [vmem:[%s2270 + $0x8] sm:$0xff]
        %v2273 = vld [vmem:[%s2270 + $0x10] sm:$0xf]
        %2274 = vrot.lane.b32.xlu0 %v810, 48
        %v2275 = vpop.permute.xlu0 %2274
        %2276 = vrot.lane.b32.xlu0 %v816, 48
        %v2277 = vpop.permute.xlu0 %2276
        %2278 = vrot.lane.b32.xlu0 %v822, 48
        %v2279 = vpop.permute.xlu0 %2278
        %v2283 = vsel %vm925, %v2271, 0
        %v2286 = vsel %vm925, %v2272, 0
        %v2289 = vsel %vm925, %v2273, 0
        %v2291 = vsel %vm935, %v2279, 0
        %2293 = vmatprep.subr.mxu0 0.0
        %2294 = vmatpush1.msra.mxu0 %v2275
        %2295 = vmatprep.subr.mxu0 0.0
        %2296 = vmatpush1.msra.mxu0 %v2277
        %2297 = vmatprep.subr.mxu0 0.0
        %2298 = vmatpush1.msra.mxu0 %v2291
        %2299 = vmatprep.subr.mxu0 0.0
        %2300 = vmatpush1.msra.mxu0 0.0
        %2301 = vmatprep.subr.mxu0 0.0
        %2302 = vmatpush1.msra.mxu0 0.0
        %2303 = vmatprep.subr.mxu0 0.0
        %2304 = vmatpush1.msra.mxu0 0.0
        %2305 = vmatprep.subr.mxu0 0.0
        %2306 = vmatpush1.msra.mxu0 0.0
        %2307 = vmatprep.subr.mxu0 0.0
        %2308 = vmatpush1.msra.mxu0 0.0
        %2309 = vmatprep.subr.mxu0 0.0
        %2310 = vmatpush1.msra.mxu0 0.0
        %2311 = vmatprep.subr.mxu0 0.0
        %2312 = vmatpush1.msra.mxu0 0.0
        %2313 = vmatprep.subr.mxu0 0.0
        %2314 = vmatpush1.msra.mxu0 0.0
        %2315 = vmatprep.subr.mxu0 0.0
        %2316 = vmatpush1.msra.mxu0 0.0
        %2317 = vmatprep.subr.mxu0 0.0
        %2318 = vmatpush1.msra.mxu0 0.0
        %2319 = vmatprep.subr.mxu0 0.0
        %2320 = vmatpush1.msra.mxu0 0.0
        %2321 = vmatprep.subr.mxu0 0.0
        %2322 = vmatpush1.msra.mxu0 0.0
        %2323 = vmatprep.subr.mxu0 0.0
        %2324 = vmatpush1.msra.mxu0 0.0
        %2325 = vmatprep.subr.mxu0 0.0
        %2326 = vmatpush1.msra.mxu0 0.0
        %2327 = vmatprep.subr.mxu0 0.0
        %2328 = vmatpush1.msra.mxu0 0.0
        %2329 = vmatprep.subr.mxu0 0.0
        %2330 = vmatpush1.msra.mxu0 0.0
        %2331 = vmatprep.subr.mxu0 0.0
        %2332 = vmatpush1.msra.mxu0 0.0
        %2333 = vmatprep.subr.mxu0 0.0
        %2334 = vmatpush1.msra.mxu0 0.0
        %2335 = vmatprep.subr.mxu0 0.0
        %2336 = vmatpush1.msra.mxu0 0.0
        %2337 = vmatprep.subr.mxu0 0.0
        %2338 = vmatpush1.msra.mxu0 0.0
        %2339 = vmatprep.subr.mxu0 0.0
        %2340 = vmatpush1.msra.mxu0 0.0
        %2341 = vmatprep.subr.mxu0 0.0
        %2342 = vmatpush1.msra.mxu0 0.0
        %2343 = vmatprep.subr.mxu0 0.0
        %2344 = vmatpush1.msra.mxu0 0.0
        %2345 = vmatprep.subr.mxu0 0.0
        %2346 = vmatpush1.msra.mxu0 0.0
        %2347 = vmatprep.subr.mxu0 0.0
        %2348 = vmatpush1.msra.mxu0 0.0
        %2349 = vmatprep.subr.mxu0 0.0
        %2350 = vmatpush1.msra.mxu0 0.0
        %2351 = vmatprep.subr.mxu0 0.0
        %2352 = vmatpush1.msra.mxu0 0.0
        %2353 = vmatprep.subr.mxu0 0.0
        %2354 = vmatpush1.msra.mxu0 0.0
        %2355 = vmatprep.subr.mxu0 0.0
        %2356 = vmatpush1.msra.mxu0 0.0
        %2357 = vmatprep.mubr.f32.mxu0 0.0
        %2358 = vmatmul.mubr.f32.gmra.mrb[0].mxu0 %v2283
        %v2359 = vpop.f32.mrb[0].mxu0
        %v2360 = vadd.f32 0.0, %v2359
        %v2361 = vpop.f32.mrb[0].mxu0
        %2362 = vmatprep.mubr.f32.mxu0 0.0
        %2363 = vmatmul.mubr.f32.gmra.mrb[0].mxu0 %v2286
        %v2364 = vpop.f32.mrb[0].mxu0
        %v2365 = vadd.f32 0.0, %v2364
        %v2366 = vpop.f32.mrb[0].mxu0
        %2367 = vmatprep.mubr.f32.mxu0 0.0
        %2368 = vmatmul.mubr.f32.gmra.mrb[0].mxu0 %v2289
        %v2369 = vpop.f32.mrb[0].mxu0
        %v2370 = vadd.f32 0.0, %v2369
        %v2371 = vpop.f32.mrb[0].mxu0
        %2372 = vdwg.mxu0
        %v2373 = vadd.f32 %v2267, %v2360
        %v2374 = vadd.f32 %v2268, %v2365
        %v2375 = vadd.f32 %v2269, %v2370
        %s2376 = scalar_lea.vmem %s5, 336
        %v2377 = vld [vmem:[%s2376] sm:$0xff]
        %v2378 = vld [vmem:[%s2376 + $0x8] sm:$0xff]
        %v2379 = vld [vmem:[%s2376 + $0x10] sm:$0xf]
        %2380 = vrot.lane.b32.xlu0 %v810, 32
        %v2381 = vpop.permute.xlu0 %2380
        %2382 = vrot.lane.b32.xlu0 %v816, 32
        %v2383 = vpop.permute.xlu0 %2382
        %2384 = vrot.lane.b32.xlu0 %v822, 32
        %v2385 = vpop.permute.xlu0 %2384
        %v2389 = vsel %vm925, %v2377, 0
        %v2392 = vsel %vm925, %v2378, 0
        %v2395 = vsel %vm925, %v2379, 0
        %v2397 = vsel %vm935, %v2385, 0
        %2399 = vmatprep.subr.mxu0 0.0
        %2400 = vmatpush1.msra.mxu0 %v2381
        %2401 = vmatprep.subr.mxu0 0.0
        %2402 = vmatpush1.msra.mxu0 %v2383
        %2403 = vmatprep.subr.mxu0 0.0
        %2404 = vmatpush1.msra.mxu0 %v2397
        %2405 = vmatprep.subr.mxu0 0.0
        %2406 = vmatpush1.msra.mxu0 0.0
        %2407 = vmatprep.subr.mxu0 0.0
        %2408 = vmatpush1.msra.mxu0 0.0
        %2409 = vmatprep.subr.mxu0 0.0
        %2410 = vmatpush1.msra.mxu0 0.0
        %2411 = vmatprep.subr.mxu0 0.0
        %2412 = vmatpush1.msra.mxu0 0.0
        %2413 = vmatprep.subr.mxu0 0.0
        %2414 = vmatpush1.msra.mxu0 0.0
        %2415 = vmatprep.subr.mxu0 0.0
        %2416 = vmatpush1.msra.mxu0 0.0
        %2417 = vmatprep.subr.mxu0 0.0
        %2418 = vmatpush1.msra.mxu0 0.0
        %2419 = vmatprep.subr.mxu0 0.0
        %2420 = vmatpush1.msra.mxu0 0.0
        %2421 = vmatprep.subr.mxu0 0.0
        %2422 = vmatpush1.msra.mxu0 0.0
        %2423 = vmatprep.subr.mxu0 0.0
        %2424 = vmatpush1.msra.mxu0 0.0
        %2425 = vmatprep.subr.mxu0 0.0
        %2426 = vmatpush1.msra.mxu0 0.0
        %2427 = vmatprep.subr.mxu0 0.0
        %2428 = vmatpush1.msra.mxu0 0.0
        %2429 = vmatprep.subr.mxu0 0.0
        %2430 = vmatpush1.msra.mxu0 0.0
        %2431 = vmatprep.subr.mxu0 0.0
        %2432 = vmatpush1.msra.mxu0 0.0
        %2433 = vmatprep.subr.mxu0 0.0
        %2434 = vmatpush1.msra.mxu0 0.0
        %2435 = vmatprep.subr.mxu0 0.0
        %2436 = vmatpush1.msra.mxu0 0.0
        %2437 = vmatprep.subr.mxu0 0.0
        %2438 = vmatpush1.msra.mxu0 0.0
        %2439 = vmatprep.subr.mxu0 0.0
        %2440 = vmatpush1.msra.mxu0 0.0
        %2441 = vmatprep.subr.mxu0 0.0
        %2442 = vmatpush1.msra.mxu0 0.0
        %2443 = vmatprep.subr.mxu0 0.0
        %2444 = vmatpush1.msra.mxu0 0.0
        %2445 = vmatprep.subr.mxu0 0.0
        %2446 = vmatpush1.msra.mxu0 0.0
        %2447 = vmatprep.subr.mxu0 0.0
        %2448 = vmatpush1.msra.mxu0 0.0
        %2449 = vmatprep.subr.mxu0 0.0
        %2450 = vmatpush1.msra.mxu0 0.0
        %2451 = vmatprep.subr.mxu0 0.0
        %2452 = vmatpush1.msra.mxu0 0.0
        %2453 = vmatprep.subr.mxu0 0.0
        %2454 = vmatpush1.msra.mxu0 0.0
        %2455 = vmatprep.subr.mxu0 0.0
        %2456 = vmatpush1.msra.mxu0 0.0
        %2457 = vmatprep.subr.mxu0 0.0
        %2458 = vmatpush1.msra.mxu0 0.0
        %2459 = vmatprep.subr.mxu0 0.0
        %2460 = vmatpush1.msra.mxu0 0.0
        %2461 = vmatprep.subr.mxu0 0.0
        %2462 = vmatpush1.msra.mxu0 0.0
        %2463 = vmatprep.mubr.f32.mxu0 0.0
        %2464 = vmatmul.mubr.f32.gmra.mrb[0].mxu0 %v2389
        %v2465 = vpop.f32.mrb[0].mxu0
        %v2466 = vadd.f32 0.0, %v2465
        %v2467 = vpop.f32.mrb[0].mxu0
        %2468 = vmatprep.mubr.f32.mxu0 0.0
        %2469 = vmatmul.mubr.f32.gmra.mrb[0].mxu0 %v2392
        %v2470 = vpop.f32.mrb[0].mxu0
        %v2471 = vadd.f32 0.0, %v2470
        %v2472 = vpop.f32.mrb[0].mxu0
        %2473 = vmatprep.mubr.f32.mxu0 0.0
        %2474 = vmatmul.mubr.f32.gmra.mrb[0].mxu0 %v2395
        %v2475 = vpop.f32.mrb[0].mxu0
        %v2476 = vadd.f32 0.0, %v2475
        %v2477 = vpop.f32.mrb[0].mxu0
        %2478 = vdwg.mxu0
        %v2479 = vadd.f32 %v2373, %v2466
        %v2480 = vadd.f32 %v2374, %v2471
        %v2481 = vadd.f32 %v2375, %v2476
        %s2482 = scalar_lea.vmem %s5, 360
        %v2483 = vld [vmem:[%s2482] sm:$0xff]
        %v2484 = vld [vmem:[%s2482 + $0x8] sm:$0xff]
        %v2485 = vld [vmem:[%s2482 + $0x10] sm:$0xf]
        %2486 = vrot.lane.b32.xlu0 %v810, 16
        %v2487 = vpop.permute.xlu0 %2486
        %2488 = vrot.lane.b32.xlu0 %v816, 16
        %v2489 = vpop.permute.xlu0 %2488
        %2490 = vrot.lane.b32.xlu0 %v822, 16
        %v2491 = vpop.permute.xlu0 %2490
        %v2495 = vsel %vm925, %v2483, 0
        %v2498 = vsel %vm925, %v2484, 0
        %v2501 = vsel %vm925, %v2485, 0
        %v2503 = vsel %vm935, %v2491, 0
        %2505 = vmatprep.subr.mxu0 0.0
        %2506 = vmatpush1.msra.mxu0 %v2487
        %2507 = vmatprep.subr.mxu0 0.0
        %2508 = vmatpush1.msra.mxu0 %v2489
        %2509 = vmatprep.subr.mxu0 0.0
        %2510 = vmatpush1.msra.mxu0 %v2503
        %2511 = vmatprep.subr.mxu0 0.0
        %2512 = vmatpush1.msra.mxu0 0.0
        %2513 = vmatprep.subr.mxu0 0.0
        %2514 = vmatpush1.msra.mxu0 0.0
        %2515 = vmatprep.subr.mxu0 0.0
        %2516 = vmatpush1.msra.mxu0 0.0
        %2517 = vmatprep.subr.mxu0 0.0
        %2518 = vmatpush1.msra.mxu0 0.0
        %2519 = vmatprep.subr.mxu0 0.0
        %2520 = vmatpush1.msra.mxu0 0.0
        %2521 = vmatprep.subr.mxu0 0.0
        %2522 = vmatpush1.msra.mxu0 0.0
        %2523 = vmatprep.subr.mxu0 0.0
        %2524 = vmatpush1.msra.mxu0 0.0
        %2525 = vmatprep.subr.mxu0 0.0
        %2526 = vmatpush1.msra.mxu0 0.0
        %2527 = vmatprep.subr.mxu0 0.0
        %2528 = vmatpush1.msra.mxu0 0.0
        %2529 = vmatprep.subr.mxu0 0.0
        %2530 = vmatpush1.msra.mxu0 0.0
        %2531 = vmatprep.subr.mxu0 0.0
        %2532 = vmatpush1.msra.mxu0 0.0
        %2533 = vmatprep.subr.mxu0 0.0
        %2534 = vmatpush1.msra.mxu0 0.0
        %2535 = vmatprep.subr.mxu0 0.0
        %2536 = vmatpush1.msra.mxu0 0.0
        %2537 = vmatprep.subr.mxu0 0.0
        %2538 = vmatpush1.msra.mxu0 0.0
        %2539 = vmatprep.subr.mxu0 0.0
        %2540 = vmatpush1.msra.mxu0 0.0
        %2541 = vmatprep.subr.mxu0 0.0
        %2542 = vmatpush1.msra.mxu0 0.0
        %2543 = vmatprep.subr.mxu0 0.0
        %2544 = vmatpush1.msra.mxu0 0.0
        %2545 = vmatprep.subr.mxu0 0.0
        %2546 = vmatpush1.msra.mxu0 0.0
        %2547 = vmatprep.subr.mxu0 0.0
        %2548 = vmatpush1.msra.mxu0 0.0
        %2549 = vmatprep.subr.mxu0 0.0
        %2550 = vmatpush1.msra.mxu0 0.0
        %2551 = vmatprep.subr.mxu0 0.0
        %2552 = vmatpush1.msra.mxu0 0.0
        %2553 = vmatprep.subr.mxu0 0.0
        %2554 = vmatpush1.msra.mxu0 0.0
        %2555 = vmatprep.subr.mxu0 0.0
        %2556 = vmatpush1.msra.mxu0 0.0
        %2557 = vmatprep.subr.mxu0 0.0
        %2558 = vmatpush1.msra.mxu0 0.0
        %2559 = vmatprep.subr.mxu0 0.0
        %2560 = vmatpush1.msra.mxu0 0.0
        %2561 = vmatprep.subr.mxu0 0.0
        %2562 = vmatpush1.msra.mxu0 0.0
        %2563 = vmatprep.subr.mxu0 0.0
        %2564 = vmatpush1.msra.mxu0 0.0
        %2565 = vmatprep.subr.mxu0 0.0
        %2566 = vmatpush1.msra.mxu0 0.0
        %2567 = vmatprep.subr.mxu0 0.0
        %2568 = vmatpush1.msra.mxu0 0.0
        %2569 = vmatprep.mubr.f32.mxu0 0.0
        %2570 = vmatmul.mubr.f32.gmra.mrb[0].mxu0 %v2495
        %v2571 = vpop.f32.mrb[0].mxu0
        %v2572 = vadd.f32 0.0, %v2571
        %v2573 = vpop.f32.mrb[0].mxu0
        %2574 = vmatprep.mubr.f32.mxu0 0.0
        %2575 = vmatmul.mubr.f32.gmra.mrb[0].mxu0 %v2498
        %v2576 = vpop.f32.mrb[0].mxu0
        %v2577 = vadd.f32 0.0, %v2576
        %v2578 = vpop.f32.mrb[0].mxu0
        %2579 = vmatprep.mubr.f32.mxu0 0.0
        %2580 = vmatmul.mubr.f32.gmra.mrb[0].mxu0 %v2501
        %v2581 = vpop.f32.mrb[0].mxu0
        %v2582 = vadd.f32 0.0, %v2581
        %v2583 = vpop.f32.mrb[0].mxu0
        %2584 = vdwg.mxu0
        %v2585 = vadd.f32 %v2479, %v2572
        %v2586 = vadd.f32 %v2480, %v2577
        %v2587 = vadd.f32 %v2481, %v2582
        %s2588 = scalar_lea.vmem %s5, 384
        %v2589 = vld [vmem:[%s2588] sm:$0xff]
        %v2590 = vld [vmem:[%s2588 + $0x8] sm:$0xff]
        %v2591 = vld [vmem:[%s2588 + $0x10] sm:$0xf]
        %v2593 = vsel %vm925, %v2589, 0
        %v2596 = vsel %vm925, %v2590, 0
        %v2599 = vsel %vm925, %v2591, 0
        %v2602 = vsel %vm935, %v903, 0
        %2604 = vmatprep.subr.mxu0 0.0
        %2605 = vmatpush1.msra.mxu0 %v891
        %2606 = vmatprep.subr.mxu0 0.0
        %2607 = vmatpush1.msra.mxu0 %v897
        %2608 = vmatprep.subr.mxu0 0.0
        %2609 = vmatpush1.msra.mxu0 %v2602
        %2610 = vmatprep.subr.mxu0 0.0
        %2611 = vmatpush1.msra.mxu0 0.0
        %2612 = vmatprep.subr.mxu0 0.0
        %2613 = vmatpush1.msra.mxu0 0.0
        %2614 = vmatprep.subr.mxu0 0.0
        %2615 = vmatpush1.msra.mxu0 0.0
        %2616 = vmatprep.subr.mxu0 0.0
        %2617 = vmatpush1.msra.mxu0 0.0
        %2618 = vmatprep.subr.mxu0 0.0
        %2619 = vmatpush1.msra.mxu0 0.0
        %2620 = vmatprep.subr.mxu0 0.0
        %2621 = vmatpush1.msra.mxu0 0.0
        %2622 = vmatprep.subr.mxu0 0.0
        %2623 = vmatpush1.msra.mxu0 0.0
        %2624 = vmatprep.subr.mxu0 0.0
        %2625 = vmatpush1.msra.mxu0 0.0
        %2626 = vmatprep.subr.mxu0 0.0
        %2627 = vmatpush1.msra.mxu0 0.0
        %2628 = vmatprep.subr.mxu0 0.0
        %2629 = vmatpush1.msra.mxu0 0.0
        %2630 = vmatprep.subr.mxu0 0.0
        %2631 = vmatpush1.msra.mxu0 0.0
        %2632 = vmatprep.subr.mxu0 0.0
        %2633 = vmatpush1.msra.mxu0 0.0
        %2634 = vmatprep.subr.mxu0 0.0
        %2635 = vmatpush1.msra.mxu0 0.0
        %2636 = vmatprep.subr.mxu0 0.0
        %2637 = vmatpush1.msra.mxu0 0.0
        %2638 = vmatprep.subr.mxu0 0.0
        %2639 = vmatpush1.msra.mxu0 0.0
        %2640 = vmatprep.subr.mxu0 0.0
        %2641 = vmatpush1.msra.mxu0 0.0
        %2642 = vmatprep.subr.mxu0 0.0
        %2643 = vmatpush1.msra.mxu0 0.0
        %2644 = vmatprep.subr.mxu0 0.0
        %2645 = vmatpush1.msra.mxu0 0.0
        %2646 = vmatprep.subr.mxu0 0.0
        %2647 = vmatpush1.msra.mxu0 0.0
        %2648 = vmatprep.subr.mxu0 0.0
        %2649 = vmatpush1.msra.mxu0 0.0
        %2650 = vmatprep.subr.mxu0 0.0
        %2651 = vmatpush1.msra.mxu0 0.0
        %2652 = vmatprep.subr.mxu0 0.0
        %2653 = vmatpush1.msra.mxu0 0.0
        %2654 = vmatprep.subr.mxu0 0.0
        %2655 = vmatpush1.msra.mxu0 0.0
        %2656 = vmatprep.subr.mxu0 0.0
        %2657 = vmatpush1.msra.mxu0 0.0
        %2658 = vmatprep.subr.mxu0 0.0
        %2659 = vmatpush1.msra.mxu0 0.0
        %2660 = vmatprep.subr.mxu0 0.0
        %2661 = vmatpush1.msra.mxu0 0.0
        %2662 = vmatprep.subr.mxu0 0.0
        %2663 = vmatpush1.msra.mxu0 0.0
        %2664 = vmatprep.subr.mxu0 0.0
        %2665 = vmatpush1.msra.mxu0 0.0
        %2666 = vmatprep.subr.mxu0 0.0
        %2667 = vmatpush1.msra.mxu0 0.0
        %2668 = vmatprep.mubr.f32.mxu0 0.0
        %2669 = vmatmul.mubr.f32.gmra.mrb[0].mxu0 %v2593
        %v2670 = vpop.f32.mrb[0].mxu0
        %v2671 = vadd.f32 0.0, %v2670
        %v2672 = vpop.f32.mrb[0].mxu0
        %2673 = vmatprep.mubr.f32.mxu0 0.0
        %2674 = vmatmul.mubr.f32.gmra.mrb[0].mxu0 %v2596
        %v2675 = vpop.f32.mrb[0].mxu0
        %v2676 = vadd.f32 0.0, %v2675
        %v2677 = vpop.f32.mrb[0].mxu0
        %2678 = vmatprep.mubr.f32.mxu0 0.0
        %2679 = vmatmul.mubr.f32.gmra.mrb[0].mxu0 %v2599
        %v2680 = vpop.f32.mrb[0].mxu0
        %v2681 = vadd.f32 0.0, %v2680
        %v2682 = vpop.f32.mrb[0].mxu0
        %2683 = vdwg.mxu0
        %v2684 = vadd.f32 %v2585, %v2671
        %v2685 = vadd.f32 %v2586, %v2676
        %v2686 = vadd.f32 %v2587, %v2681
        %s2687 = scalar_lea.vmem %s5, 408
        %v2688 = vld [vmem:[%s2687] sm:$0xff]
        %v2689 = vld [vmem:[%s2687 + $0x8] sm:$0xff]
        %v2690 = vld [vmem:[%s2687 + $0x10] sm:$0xf]
        %2693 = vrot.lane.b32.xlu0 %v891, 112
        %v2694 = vpop.permute.xlu0 %2693
        %2695 = vrot.lane.b32.xlu0 %v897, 112
        %v2696 = vpop.permute.xlu0 %2695
        %2697 = vrot.lane.b32.xlu0 %v903, 112
        %v2698 = vpop.permute.xlu0 %2697
        %v2702 = vsel %vm925, %v2688, 0
        %v2705 = vsel %vm925, %v2689, 0
        %v2708 = vsel %vm925, %v2690, 0
        %v2710 = vsel %vm935, %v2698, 0
        %2712 = vmatprep.subr.mxu0 0.0
        %2713 = vmatpush1.msra.mxu0 %v2694
        %2714 = vmatprep.subr.mxu0 0.0
        %2715 = vmatpush1.msra.mxu0 %v2696
        %2716 = vmatprep.subr.mxu0 0.0
        %2717 = vmatpush1.msra.mxu0 %v2710
        %2718 = vmatprep.subr.mxu0 0.0
        %2719 = vmatpush1.msra.mxu0 0.0
        %2720 = vmatprep.subr.mxu0 0.0
        %2721 = vmatpush1.msra.mxu0 0.0
        %2722 = vmatprep.subr.mxu0 0.0
        %2723 = vmatpush1.msra.mxu0 0.0
        %2724 = vmatprep.subr.mxu0 0.0
        %2725 = vmatpush1.msra.mxu0 0.0
        %2726 = vmatprep.subr.mxu0 0.0
        %2727 = vmatpush1.msra.mxu0 0.0
        %2728 = vmatprep.subr.mxu0 0.0
        %2729 = vmatpush1.msra.mxu0 0.0
        %2730 = vmatprep.subr.mxu0 0.0
        %2731 = vmatpush1.msra.mxu0 0.0
        %2732 = vmatprep.subr.mxu0 0.0
        %2733 = vmatpush1.msra.mxu0 0.0
        %2734 = vmatprep.subr.mxu0 0.0
        %2735 = vmatpush1.msra.mxu0 0.0
        %2736 = vmatprep.subr.mxu0 0.0
        %2737 = vmatpush1.msra.mxu0 0.0
        %2738 = vmatprep.subr.mxu0 0.0
        %2739 = vmatpush1.msra.mxu0 0.0
        %2740 = vmatprep.subr.mxu0 0.0
        %2741 = vmatpush1.msra.mxu0 0.0
        %2742 = vmatprep.subr.mxu0 0.0
        %2743 = vmatpush1.msra.mxu0 0.0
        %2744 = vmatprep.subr.mxu0 0.0
        %2745 = vmatpush1.msra.mxu0 0.0
        %2746 = vmatprep.subr.mxu0 0.0
        %2747 = vmatpush1.msra.mxu0 0.0
        %2748 = vmatprep.subr.mxu0 0.0
        %2749 = vmatpush1.msra.mxu0 0.0
        %2750 = vmatprep.subr.mxu0 0.0
        %2751 = vmatpush1.msra.mxu0 0.0
        %2752 = vmatprep.subr.mxu0 0.0
        %2753 = vmatpush1.msra.mxu0 0.0
        %2754 = vmatprep.subr.mxu0 0.0
        %2755 = vmatpush1.msra.mxu0 0.0
        %2756 = vmatprep.subr.mxu0 0.0
        %2757 = vmatpush1.msra.mxu0 0.0
        %2758 = vmatprep.subr.mxu0 0.0
        %2759 = vmatpush1.msra.mxu0 0.0
        %2760 = vmatprep.subr.mxu0 0.0
        %2761 = vmatpush1.msra.mxu0 0.0
        %2762 = vmatprep.subr.mxu0 0.0
        %2763 = vmatpush1.msra.mxu0 0.0
        %2764 = vmatprep.subr.mxu0 0.0
        %2765 = vmatpush1.msra.mxu0 0.0
        %2766 = vmatprep.subr.mxu0 0.0
        %2767 = vmatpush1.msra.mxu0 0.0
        %2768 = vmatprep.subr.mxu0 0.0
        %2769 = vmatpush1.msra.mxu0 0.0
        %2770 = vmatprep.subr.mxu0 0.0
        %2771 = vmatpush1.msra.mxu0 0.0
        %2772 = vmatprep.subr.mxu0 0.0
        %2773 = vmatpush1.msra.mxu0 0.0
        %2774 = vmatprep.subr.mxu0 0.0
        %2775 = vmatpush1.msra.mxu0 0.0
        %2776 = vmatprep.mubr.f32.mxu0 0.0
        %2777 = vmatmul.mubr.f32.gmra.mrb[0].mxu0 %v2702
        %v2778 = vpop.f32.mrb[0].mxu0
        %v2779 = vadd.f32 0.0, %v2778
        %v2780 = vpop.f32.mrb[0].mxu0
        %2781 = vmatprep.mubr.f32.mxu0 0.0
        %2782 = vmatmul.mubr.f32.gmra.mrb[0].mxu0 %v2705
        %v2783 = vpop.f32.mrb[0].mxu0
        %v2784 = vadd.f32 0.0, %v2783
        %v2785 = vpop.f32.mrb[0].mxu0
        %2786 = vmatprep.mubr.f32.mxu0 0.0
        %2787 = vmatmul.mubr.f32.gmra.mrb[0].mxu0 %v2708
        %v2788 = vpop.f32.mrb[0].mxu0
        %v2789 = vadd.f32 0.0, %v2788
        %v2790 = vpop.f32.mrb[0].mxu0
        %2791 = vdwg.mxu0
        %v2792 = vadd.f32 %v2684, %v2779
        %v2793 = vadd.f32 %v2685, %v2784
        %v2794 = vadd.f32 %v2686, %v2789
        %s2795 = scalar_lea.vmem %s5, 432
        %v2796 = vld [vmem:[%s2795] sm:$0xff]
        %v2797 = vld [vmem:[%s2795 + $0x8] sm:$0xff]
        %v2798 = vld [vmem:[%s2795 + $0x10] sm:$0xf]
        %2799 = vrot.lane.b32.xlu0 %v891, 96
        %v2800 = vpop.permute.xlu0 %2799
        %2801 = vrot.lane.b32.xlu0 %v897, 96
        %v2802 = vpop.permute.xlu0 %2801
        %2803 = vrot.lane.b32.xlu0 %v903, 96
        %v2804 = vpop.permute.xlu0 %2803
        %v2808 = vsel %vm925, %v2796, 0
        %v2811 = vsel %vm925, %v2797, 0
        %v2814 = vsel %vm925, %v2798, 0
        %v2816 = vsel %vm935, %v2804, 0
        %2818 = vmatprep.subr.mxu0 0.0
        %2819 = vmatpush1.msra.mxu0 %v2800
        %2820 = vmatprep.subr.mxu0 0.0
        %2821 = vmatpush1.msra.mxu0 %v2802
        %2822 = vmatprep.subr.mxu0 0.0
        %2823 = vmatpush1.msra.mxu0 %v2816
        %2824 = vmatprep.subr.mxu0 0.0
        %2825 = vmatpush1.msra.mxu0 0.0
        %2826 = vmatprep.subr.mxu0 0.0
        %2827 = vmatpush1.msra.mxu0 0.0
        %2828 = vmatprep.subr.mxu0 0.0
        %2829 = vmatpush1.msra.mxu0 0.0
        %2830 = vmatprep.subr.mxu0 0.0
        %2831 = vmatpush1.msra.mxu0 0.0
        %2832 = vmatprep.subr.mxu0 0.0
        %2833 = vmatpush1.msra.mxu0 0.0
        %2834 = vmatprep.subr.mxu0 0.0
        %2835 = vmatpush1.msra.mxu0 0.0
        %2836 = vmatprep.subr.mxu0 0.0
        %2837 = vmatpush1.msra.mxu0 0.0
        %2838 = vmatprep.subr.mxu0 0.0
        %2839 = vmatpush1.msra.mxu0 0.0
        %2840 = vmatprep.subr.mxu0 0.0
        %2841 = vmatpush1.msra.mxu0 0.0
        %2842 = vmatprep.subr.mxu0 0.0
        %2843 = vmatpush1.msra.mxu0 0.0
        %2844 = vmatprep.subr.mxu0 0.0
        %2845 = vmatpush1.msra.mxu0 0.0
        %2846 = vmatprep.subr.mxu0 0.0
        %2847 = vmatpush1.msra.mxu0 0.0
        %2848 = vmatprep.subr.mxu0 0.0
        %2849 = vmatpush1.msra.mxu0 0.0
        %2850 = vmatprep.subr.mxu0 0.0
        %2851 = vmatpush1.msra.mxu0 0.0
        %2852 = vmatprep.subr.mxu0 0.0
        %2853 = vmatpush1.msra.mxu0 0.0
        %2854 = vmatprep.subr.mxu0 0.0
        %2855 = vmatpush1.msra.mxu0 0.0
        %2856 = vmatprep.subr.mxu0 0.0
        %2857 = vmatpush1.msra.mxu0 0.0
        %2858 = vmatprep.subr.mxu0 0.0
        %2859 = vmatpush1.msra.mxu0 0.0
        %2860 = vmatprep.subr.mxu0 0.0
        %2861 = vmatpush1.msra.mxu0 0.0
        %2862 = vmatprep.subr.mxu0 0.0
        %2863 = vmatpush1.msra.mxu0 0.0
        %2864 = vmatprep.subr.mxu0 0.0
        %2865 = vmatpush1.msra.mxu0 0.0
        %2866 = vmatprep.subr.mxu0 0.0
        %2867 = vmatpush1.msra.mxu0 0.0
        %2868 = vmatprep.subr.mxu0 0.0
        %2869 = vmatpush1.msra.mxu0 0.0
        %2870 = vmatprep.subr.mxu0 0.0
        %2871 = vmatpush1.msra.mxu0 0.0
        %2872 = vmatprep.subr.mxu0 0.0
        %2873 = vmatpush1.msra.mxu0 0.0
        %2874 = vmatprep.subr.mxu0 0.0
        %2875 = vmatpush1.msra.mxu0 0.0
        %2876 = vmatprep.subr.mxu0 0.0
        %2877 = vmatpush1.msra.mxu0 0.0
        %2878 = vmatprep.subr.mxu0 0.0
        %2879 = vmatpush1.msra.mxu0 0.0
        %2880 = vmatprep.subr.mxu0 0.0
        %2881 = vmatpush1.msra.mxu0 0.0
        %2882 = vmatprep.mubr.f32.mxu0 0.0
        %2883 = vmatmul.mubr.f32.gmra.mrb[0].mxu0 %v2808
        %v2884 = vpop.f32.mrb[0].mxu0
        %v2885 = vadd.f32 0.0, %v2884
        %v2886 = vpop.f32.mrb[0].mxu0
        %2887 = vmatprep.mubr.f32.mxu0 0.0
        %2888 = vmatmul.mubr.f32.gmra.mrb[0].mxu0 %v2811
        %v2889 = vpop.f32.mrb[0].mxu0
        %v2890 = vadd.f32 0.0, %v2889
        %v2891 = vpop.f32.mrb[0].mxu0
        %2892 = vmatprep.mubr.f32.mxu0 0.0
        %2893 = vmatmul.mubr.f32.gmra.mrb[0].mxu0 %v2814
        %v2894 = vpop.f32.mrb[0].mxu0
        %v2895 = vadd.f32 0.0, %v2894
        %v2896 = vpop.f32.mrb[0].mxu0
        %2897 = vdwg.mxu0
        %v2898 = vadd.f32 %v2792, %v2885
        %v2899 = vadd.f32 %v2793, %v2890
        %v2900 = vadd.f32 %v2794, %v2895
        %s2901 = scalar_lea.vmem %s5, 456
        %v2902 = vld [vmem:[%s2901] sm:$0xff]
        %v2903 = vld [vmem:[%s2901 + $0x8] sm:$0xff]
        %v2904 = vld [vmem:[%s2901 + $0x10] sm:$0xf]
        %2905 = vrot.lane.b32.xlu0 %v891, 80
        %v2906 = vpop.permute.xlu0 %2905
        %2907 = vrot.lane.b32.xlu0 %v897, 80
        %v2908 = vpop.permute.xlu0 %2907
        %2909 = vrot.lane.b32.xlu0 %v903, 80
        %v2910 = vpop.permute.xlu0 %2909
        %v2914 = vsel %vm925, %v2902, 0
        %v2917 = vsel %vm925, %v2903, 0
        %v2920 = vsel %vm925, %v2904, 0
        %v2922 = vsel %vm935, %v2910, 0
        %2924 = vmatprep.subr.mxu0 0.0
        %2925 = vmatpush1.msra.mxu0 %v2906
        %2926 = vmatprep.subr.mxu0 0.0
        %2927 = vmatpush1.msra.mxu0 %v2908
        %2928 = vmatprep.subr.mxu0 0.0
        %2929 = vmatpush1.msra.mxu0 %v2922
        %2930 = vmatprep.subr.mxu0 0.0
        %2931 = vmatpush1.msra.mxu0 0.0
        %2932 = vmatprep.subr.mxu0 0.0
        %2933 = vmatpush1.msra.mxu0 0.0
        %2934 = vmatprep.subr.mxu0 0.0
        %2935 = vmatpush1.msra.mxu0 0.0
        %2936 = vmatprep.subr.mxu0 0.0
        %2937 = vmatpush1.msra.mxu0 0.0
        %2938 = vmatprep.subr.mxu0 0.0
        %2939 = vmatpush1.msra.mxu0 0.0
        %2940 = vmatprep.subr.mxu0 0.0
        %2941 = vmatpush1.msra.mxu0 0.0
        %2942 = vmatprep.subr.mxu0 0.0
        %2943 = vmatpush1.msra.mxu0 0.0
        %2944 = vmatprep.subr.mxu0 0.0
        %2945 = vmatpush1.msra.mxu0 0.0
        %2946 = vmatprep.subr.mxu0 0.0
        %2947 = vmatpush1.msra.mxu0 0.0
        %2948 = vmatprep.subr.mxu0 0.0
        %2949 = vmatpush1.msra.mxu0 0.0
        %2950 = vmatprep.subr.mxu0 0.0
        %2951 = vmatpush1.msra.mxu0 0.0
        %2952 = vmatprep.subr.mxu0 0.0
        %2953 = vmatpush1.msra.mxu0 0.0
        %2954 = vmatprep.subr.mxu0 0.0
        %2955 = vmatpush1.msra.mxu0 0.0
        %2956 = vmatprep.subr.mxu0 0.0
        %2957 = vmatpush1.msra.mxu0 0.0
        %2958 = vmatprep.subr.mxu0 0.0
        %2959 = vmatpush1.msra.mxu0 0.0
        %2960 = vmatprep.subr.mxu0 0.0
        %2961 = vmatpush1.msra.mxu0 0.0
        %2962 = vmatprep.subr.mxu0 0.0
        %2963 = vmatpush1.msra.mxu0 0.0
        %2964 = vmatprep.subr.mxu0 0.0
        %2965 = vmatpush1.msra.mxu0 0.0
        %2966 = vmatprep.subr.mxu0 0.0
        %2967 = vmatpush1.msra.mxu0 0.0
        %2968 = vmatprep.subr.mxu0 0.0
        %2969 = vmatpush1.msra.mxu0 0.0
        %2970 = vmatprep.subr.mxu0 0.0
        %2971 = vmatpush1.msra.mxu0 0.0
        %2972 = vmatprep.subr.mxu0 0.0
        %2973 = vmatpush1.msra.mxu0 0.0
        %2974 = vmatprep.subr.mxu0 0.0
        %2975 = vmatpush1.msra.mxu0 0.0
        %2976 = vmatprep.subr.mxu0 0.0
        %2977 = vmatpush1.msra.mxu0 0.0
        %2978 = vmatprep.subr.mxu0 0.0
        %2979 = vmatpush1.msra.mxu0 0.0
        %2980 = vmatprep.subr.mxu0 0.0
        %2981 = vmatpush1.msra.mxu0 0.0
        %2982 = vmatprep.subr.mxu0 0.0
        %2983 = vmatpush1.msra.mxu0 0.0
        %2984 = vmatprep.subr.mxu0 0.0
        %2985 = vmatpush1.msra.mxu0 0.0
        %2986 = vmatprep.subr.mxu0 0.0
        %2987 = vmatpush1.msra.mxu0 0.0
        %2988 = vmatprep.mubr.f32.mxu0 0.0
        %2989 = vmatmul.mubr.f32.gmra.mrb[0].mxu0 %v2914
        %v2990 = vpop.f32.mrb[0].mxu0
        %v2991 = vadd.f32 0.0, %v2990
        %v2992 = vpop.f32.mrb[0].mxu0
        %2993 = vmatprep.mubr.f32.mxu0 0.0
        %2994 = vmatmul.mubr.f32.gmra.mrb[0].mxu0 %v2917
        %v2995 = vpop.f32.mrb[0].mxu0
        %v2996 = vadd.f32 0.0, %v2995
        %v2997 = vpop.f32.mrb[0].mxu0
        %2998 = vmatprep.mubr.f32.mxu0 0.0
        %2999 = vmatmul.mubr.f32.gmra.mrb[0].mxu0 %v2920
        %v3000 = vpop.f32.mrb[0].mxu0
        %v3001 = vadd.f32 0.0, %v3000
        %v3002 = vpop.f32.mrb[0].mxu0
        %3003 = vdwg.mxu0
        %v3004 = vadd.f32 %v2898, %v2991
        %v3005 = vadd.f32 %v2899, %v2996
        %v3006 = vadd.f32 %v2900, %v3001
        %s3007 = scalar_lea.vmem %s5, 480
        %v3008 = vld [vmem:[%s3007] sm:$0xff]
        %v3009 = vld [vmem:[%s3007 + $0x8] sm:$0xff]
        %v3010 = vld [vmem:[%s3007 + $0x10] sm:$0xf]
        %3011 = vrot.lane.b32.xlu0 %v891, 64
        %v3012 = vpop.permute.xlu0 %3011
        %3013 = vrot.lane.b32.xlu0 %v897, 64
        %v3014 = vpop.permute.xlu0 %3013
        %3015 = vrot.lane.b32.xlu0 %v903, 64
        %v3016 = vpop.permute.xlu0 %3015
        %v3020 = vsel %vm925, %v3008, 0
        %v3023 = vsel %vm925, %v3009, 0
        %v3026 = vsel %vm925, %v3010, 0
        %v3028 = vsel %vm935, %v3016, 0
        %3030 = vmatprep.subr.mxu0 0.0
        %3031 = vmatpush1.msra.mxu0 %v3012
        %3032 = vmatprep.subr.mxu0 0.0
        %3033 = vmatpush1.msra.mxu0 %v3014
        %3034 = vmatprep.subr.mxu0 0.0
        %3035 = vmatpush1.msra.mxu0 %v3028
        %3036 = vmatprep.subr.mxu0 0.0
        %3037 = vmatpush1.msra.mxu0 0.0
        %3038 = vmatprep.subr.mxu0 0.0
        %3039 = vmatpush1.msra.mxu0 0.0
        %3040 = vmatprep.subr.mxu0 0.0
        %3041 = vmatpush1.msra.mxu0 0.0
        %3042 = vmatprep.subr.mxu0 0.0
        %3043 = vmatpush1.msra.mxu0 0.0
        %3044 = vmatprep.subr.mxu0 0.0
        %3045 = vmatpush1.msra.mxu0 0.0
        %3046 = vmatprep.subr.mxu0 0.0
        %3047 = vmatpush1.msra.mxu0 0.0
        %3048 = vmatprep.subr.mxu0 0.0
        %3049 = vmatpush1.msra.mxu0 0.0
        %3050 = vmatprep.subr.mxu0 0.0
        %3051 = vmatpush1.msra.mxu0 0.0
        %3052 = vmatprep.subr.mxu0 0.0
        %3053 = vmatpush1.msra.mxu0 0.0
        %3054 = vmatprep.subr.mxu0 0.0
        %3055 = vmatpush1.msra.mxu0 0.0
        %3056 = vmatprep.subr.mxu0 0.0
        %3057 = vmatpush1.msra.mxu0 0.0
        %3058 = vmatprep.subr.mxu0 0.0
        %3059 = vmatpush1.msra.mxu0 0.0
        %3060 = vmatprep.subr.mxu0 0.0
        %3061 = vmatpush1.msra.mxu0 0.0
        %3062 = vmatprep.subr.mxu0 0.0
        %3063 = vmatpush1.msra.mxu0 0.0
        %3064 = vmatprep.subr.mxu0 0.0
        %3065 = vmatpush1.msra.mxu0 0.0
        %3066 = vmatprep.subr.mxu0 0.0
        %3067 = vmatpush1.msra.mxu0 0.0
        %3068 = vmatprep.subr.mxu0 0.0
        %3069 = vmatpush1.msra.mxu0 0.0
        %3070 = vmatprep.subr.mxu0 0.0
        %3071 = vmatpush1.msra.mxu0 0.0
        %3072 = vmatprep.subr.mxu0 0.0
        %3073 = vmatpush1.msra.mxu0 0.0
        %3074 = vmatprep.subr.mxu0 0.0
        %3075 = vmatpush1.msra.mxu0 0.0
        %3076 = vmatprep.subr.mxu0 0.0
        %3077 = vmatpush1.msra.mxu0 0.0
        %3078 = vmatprep.subr.mxu0 0.0
        %3079 = vmatpush1.msra.mxu0 0.0
        %3080 = vmatprep.subr.mxu0 0.0
        %3081 = vmatpush1.msra.mxu0 0.0
        %3082 = vmatprep.subr.mxu0 0.0
        %3083 = vmatpush1.msra.mxu0 0.0
        %3084 = vmatprep.subr.mxu0 0.0
        %3085 = vmatpush1.msra.mxu0 0.0
        %3086 = vmatprep.subr.mxu0 0.0
        %3087 = vmatpush1.msra.mxu0 0.0
        %3088 = vmatprep.subr.mxu0 0.0
        %3089 = vmatpush1.msra.mxu0 0.0
        %3090 = vmatprep.subr.mxu0 0.0
        %3091 = vmatpush1.msra.mxu0 0.0
        %3092 = vmatprep.subr.mxu0 0.0
        %3093 = vmatpush1.msra.mxu0 0.0
        %3094 = vmatprep.mubr.f32.mxu0 0.0
        %3095 = vmatmul.mubr.f32.gmra.mrb[0].mxu0 %v3020
        %v3096 = vpop.f32.mrb[0].mxu0
        %v3097 = vadd.f32 0.0, %v3096
        %v3098 = vpop.f32.mrb[0].mxu0
        %3099 = vmatprep.mubr.f32.mxu0 0.0
        %3100 = vmatmul.mubr.f32.gmra.mrb[0].mxu0 %v3023
        %v3101 = vpop.f32.mrb[0].mxu0
        %v3102 = vadd.f32 0.0, %v3101
        %v3103 = vpop.f32.mrb[0].mxu0
        %3104 = vmatprep.mubr.f32.mxu0 0.0
        %3105 = vmatmul.mubr.f32.gmra.mrb[0].mxu0 %v3026
        %v3106 = vpop.f32.mrb[0].mxu0
        %v3107 = vadd.f32 0.0, %v3106
        %v3108 = vpop.f32.mrb[0].mxu0
        %3109 = vdwg.mxu0
        %v3110 = vadd.f32 %v3004, %v3097
        %v3111 = vadd.f32 %v3005, %v3102
        %v3112 = vadd.f32 %v3006, %v3107
        %s3113 = scalar_lea.vmem %s5, 504
        %v3114 = vld [vmem:[%s3113] sm:$0xff]
        %v3115 = vld [vmem:[%s3113 + $0x8] sm:$0xff]
        %v3116 = vld [vmem:[%s3113 + $0x10] sm:$0xf]
        %3117 = vrot.lane.b32.xlu0 %v891, 48
        %v3118 = vpop.permute.xlu0 %3117
        %3119 = vrot.lane.b32.xlu0 %v897, 48
        %v3120 = vpop.permute.xlu0 %3119
        %3121 = vrot.lane.b32.xlu0 %v903, 48
        %v3122 = vpop.permute.xlu0 %3121
        %v3126 = vsel %vm925, %v3114, 0
        %v3129 = vsel %vm925, %v3115, 0
        %v3132 = vsel %vm925, %v3116, 0
        %v3134 = vsel %vm935, %v3122, 0
        %3136 = vmatprep.subr.mxu0 0.0
        %3137 = vmatpush1.msra.mxu0 %v3118
        %3138 = vmatprep.subr.mxu0 0.0
        %3139 = vmatpush1.msra.mxu0 %v3120
        %3140 = vmatprep.subr.mxu0 0.0
        %3141 = vmatpush1.msra.mxu0 %v3134
        %3142 = vmatprep.subr.mxu0 0.0
        %3143 = vmatpush1.msra.mxu0 0.0
        %3144 = vmatprep.subr.mxu0 0.0
        %3145 = vmatpush1.msra.mxu0 0.0
        %3146 = vmatprep.subr.mxu0 0.0
        %3147 = vmatpush1.msra.mxu0 0.0
        %3148 = vmatprep.subr.mxu0 0.0
        %3149 = vmatpush1.msra.mxu0 0.0
        %3150 = vmatprep.subr.mxu0 0.0
        %3151 = vmatpush1.msra.mxu0 0.0
        %3152 = vmatprep.subr.mxu0 0.0
        %3153 = vmatpush1.msra.mxu0 0.0
        %3154 = vmatprep.subr.mxu0 0.0
        %3155 = vmatpush1.msra.mxu0 0.0
        %3156 = vmatprep.subr.mxu0 0.0
        %3157 = vmatpush1.msra.mxu0 0.0
        %3158 = vmatprep.subr.mxu0 0.0
        %3159 = vmatpush1.msra.mxu0 0.0
        %3160 = vmatprep.subr.mxu0 0.0
        %3161 = vmatpush1.msra.mxu0 0.0
        %3162 = vmatprep.subr.mxu0 0.0
        %3163 = vmatpush1.msra.mxu0 0.0
        %3164 = vmatprep.subr.mxu0 0.0
        %3165 = vmatpush1.msra.mxu0 0.0
        %3166 = vmatprep.subr.mxu0 0.0
        %3167 = vmatpush1.msra.mxu0 0.0
        %3168 = vmatprep.subr.mxu0 0.0
        %3169 = vmatpush1.msra.mxu0 0.0
        %3170 = vmatprep.subr.mxu0 0.0
        %3171 = vmatpush1.msra.mxu0 0.0
        %3172 = vmatprep.subr.mxu0 0.0
        %3173 = vmatpush1.msra.mxu0 0.0
        %3174 = vmatprep.subr.mxu0 0.0
        %3175 = vmatpush1.msra.mxu0 0.0
        %3176 = vmatprep.subr.mxu0 0.0
        %3177 = vmatpush1.msra.mxu0 0.0
        %3178 = vmatprep.subr.mxu0 0.0
        %3179 = vmatpush1.msra.mxu0 0.0
        %3180 = vmatprep.subr.mxu0 0.0
        %3181 = vmatpush1.msra.mxu0 0.0
        %3182 = vmatprep.subr.mxu0 0.0
        %3183 = vmatpush1.msra.mxu0 0.0
        %3184 = vmatprep.subr.mxu0 0.0
        %3185 = vmatpush1.msra.mxu0 0.0
        %3186 = vmatprep.subr.mxu0 0.0
        %3187 = vmatpush1.msra.mxu0 0.0
        %3188 = vmatprep.subr.mxu0 0.0
        %3189 = vmatpush1.msra.mxu0 0.0
        %3190 = vmatprep.subr.mxu0 0.0
        %3191 = vmatpush1.msra.mxu0 0.0
        %3192 = vmatprep.subr.mxu0 0.0
        %3193 = vmatpush1.msra.mxu0 0.0
        %3194 = vmatprep.subr.mxu0 0.0
        %3195 = vmatpush1.msra.mxu0 0.0
        %3196 = vmatprep.subr.mxu0 0.0
        %3197 = vmatpush1.msra.mxu0 0.0
        %3198 = vmatprep.subr.mxu0 0.0
        %3199 = vmatpush1.msra.mxu0 0.0
        %3200 = vmatprep.mubr.f32.mxu0 0.0
        %3201 = vmatmul.mubr.f32.gmra.mrb[0].mxu0 %v3126
        %v3202 = vpop.f32.mrb[0].mxu0
        %v3203 = vadd.f32 0.0, %v3202
        %v3204 = vpop.f32.mrb[0].mxu0
        %3205 = vmatprep.mubr.f32.mxu0 0.0
        %3206 = vmatmul.mubr.f32.gmra.mrb[0].mxu0 %v3129
        %v3207 = vpop.f32.mrb[0].mxu0
        %v3208 = vadd.f32 0.0, %v3207
        %v3209 = vpop.f32.mrb[0].mxu0
        %3210 = vmatprep.mubr.f32.mxu0 0.0
        %3211 = vmatmul.mubr.f32.gmra.mrb[0].mxu0 %v3132
        %v3212 = vpop.f32.mrb[0].mxu0
        %v3213 = vadd.f32 0.0, %v3212
        %v3214 = vpop.f32.mrb[0].mxu0
        %3215 = vdwg.mxu0
        %v3216 = vadd.f32 %v3110, %v3203
        %v3217 = vadd.f32 %v3111, %v3208
        %v3218 = vadd.f32 %v3112, %v3213
        %s3219 = scalar_lea.vmem %s5, 528
        %v3220 = vld [vmem:[%s3219] sm:$0xff]
        %v3221 = vld [vmem:[%s3219 + $0x8] sm:$0xff]
        %v3222 = vld [vmem:[%s3219 + $0x10] sm:$0xf]
        %3223 = vrot.lane.b32.xlu0 %v891, 32
        %v3224 = vpop.permute.xlu0 %3223
        %3225 = vrot.lane.b32.xlu0 %v897, 32
        %v3226 = vpop.permute.xlu0 %3225
        %3227 = vrot.lane.b32.xlu0 %v903, 32
        %v3228 = vpop.permute.xlu0 %3227
        %v3232 = vsel %vm925, %v3220, 0
        %v3235 = vsel %vm925, %v3221, 0
        %v3238 = vsel %vm925, %v3222, 0
        %v3240 = vsel %vm935, %v3228, 0
        %3242 = vmatprep.subr.mxu0 0.0
        %3243 = vmatpush1.msra.mxu0 %v3224
        %3244 = vmatprep.subr.mxu0 0.0
        %3245 = vmatpush1.msra.mxu0 %v3226
        %3246 = vmatprep.subr.mxu0 0.0
        %3247 = vmatpush1.msra.mxu0 %v3240
        %3248 = vmatprep.subr.mxu0 0.0
        %3249 = vmatpush1.msra.mxu0 0.0
        %3250 = vmatprep.subr.mxu0 0.0
        %3251 = vmatpush1.msra.mxu0 0.0
        %3252 = vmatprep.subr.mxu0 0.0
        %3253 = vmatpush1.msra.mxu0 0.0
        %3254 = vmatprep.subr.mxu0 0.0
        %3255 = vmatpush1.msra.mxu0 0.0
        %3256 = vmatprep.subr.mxu0 0.0
        %3257 = vmatpush1.msra.mxu0 0.0
        %3258 = vmatprep.subr.mxu0 0.0
        %3259 = vmatpush1.msra.mxu0 0.0
        %3260 = vmatprep.subr.mxu0 0.0
        %3261 = vmatpush1.msra.mxu0 0.0
        %3262 = vmatprep.subr.mxu0 0.0
        %3263 = vmatpush1.msra.mxu0 0.0
        %3264 = vmatprep.subr.mxu0 0.0
        %3265 = vmatpush1.msra.mxu0 0.0
        %3266 = vmatprep.subr.mxu0 0.0
        %3267 = vmatpush1.msra.mxu0 0.0
        %3268 = vmatprep.subr.mxu0 0.0
        %3269 = vmatpush1.msra.mxu0 0.0
        %3270 = vmatprep.subr.mxu0 0.0
        %3271 = vmatpush1.msra.mxu0 0.0
        %3272 = vmatprep.subr.mxu0 0.0
        %3273 = vmatpush1.msra.mxu0 0.0
        %3274 = vmatprep.subr.mxu0 0.0
        %3275 = vmatpush1.msra.mxu0 0.0
        %3276 = vmatprep.subr.mxu0 0.0
        %3277 = vmatpush1.msra.mxu0 0.0
        %3278 = vmatprep.subr.mxu0 0.0
        %3279 = vmatpush1.msra.mxu0 0.0
        %3280 = vmatprep.subr.mxu0 0.0
        %3281 = vmatpush1.msra.mxu0 0.0
        %3282 = vmatprep.subr.mxu0 0.0
        %3283 = vmatpush1.msra.mxu0 0.0
        %3284 = vmatprep.subr.mxu0 0.0
        %3285 = vmatpush1.msra.mxu0 0.0
        %3286 = vmatprep.subr.mxu0 0.0
        %3287 = vmatpush1.msra.mxu0 0.0
        %3288 = vmatprep.subr.mxu0 0.0
        %3289 = vmatpush1.msra.mxu0 0.0
        %3290 = vmatprep.subr.mxu0 0.0
        %3291 = vmatpush1.msra.mxu0 0.0
        %3292 = vmatprep.subr.mxu0 0.0
        %3293 = vmatpush1.msra.mxu0 0.0
        %3294 = vmatprep.subr.mxu0 0.0
        %3295 = vmatpush1.msra.mxu0 0.0
        %3296 = vmatprep.subr.mxu0 0.0
        %3297 = vmatpush1.msra.mxu0 0.0
        %3298 = vmatprep.subr.mxu0 0.0
        %3299 = vmatpush1.msra.mxu0 0.0
        %3300 = vmatprep.subr.mxu0 0.0
        %3301 = vmatpush1.msra.mxu0 0.0
        %3302 = vmatprep.subr.mxu0 0.0
        %3303 = vmatpush1.msra.mxu0 0.0
        %3304 = vmatprep.subr.mxu0 0.0
        %3305 = vmatpush1.msra.mxu0 0.0
        %3306 = vmatprep.mubr.f32.mxu0 0.0
        %3307 = vmatmul.mubr.f32.gmra.mrb[0].mxu0 %v3232
        %v3308 = vpop.f32.mrb[0].mxu0
        %v3309 = vadd.f32 0.0, %v3308
        %v3310 = vpop.f32.mrb[0].mxu0
        %3311 = vmatprep.mubr.f32.mxu0 0.0
        %3312 = vmatmul.mubr.f32.gmra.mrb[0].mxu0 %v3235
        %v3313 = vpop.f32.mrb[0].mxu0
        %v3314 = vadd.f32 0.0, %v3313
        %v3315 = vpop.f32.mrb[0].mxu0
        %3316 = vmatprep.mubr.f32.mxu0 0.0
        %3317 = vmatmul.mubr.f32.gmra.mrb[0].mxu0 %v3238
        %v3318 = vpop.f32.mrb[0].mxu0
        %v3319 = vadd.f32 0.0, %v3318
        %v3320 = vpop.f32.mrb[0].mxu0
        %3321 = vdwg.mxu0
        %v3322 = vadd.f32 %v3216, %v3309
        %v3323 = vadd.f32 %v3217, %v3314
        %v3324 = vadd.f32 %v3218, %v3319
        %s3325 = scalar_lea.vmem %s5, 552
        %v3326 = vld [vmem:[%s3325] sm:$0xff]
        %v3327 = vld [vmem:[%s3325 + $0x8] sm:$0xff]
        %v3328 = vld [vmem:[%s3325 + $0x10] sm:$0xf]
        %3329 = vrot.lane.b32.xlu0 %v891, 16
        %v3330 = vpop.permute.xlu0 %3329
        %3331 = vrot.lane.b32.xlu0 %v897, 16
        %v3332 = vpop.permute.xlu0 %3331
        %3333 = vrot.lane.b32.xlu0 %v903, 16
        %v3334 = vpop.permute.xlu0 %3333
        %v3338 = vsel %vm925, %v3326, 0
        %v3341 = vsel %vm925, %v3327, 0
        %v3344 = vsel %vm925, %v3328, 0
        %v3346 = vsel %vm935, %v3334, 0
        %3348 = vmatprep.subr.mxu0 0.0
        %3349 = vmatpush1.msra.mxu0 %v3330
        %3350 = vmatprep.subr.mxu0 0.0
        %3351 = vmatpush1.msra.mxu0 %v3332
        %3352 = vmatprep.subr.mxu0 0.0
        %3353 = vmatpush1.msra.mxu0 %v3346
        %3354 = vmatprep.subr.mxu0 0.0
        %3355 = vmatpush1.msra.mxu0 0.0
        %3356 = vmatprep.subr.mxu0 0.0
        %3357 = vmatpush1.msra.mxu0 0.0
        %3358 = vmatprep.subr.mxu0 0.0
        %3359 = vmatpush1.msra.mxu0 0.0
        %3360 = vmatprep.subr.mxu0 0.0
        %3361 = vmatpush1.msra.mxu0 0.0
        %3362 = vmatprep.subr.mxu0 0.0
        %3363 = vmatpush1.msra.mxu0 0.0
        %3364 = vmatprep.subr.mxu0 0.0
        %3365 = vmatpush1.msra.mxu0 0.0
        %3366 = vmatprep.subr.mxu0 0.0
        %3367 = vmatpush1.msra.mxu0 0.0
        %3368 = vmatprep.subr.mxu0 0.0
        %3369 = vmatpush1.msra.mxu0 0.0
        %3370 = vmatprep.subr.mxu0 0.0
        %3371 = vmatpush1.msra.mxu0 0.0
        %3372 = vmatprep.subr.mxu0 0.0
        %3373 = vmatpush1.msra.mxu0 0.0
        %3374 = vmatprep.subr.mxu0 0.0
        %3375 = vmatpush1.msra.mxu0 0.0
        %3376 = vmatprep.subr.mxu0 0.0
        %3377 = vmatpush1.msra.mxu0 0.0
        %3378 = vmatprep.subr.mxu0 0.0
        %3379 = vmatpush1.msra.mxu0 0.0
        %3380 = vmatprep.subr.mxu0 0.0
        %3381 = vmatpush1.msra.mxu0 0.0
        %3382 = vmatprep.subr.mxu0 0.0
        %3383 = vmatpush1.msra.mxu0 0.0
        %3384 = vmatprep.subr.mxu0 0.0
        %3385 = vmatpush1.msra.mxu0 0.0
        %3386 = vmatprep.subr.mxu0 0.0
        %3387 = vmatpush1.msra.mxu0 0.0
        %3388 = vmatprep.subr.mxu0 0.0
        %3389 = vmatpush1.msra.mxu0 0.0
        %3390 = vmatprep.subr.mxu0 0.0
        %3391 = vmatpush1.msra.mxu0 0.0
        %3392 = vmatprep.subr.mxu0 0.0
        %3393 = vmatpush1.msra.mxu0 0.0
        %3394 = vmatprep.subr.mxu0 0.0
        %3395 = vmatpush1.msra.mxu0 0.0
        %3396 = vmatprep.subr.mxu0 0.0
        %3397 = vmatpush1.msra.mxu0 0.0
        %3398 = vmatprep.subr.mxu0 0.0
        %3399 = vmatpush1.msra.mxu0 0.0
        %3400 = vmatprep.subr.mxu0 0.0
        %3401 = vmatpush1.msra.mxu0 0.0
        %3402 = vmatprep.subr.mxu0 0.0
        %3403 = vmatpush1.msra.mxu0 0.0
        %3404 = vmatprep.subr.mxu0 0.0
        %3405 = vmatpush1.msra.mxu0 0.0
        %3406 = vmatprep.subr.mxu0 0.0
        %3407 = vmatpush1.msra.mxu0 0.0
        %3408 = vmatprep.subr.mxu0 0.0
        %3409 = vmatpush1.msra.mxu0 0.0
        %3410 = vmatprep.subr.mxu0 0.0
        %3411 = vmatpush1.msra.mxu0 0.0
        %3412 = vmatprep.mubr.f32.mxu0 0.0
        %3413 = vmatmul.mubr.f32.gmra.mrb[0].mxu0 %v3338
        %v3414 = vpop.f32.mrb[0].mxu0
        %v3415 = vadd.f32 0.0, %v3414
        %v3416 = vpop.f32.mrb[0].mxu0
        %3417 = vmatprep.mubr.f32.mxu0 0.0
        %3418 = vmatmul.mubr.f32.gmra.mrb[0].mxu0 %v3341
        %v3419 = vpop.f32.mrb[0].mxu0
        %v3420 = vadd.f32 0.0, %v3419
        %v3421 = vpop.f32.mrb[0].mxu0
        %3422 = vmatprep.mubr.f32.mxu0 0.0
        %3423 = vmatmul.mubr.f32.gmra.mrb[0].mxu0 %v3344
        %v3424 = vpop.f32.mrb[0].mxu0
        %v3425 = vadd.f32 0.0, %v3424
        %v3426 = vpop.f32.mrb[0].mxu0
        %3427 = vdwg.mxu0
        %v3428 = vadd.f32 %v3322, %v3415
        %v3429 = vadd.f32 %v3323, %v3420
        %v3430 = vadd.f32 %v3324, %v3425
        %s3431 = scalar_lea.vmem %s5, 576
        %v3432 = vld [vmem:[%s3431] sm:$0xff]
        %v3433 = vld [vmem:[%s3431 + $0x8] sm:$0xff]
        %v3434 = vld [vmem:[%s3431 + $0x10] sm:$0xf]
        %v3436 = vsel %vm925, %v3432, 0
        %v3439 = vsel %vm925, %v3433, 0
        %v3442 = vsel %vm925, %v3434, 0
        %v3445 = vsel %vm935, %v905, 0
        %3447 = vmatprep.subr.mxu0 0.0
        %3448 = vmatpush1.msra.mxu0 %v893
        %3449 = vmatprep.subr.mxu0 0.0
        %3450 = vmatpush1.msra.mxu0 %v899
        %3451 = vmatprep.subr.mxu0 0.0
        %3452 = vmatpush1.msra.mxu0 %v3445
        %3453 = vmatprep.subr.mxu0 0.0
        %3454 = vmatpush1.msra.mxu0 0.0
        %3455 = vmatprep.subr.mxu0 0.0
        %3456 = vmatpush1.msra.mxu0 0.0
        %3457 = vmatprep.subr.mxu0 0.0
        %3458 = vmatpush1.msra.mxu0 0.0
        %3459 = vmatprep.subr.mxu0 0.0
        %3460 = vmatpush1.msra.mxu0 0.0
        %3461 = vmatprep.subr.mxu0 0.0
        %3462 = vmatpush1.msra.mxu0 0.0
        %3463 = vmatprep.subr.mxu0 0.0
        %3464 = vmatpush1.msra.mxu0 0.0
        %3465 = vmatprep.subr.mxu0 0.0
        %3466 = vmatpush1.msra.mxu0 0.0
        %3467 = vmatprep.subr.mxu0 0.0
        %3468 = vmatpush1.msra.mxu0 0.0
        %3469 = vmatprep.subr.mxu0 0.0
        %3470 = vmatpush1.msra.mxu0 0.0
        %3471 = vmatprep.subr.mxu0 0.0
        %3472 = vmatpush1.msra.mxu0 0.0
        %3473 = vmatprep.subr.mxu0 0.0
        %3474 = vmatpush1.msra.mxu0 0.0
        %3475 = vmatprep.subr.mxu0 0.0
        %3476 = vmatpush1.msra.mxu0 0.0
        %3477 = vmatprep.subr.mxu0 0.0
        %3478 = vmatpush1.msra.mxu0 0.0
        %3479 = vmatprep.subr.mxu0 0.0
        %3480 = vmatpush1.msra.mxu0 0.0
        %3481 = vmatprep.subr.mxu0 0.0
        %3482 = vmatpush1.msra.mxu0 0.0
        %3483 = vmatprep.subr.mxu0 0.0
        %3484 = vmatpush1.msra.mxu0 0.0
        %3485 = vmatprep.subr.mxu0 0.0
        %3486 = vmatpush1.msra.mxu0 0.0
        %3487 = vmatprep.subr.mxu0 0.0
        %3488 = vmatpush1.msra.mxu0 0.0
        %3489 = vmatprep.subr.mxu0 0.0
        %3490 = vmatpush1.msra.mxu0 0.0
        %3491 = vmatprep.subr.mxu0 0.0
        %3492 = vmatpush1.msra.mxu0 0.0
        %3493 = vmatprep.subr.mxu0 0.0
        %3494 = vmatpush1.msra.mxu0 0.0
        %3495 = vmatprep.subr.mxu0 0.0
        %3496 = vmatpush1.msra.mxu0 0.0
        %3497 = vmatprep.subr.mxu0 0.0
        %3498 = vmatpush1.msra.mxu0 0.0
        %3499 = vmatprep.subr.mxu0 0.0
        %3500 = vmatpush1.msra.mxu0 0.0
        %3501 = vmatprep.subr.mxu0 0.0
        %3502 = vmatpush1.msra.mxu0 0.0
        %3503 = vmatprep.subr.mxu0 0.0
        %3504 = vmatpush1.msra.mxu0 0.0
        %3505 = vmatprep.subr.mxu0 0.0
        %3506 = vmatpush1.msra.mxu0 0.0
        %3507 = vmatprep.subr.mxu0 0.0
        %3508 = vmatpush1.msra.mxu0 0.0
        %3509 = vmatprep.subr.mxu0 0.0
        %3510 = vmatpush1.msra.mxu0 0.0
        %3511 = vmatprep.mubr.f32.mxu0 0.0
        %3512 = vmatmul.mubr.f32.gmra.mrb[0].mxu0 %v3436
        %v3513 = vpop.f32.mrb[0].mxu0
        %v3514 = vadd.f32 0.0, %v3513
        %v3515 = vpop.f32.mrb[0].mxu0
        %3516 = vmatprep.mubr.f32.mxu0 0.0
        %3517 = vmatmul.mubr.f32.gmra.mrb[0].mxu0 %v3439
        %v3518 = vpop.f32.mrb[0].mxu0
        %v3519 = vadd.f32 0.0, %v3518
        %v3520 = vpop.f32.mrb[0].mxu0
        %3521 = vmatprep.mubr.f32.mxu0 0.0
        %3522 = vmatmul.mubr.f32.gmra.mrb[0].mxu0 %v3442
        %v3523 = vpop.f32.mrb[0].mxu0
        %v3524 = vadd.f32 0.0, %v3523
        %v3525 = vpop.f32.mrb[0].mxu0
        %3526 = vdwg.mxu0
        %v3527 = vadd.f32 %v3428, %v3514
        %v3528 = vadd.f32 %v3429, %v3519
        %v3529 = vadd.f32 %v3430, %v3524
        %v3530 = vld [vmem:[%s6] sm:$0xff]
        %v3531 = vld [vmem:[%s6 + $0x8] sm:$0xff]
        %v3532 = vld [vmem:[%s6 + $0x10] sm:$0xf]
        %3534 = vset.pattern.permute.xlu0 0
        %3535 = vperm.xlu0 %3534, %v3530
        %v3536 = vpop.permute.xlu0 %3535
        %3539 = vset.pattern.permute.xlu0 0
        %3540 = vperm.xlu0 %3539, %v3531
        %v3541 = vpop.permute.xlu0 %3540
        %3544 = vset.pattern.permute.xlu0 0
        %3545 = vperm.xlu0 %3544, %v3532
        %v3546 = vpop.permute.xlu0 %3545
        %v3548 = vadd.f32 %v3527, %v3536
        %v3549 = vadd.f32 %v3528, %v3541
        %v3550 = vadd.f32 %v3529, %v3546
        %v3551 = vmax.f32 %v3548, 0.0
        %v3552 = vmax.f32 %v3549, 0.0
        %v3553 = vmax.f32 %v3550, 0.0
        %v3554 = vld [vmem:[%s8] sm:$0x1]
        %v3555 = vld [vmem:[%s7] sm:$0xff]
        %v3556 = vld [vmem:[%s7 + $0x8] sm:$0xff]
        %vm3557 = vcmask 130048
        %v3559 = vsel %vm3557, %v3551, 0
        %3561 = vmatprep.subr.mxu0 0.0
        %3562 = vmatpush1.msra.mxu0 %v3555
        %3563 = vmatprep.subr.mxu0 0.0
        %3564 = vmatpush1.msra.mxu0 %v3556
        %3565 = vmatprep.subr.mxu0 0.0
        %3566 = vmatpush1.msra.mxu0 0.0
        %3567 = vmatprep.subr.mxu0 0.0
        %3568 = vmatpush1.msra.mxu0 0.0
        %3569 = vmatprep.subr.mxu0 0.0
        %3570 = vmatpush1.msra.mxu0 0.0
        %3571 = vmatprep.subr.mxu0 0.0
        %3572 = vmatpush1.msra.mxu0 0.0
        %3573 = vmatprep.subr.mxu0 0.0
        %3574 = vmatpush1.msra.mxu0 0.0
        %3575 = vmatprep.subr.mxu0 0.0
        %3576 = vmatpush1.msra.mxu0 0.0
        %3577 = vmatprep.subr.mxu0 0.0
        %3578 = vmatpush1.msra.mxu0 0.0
        %3579 = vmatprep.subr.mxu0 0.0
        %3580 = vmatpush1.msra.mxu0 0.0
        %3581 = vmatprep.subr.mxu0 0.0
        %3582 = vmatpush1.msra.mxu0 0.0
        %3583 = vmatprep.subr.mxu0 0.0
        %3584 = vmatpush1.msra.mxu0 0.0
        %3585 = vmatprep.subr.mxu0 0.0
        %3586 = vmatpush1.msra.mxu0 0.0
        %3587 = vmatprep.subr.mxu0 0.0
        %3588 = vmatpush1.msra.mxu0 0.0
        %3589 = vmatprep.subr.mxu0 0.0
        %3590 = vmatpush1.msra.mxu0 0.0
        %3591 = vmatprep.subr.mxu0 0.0
        %3592 = vmatpush1.msra.mxu0 0.0
        %3593 = vmatprep.subr.mxu0 0.0
        %3594 = vmatpush1.msra.mxu0 0.0
        %3595 = vmatprep.subr.mxu0 0.0
        %3596 = vmatpush1.msra.mxu0 0.0
        %3597 = vmatprep.subr.mxu0 0.0
        %3598 = vmatpush1.msra.mxu0 0.0
        %3599 = vmatprep.subr.mxu0 0.0
        %3600 = vmatpush1.msra.mxu0 0.0
        %3601 = vmatprep.subr.mxu0 0.0
        %3602 = vmatpush1.msra.mxu0 0.0
        %3603 = vmatprep.subr.mxu0 0.0
        %3604 = vmatpush1.msra.mxu0 0.0
        %3605 = vmatprep.subr.mxu0 0.0
        %3606 = vmatpush1.msra.mxu0 0.0
        %3607 = vmatprep.subr.mxu0 0.0
        %3608 = vmatpush1.msra.mxu0 0.0
        %3609 = vmatprep.subr.mxu0 0.0
        %3610 = vmatpush1.msra.mxu0 0.0
        %3611 = vmatprep.subr.mxu0 0.0
        %3612 = vmatpush1.msra.mxu0 0.0
        %3613 = vmatprep.subr.mxu0 0.0
        %3614 = vmatpush1.msra.mxu0 0.0
        %3615 = vmatprep.subr.mxu0 0.0
        %3616 = vmatpush1.msra.mxu0 0.0
        %3617 = vmatprep.subr.mxu0 0.0
        %3618 = vmatpush1.msra.mxu0 0.0
        %3619 = vmatprep.subr.mxu0 0.0
        %3620 = vmatpush1.msra.mxu0 0.0
        %3621 = vmatprep.subr.mxu0 0.0
        %3622 = vmatpush1.msra.mxu0 0.0
        %3623 = vmatprep.subr.mxu0 0.0
        %3624 = vmatpush1.msra.mxu0 0.0
        %3625 = vmatprep.mubr.f32.mxu0 0.0
        %3626 = vmatmul.mubr.f32.gmra.mrb[0].mxu0 %v3559
        %v3627 = vpop.f32.mrb[0].mxu0
        %v3628 = vadd.f32 0.0, %v3627
        %v3629 = vpop.f32.mrb[0].mxu0
        %3630 = vdwg.mxu0
        %v3631 = vadd.f32 %v3554, %v3628
        %s3632 = scalar_lea.vmem %s7, 16
        %v3633 = vld [vmem:[%s3632] sm:$0xff]
        %v3634 = vld [vmem:[%s3632 + $0x8] sm:$0xff]
        %v3635 = vrot.slane %v3551, 1
        %v3636 = vsel %vm3557, %v3635, 0
        %3638 = vmatprep.subr.mxu0 0.0
        %3639 = vmatpush1.msra.mxu0 %v3633
        %3640 = vmatprep.subr.mxu0 0.0
        %3641 = vmatpush1.msra.mxu0 %v3634
        %3642 = vmatprep.subr.mxu0 0.0
        %3643 = vmatpush1.msra.mxu0 0.0
        %3644 = vmatprep.subr.mxu0 0.0
        %3645 = vmatpush1.msra.mxu0 0.0
        %3646 = vmatprep.subr.mxu0 0.0
        %3647 = vmatpush1.msra.mxu0 0.0
        %3648 = vmatprep.subr.mxu0 0.0
        %3649 = vmatpush1.msra.mxu0 0.0
        %3650 = vmatprep.subr.mxu0 0.0
        %3651 = vmatpush1.msra.mxu0 0.0
        %3652 = vmatprep.subr.mxu0 0.0
        %3653 = vmatpush1.msra.mxu0 0.0
        %3654 = vmatprep.subr.mxu0 0.0
        %3655 = vmatpush1.msra.mxu0 0.0
        %3656 = vmatprep.subr.mxu0 0.0
        %3657 = vmatpush1.msra.mxu0 0.0
        %3658 = vmatprep.subr.mxu0 0.0
        %3659 = vmatpush1.msra.mxu0 0.0
        %3660 = vmatprep.subr.mxu0 0.0
        %3661 = vmatpush1.msra.mxu0 0.0
        %3662 = vmatprep.subr.mxu0 0.0
        %3663 = vmatpush1.msra.mxu0 0.0
        %3664 = vmatprep.subr.mxu0 0.0
        %3665 = vmatpush1.msra.mxu0 0.0
        %3666 = vmatprep.subr.mxu0 0.0
        %3667 = vmatpush1.msra.mxu0 0.0
        %3668 = vmatprep.subr.mxu0 0.0
        %3669 = vmatpush1.msra.mxu0 0.0
        %3670 = vmatprep.subr.mxu0 0.0
        %3671 = vmatpush1.msra.mxu0 0.0
        %3672 = vmatprep.subr.mxu0 0.0
        %3673 = vmatpush1.msra.mxu0 0.0
        %3674 = vmatprep.subr.mxu0 0.0
        %3675 = vmatpush1.msra.mxu0 0.0
        %3676 = vmatprep.subr.mxu0 0.0
        %3677 = vmatpush1.msra.mxu0 0.0
        %3678 = vmatprep.subr.mxu0 0.0
        %3679 = vmatpush1.msra.mxu0 0.0
        %3680 = vmatprep.subr.mxu0 0.0
        %3681 = vmatpush1.msra.mxu0 0.0
        %3682 = vmatprep.subr.mxu0 0.0
        %3683 = vmatpush1.msra.mxu0 0.0
        %3684 = vmatprep.subr.mxu0 0.0
        %3685 = vmatpush1.msra.mxu0 0.0
        %3686 = vmatprep.subr.mxu0 0.0
        %3687 = vmatpush1.msra.mxu0 0.0
        %3688 = vmatprep.subr.mxu0 0.0
        %3689 = vmatpush1.msra.mxu0 0.0
        %3690 = vmatprep.subr.mxu0 0.0
        %3691 = vmatpush1.msra.mxu0 0.0
        %3692 = vmatprep.subr.mxu0 0.0
        %3693 = vmatpush1.msra.mxu0 0.0
        %3694 = vmatprep.subr.mxu0 0.0
        %3695 = vmatpush1.msra.mxu0 0.0
        %3696 = vmatprep.subr.mxu0 0.0
        %3697 = vmatpush1.msra.mxu0 0.0
        %3698 = vmatprep.subr.mxu0 0.0
        %3699 = vmatpush1.msra.mxu0 0.0
        %3700 = vmatprep.subr.mxu0 0.0
        %3701 = vmatpush1.msra.mxu0 0.0
        %3702 = vmatprep.mubr.f32.mxu0 0.0
        %3703 = vmatmul.mubr.f32.gmra.mrb[0].mxu0 %v3636
        %v3704 = vpop.f32.mrb[0].mxu0
        %v3705 = vadd.f32 0.0, %v3704
        %v3706 = vpop.f32.mrb[0].mxu0
        %3707 = vdwg.mxu0
        %v3708 = vadd.f32 %v3631, %v3705
        %s3709 = scalar_lea.vmem %s7, 32
        %v3710 = vld [vmem:[%s3709] sm:$0xff]
        %v3711 = vld [vmem:[%s3709 + $0x8] sm:$0xff]
        %v3712 = vrot.slane %v3551, 2
        %v3713 = vsel %vm3557, %v3712, 0
        %3715 = vmatprep.subr.mxu0 0.0
        %3716 = vmatpush1.msra.mxu0 %v3710
        %3717 = vmatprep.subr.mxu0 0.0
        %3718 = vmatpush1.msra.mxu0 %v3711
        %3719 = vmatprep.subr.mxu0 0.0
        %3720 = vmatpush1.msra.mxu0 0.0
        %3721 = vmatprep.subr.mxu0 0.0
        %3722 = vmatpush1.msra.mxu0 0.0
        %3723 = vmatprep.subr.mxu0 0.0
        %3724 = vmatpush1.msra.mxu0 0.0
        %3725 = vmatprep.subr.mxu0 0.0
        %3726 = vmatpush1.msra.mxu0 0.0
        %3727 = vmatprep.subr.mxu0 0.0
        %3728 = vmatpush1.msra.mxu0 0.0
        %3729 = vmatprep.subr.mxu0 0.0
        %3730 = vmatpush1.msra.mxu0 0.0
        %3731 = vmatprep.subr.mxu0 0.0
        %3732 = vmatpush1.msra.mxu0 0.0
        %3733 = vmatprep.subr.mxu0 0.0
        %3734 = vmatpush1.msra.mxu0 0.0
        %3735 = vmatprep.subr.mxu0 0.0
        %3736 = vmatpush1.msra.mxu0 0.0
        %3737 = vmatprep.subr.mxu0 0.0
        %3738 = vmatpush1.msra.mxu0 0.0
        %3739 = vmatprep.subr.mxu0 0.0
        %3740 = vmatpush1.msra.mxu0 0.0
        %3741 = vmatprep.subr.mxu0 0.0
        %3742 = vmatpush1.msra.mxu0 0.0
        %3743 = vmatprep.subr.mxu0 0.0
        %3744 = vmatpush1.msra.mxu0 0.0
        %3745 = vmatprep.subr.mxu0 0.0
        %3746 = vmatpush1.msra.mxu0 0.0
        %3747 = vmatprep.subr.mxu0 0.0
        %3748 = vmatpush1.msra.mxu0 0.0
        %3749 = vmatprep.subr.mxu0 0.0
        %3750 = vmatpush1.msra.mxu0 0.0
        %3751 = vmatprep.subr.mxu0 0.0
        %3752 = vmatpush1.msra.mxu0 0.0
        %3753 = vmatprep.subr.mxu0 0.0
        %3754 = vmatpush1.msra.mxu0 0.0
        %3755 = vmatprep.subr.mxu0 0.0
        %3756 = vmatpush1.msra.mxu0 0.0
        %3757 = vmatprep.subr.mxu0 0.0
        %3758 = vmatpush1.msra.mxu0 0.0
        %3759 = vmatprep.subr.mxu0 0.0
        %3760 = vmatpush1.msra.mxu0 0.0
        %3761 = vmatprep.subr.mxu0 0.0
        %3762 = vmatpush1.msra.mxu0 0.0
        %3763 = vmatprep.subr.mxu0 0.0
        %3764 = vmatpush1.msra.mxu0 0.0
        %3765 = vmatprep.subr.mxu0 0.0
        %3766 = vmatpush1.msra.mxu0 0.0
        %3767 = vmatprep.subr.mxu0 0.0
        %3768 = vmatpush1.msra.mxu0 0.0
        %3769 = vmatprep.subr.mxu0 0.0
        %3770 = vmatpush1.msra.mxu0 0.0
        %3771 = vmatprep.subr.mxu0 0.0
        %3772 = vmatpush1.msra.mxu0 0.0
        %3773 = vmatprep.subr.mxu0 0.0
        %3774 = vmatpush1.msra.mxu0 0.0
        %3775 = vmatprep.subr.mxu0 0.0
        %3776 = vmatpush1.msra.mxu0 0.0
        %3777 = vmatprep.subr.mxu0 0.0
        %3778 = vmatpush1.msra.mxu0 0.0
        %3779 = vmatprep.mubr.f32.mxu0 0.0
        %3780 = vmatmul.mubr.f32.gmra.mrb[0].mxu0 %v3713
        %v3781 = vpop.f32.mrb[0].mxu0
        %v3782 = vadd.f32 0.0, %v3781
        %v3783 = vpop.f32.mrb[0].mxu0
        %3784 = vdwg.mxu0
        %v3785 = vadd.f32 %v3708, %v3782
        %s3786 = scalar_lea.vmem %s7, 48
        %v3787 = vld [vmem:[%s3786] sm:$0xff]
        %v3788 = vld [vmem:[%s3786 + $0x8] sm:$0xff]
        %v3789 = vrot.slane %v3551, 3
        %v3790 = vsel %vm3557, %v3789, 0
        %3792 = vmatprep.subr.mxu0 0.0
        %3793 = vmatpush1.msra.mxu0 %v3787
        %3794 = vmatprep.subr.mxu0 0.0
        %3795 = vmatpush1.msra.mxu0 %v3788
        %3796 = vmatprep.subr.mxu0 0.0
        %3797 = vmatpush1.msra.mxu0 0.0
        %3798 = vmatprep.subr.mxu0 0.0
        %3799 = vmatpush1.msra.mxu0 0.0
        %3800 = vmatprep.subr.mxu0 0.0
        %3801 = vmatpush1.msra.mxu0 0.0
        %3802 = vmatprep.subr.mxu0 0.0
        %3803 = vmatpush1.msra.mxu0 0.0
        %3804 = vmatprep.subr.mxu0 0.0
        %3805 = vmatpush1.msra.mxu0 0.0
        %3806 = vmatprep.subr.mxu0 0.0
        %3807 = vmatpush1.msra.mxu0 0.0
        %3808 = vmatprep.subr.mxu0 0.0
        %3809 = vmatpush1.msra.mxu0 0.0
        %3810 = vmatprep.subr.mxu0 0.0
        %3811 = vmatpush1.msra.mxu0 0.0
        %3812 = vmatprep.subr.mxu0 0.0
        %3813 = vmatpush1.msra.mxu0 0.0
        %3814 = vmatprep.subr.mxu0 0.0
        %3815 = vmatpush1.msra.mxu0 0.0
        %3816 = vmatprep.subr.mxu0 0.0
        %3817 = vmatpush1.msra.mxu0 0.0
        %3818 = vmatprep.subr.mxu0 0.0
        %3819 = vmatpush1.msra.mxu0 0.0
        %3820 = vmatprep.subr.mxu0 0.0
        %3821 = vmatpush1.msra.mxu0 0.0
        %3822 = vmatprep.subr.mxu0 0.0
        %3823 = vmatpush1.msra.mxu0 0.0
        %3824 = vmatprep.subr.mxu0 0.0
        %3825 = vmatpush1.msra.mxu0 0.0
        %3826 = vmatprep.subr.mxu0 0.0
        %3827 = vmatpush1.msra.mxu0 0.0
        %3828 = vmatprep.subr.mxu0 0.0
        %3829 = vmatpush1.msra.mxu0 0.0
        %3830 = vmatprep.subr.mxu0 0.0
        %3831 = vmatpush1.msra.mxu0 0.0
        %3832 = vmatprep.subr.mxu0 0.0
        %3833 = vmatpush1.msra.mxu0 0.0
        %3834 = vmatprep.subr.mxu0 0.0
        %3835 = vmatpush1.msra.mxu0 0.0
        %3836 = vmatprep.subr.mxu0 0.0
        %3837 = vmatpush1.msra.mxu0 0.0
        %3838 = vmatprep.subr.mxu0 0.0
        %3839 = vmatpush1.msra.mxu0 0.0
        %3840 = vmatprep.subr.mxu0 0.0
        %3841 = vmatpush1.msra.mxu0 0.0
        %3842 = vmatprep.subr.mxu0 0.0
        %3843 = vmatpush1.msra.mxu0 0.0
        %3844 = vmatprep.subr.mxu0 0.0
        %3845 = vmatpush1.msra.mxu0 0.0
        %3846 = vmatprep.subr.mxu0 0.0
        %3847 = vmatpush1.msra.mxu0 0.0
        %3848 = vmatprep.subr.mxu0 0.0
        %3849 = vmatpush1.msra.mxu0 0.0
        %3850 = vmatprep.subr.mxu0 0.0
        %3851 = vmatpush1.msra.mxu0 0.0
        %3852 = vmatprep.subr.mxu0 0.0
        %3853 = vmatpush1.msra.mxu0 0.0
        %3854 = vmatprep.subr.mxu0 0.0
        %3855 = vmatpush1.msra.mxu0 0.0
        %3856 = vmatprep.mubr.f32.mxu0 0.0
        %3857 = vmatmul.mubr.f32.gmra.mrb[0].mxu0 %v3790
        %v3858 = vpop.f32.mrb[0].mxu0
        %v3859 = vadd.f32 0.0, %v3858
        %v3860 = vpop.f32.mrb[0].mxu0
        %3861 = vdwg.mxu0
        %v3862 = vadd.f32 %v3785, %v3859
        %s3863 = scalar_lea.vmem %s7, 64
        %v3864 = vld [vmem:[%s3863] sm:$0xff]
        %v3865 = vld [vmem:[%s3863 + $0x8] sm:$0xff]
        %v3866 = vrot.slane %v3551, 4
        %v3867 = vsel %vm3557, %v3866, 0
        %3869 = vmatprep.subr.mxu0 0.0
        %3870 = vmatpush1.msra.mxu0 %v3864
        %3871 = vmatprep.subr.mxu0 0.0
        %3872 = vmatpush1.msra.mxu0 %v3865
        %3873 = vmatprep.subr.mxu0 0.0
        %3874 = vmatpush1.msra.mxu0 0.0
        %3875 = vmatprep.subr.mxu0 0.0
        %3876 = vmatpush1.msra.mxu0 0.0
        %3877 = vmatprep.subr.mxu0 0.0
        %3878 = vmatpush1.msra.mxu0 0.0
        %3879 = vmatprep.subr.mxu0 0.0
        %3880 = vmatpush1.msra.mxu0 0.0
        %3881 = vmatprep.subr.mxu0 0.0
        %3882 = vmatpush1.msra.mxu0 0.0
        %3883 = vmatprep.subr.mxu0 0.0
        %3884 = vmatpush1.msra.mxu0 0.0
        %3885 = vmatprep.subr.mxu0 0.0
        %3886 = vmatpush1.msra.mxu0 0.0
        %3887 = vmatprep.subr.mxu0 0.0
        %3888 = vmatpush1.msra.mxu0 0.0
        %3889 = vmatprep.subr.mxu0 0.0
        %3890 = vmatpush1.msra.mxu0 0.0
        %3891 = vmatprep.subr.mxu0 0.0
        %3892 = vmatpush1.msra.mxu0 0.0
        %3893 = vmatprep.subr.mxu0 0.0
        %3894 = vmatpush1.msra.mxu0 0.0
        %3895 = vmatprep.subr.mxu0 0.0
        %3896 = vmatpush1.msra.mxu0 0.0
        %3897 = vmatprep.subr.mxu0 0.0
        %3898 = vmatpush1.msra.mxu0 0.0
        %3899 = vmatprep.subr.mxu0 0.0
        %3900 = vmatpush1.msra.mxu0 0.0
        %3901 = vmatprep.subr.mxu0 0.0
        %3902 = vmatpush1.msra.mxu0 0.0
        %3903 = vmatprep.subr.mxu0 0.0
        %3904 = vmatpush1.msra.mxu0 0.0
        %3905 = vmatprep.subr.mxu0 0.0
        %3906 = vmatpush1.msra.mxu0 0.0
        %3907 = vmatprep.subr.mxu0 0.0
        %3908 = vmatpush1.msra.mxu0 0.0
        %3909 = vmatprep.subr.mxu0 0.0
        %3910 = vmatpush1.msra.mxu0 0.0
        %3911 = vmatprep.subr.mxu0 0.0
        %3912 = vmatpush1.msra.mxu0 0.0
        %3913 = vmatprep.subr.mxu0 0.0
        %3914 = vmatpush1.msra.mxu0 0.0
        %3915 = vmatprep.subr.mxu0 0.0
        %3916 = vmatpush1.msra.mxu0 0.0
        %3917 = vmatprep.subr.mxu0 0.0
        %3918 = vmatpush1.msra.mxu0 0.0
        %3919 = vmatprep.subr.mxu0 0.0
        %3920 = vmatpush1.msra.mxu0 0.0
        %3921 = vmatprep.subr.mxu0 0.0
        %3922 = vmatpush1.msra.mxu0 0.0
        %3923 = vmatprep.subr.mxu0 0.0
        %3924 = vmatpush1.msra.mxu0 0.0
        %3925 = vmatprep.subr.mxu0 0.0
        %3926 = vmatpush1.msra.mxu0 0.0
        %3927 = vmatprep.subr.mxu0 0.0
        %3928 = vmatpush1.msra.mxu0 0.0
        %3929 = vmatprep.subr.mxu0 0.0
        %3930 = vmatpush1.msra.mxu0 0.0
        %3931 = vmatprep.subr.mxu0 0.0
        %3932 = vmatpush1.msra.mxu0 0.0
        %3933 = vmatprep.mubr.f32.mxu0 0.0
        %3934 = vmatmul.mubr.f32.gmra.mrb[0].mxu0 %v3867
        %v3935 = vpop.f32.mrb[0].mxu0
        %v3936 = vadd.f32 0.0, %v3935
        %v3937 = vpop.f32.mrb[0].mxu0
        %3938 = vdwg.mxu0
        %v3939 = vadd.f32 %v3862, %v3936
        %s3940 = scalar_lea.vmem %s7, 80
        %v3941 = vld [vmem:[%s3940] sm:$0xff]
        %v3942 = vld [vmem:[%s3940 + $0x8] sm:$0xff]
        %v3943 = vrot.slane %v3551, 5
        %v3944 = vsel %vm3557, %v3943, 0
        %3946 = vmatprep.subr.mxu0 0.0
        %3947 = vmatpush1.msra.mxu0 %v3941
        %3948 = vmatprep.subr.mxu0 0.0
        %3949 = vmatpush1.msra.mxu0 %v3942
        %3950 = vmatprep.subr.mxu0 0.0
        %3951 = vmatpush1.msra.mxu0 0.0
        %3952 = vmatprep.subr.mxu0 0.0
        %3953 = vmatpush1.msra.mxu0 0.0
        %3954 = vmatprep.subr.mxu0 0.0
        %3955 = vmatpush1.msra.mxu0 0.0
        %3956 = vmatprep.subr.mxu0 0.0
        %3957 = vmatpush1.msra.mxu0 0.0
        %3958 = vmatprep.subr.mxu0 0.0
        %3959 = vmatpush1.msra.mxu0 0.0
        %3960 = vmatprep.subr.mxu0 0.0
        %3961 = vmatpush1.msra.mxu0 0.0
        %3962 = vmatprep.subr.mxu0 0.0
        %3963 = vmatpush1.msra.mxu0 0.0
        %3964 = vmatprep.subr.mxu0 0.0
        %3965 = vmatpush1.msra.mxu0 0.0
        %3966 = vmatprep.subr.mxu0 0.0
        %3967 = vmatpush1.msra.mxu0 0.0
        %3968 = vmatprep.subr.mxu0 0.0
        %3969 = vmatpush1.msra.mxu0 0.0
        %3970 = vmatprep.subr.mxu0 0.0
        %3971 = vmatpush1.msra.mxu0 0.0
        %3972 = vmatprep.subr.mxu0 0.0
        %3973 = vmatpush1.msra.mxu0 0.0
        %3974 = vmatprep.subr.mxu0 0.0
        %3975 = vmatpush1.msra.mxu0 0.0
        %3976 = vmatprep.subr.mxu0 0.0
        %3977 = vmatpush1.msra.mxu0 0.0
        %3978 = vmatprep.subr.mxu0 0.0
        %3979 = vmatpush1.msra.mxu0 0.0
        %3980 = vmatprep.subr.mxu0 0.0
        %3981 = vmatpush1.msra.mxu0 0.0
        %3982 = vmatprep.subr.mxu0 0.0
        %3983 = vmatpush1.msra.mxu0 0.0
        %3984 = vmatprep.subr.mxu0 0.0
        %3985 = vmatpush1.msra.mxu0 0.0
        %3986 = vmatprep.subr.mxu0 0.0
        %3987 = vmatpush1.msra.mxu0 0.0
        %3988 = vmatprep.subr.mxu0 0.0
        %3989 = vmatpush1.msra.mxu0 0.0
        %3990 = vmatprep.subr.mxu0 0.0
        %3991 = vmatpush1.msra.mxu0 0.0
        %3992 = vmatprep.subr.mxu0 0.0
        %3993 = vmatpush1.msra.mxu0 0.0
        %3994 = vmatprep.subr.mxu0 0.0
        %3995 = vmatpush1.msra.mxu0 0.0
        %3996 = vmatprep.subr.mxu0 0.0
        %3997 = vmatpush1.msra.mxu0 0.0
        %3998 = vmatprep.subr.mxu0 0.0
        %3999 = vmatpush1.msra.mxu0 0.0
        %4000 = vmatprep.subr.mxu0 0.0
        %4001 = vmatpush1.msra.mxu0 0.0
        %4002 = vmatprep.subr.mxu0 0.0
        %4003 = vmatpush1.msra.mxu0 0.0
        %4004 = vmatprep.subr.mxu0 0.0
        %4005 = vmatpush1.msra.mxu0 0.0
        %4006 = vmatprep.subr.mxu0 0.0
        %4007 = vmatpush1.msra.mxu0 0.0
        %4008 = vmatprep.subr.mxu0 0.0
        %4009 = vmatpush1.msra.mxu0 0.0
        %4010 = vmatprep.mubr.f32.mxu0 0.0
        %4011 = vmatmul.mubr.f32.gmra.mrb[0].mxu0 %v3944
        %v4012 = vpop.f32.mrb[0].mxu0
        %v4013 = vadd.f32 0.0, %v4012
        %v4014 = vpop.f32.mrb[0].mxu0
        %4015 = vdwg.mxu0
        %v4016 = vadd.f32 %v3939, %v4013
        %s4017 = scalar_lea.vmem %s7, 96
        %v4018 = vld [vmem:[%s4017] sm:$0xff]
        %v4019 = vld [vmem:[%s4017 + $0x8] sm:$0xff]
        %v4020 = vrot.slane %v3551, 6
        %v4021 = vsel %vm3557, %v4020, 0
        %4023 = vmatprep.subr.mxu0 0.0
        %4024 = vmatpush1.msra.mxu0 %v4018
        %4025 = vmatprep.subr.mxu0 0.0
        %4026 = vmatpush1.msra.mxu0 %v4019
        %4027 = vmatprep.subr.mxu0 0.0
        %4028 = vmatpush1.msra.mxu0 0.0
        %4029 = vmatprep.subr.mxu0 0.0
        %4030 = vmatpush1.msra.mxu0 0.0
        %4031 = vmatprep.subr.mxu0 0.0
        %4032 = vmatpush1.msra.mxu0 0.0
        %4033 = vmatprep.subr.mxu0 0.0
        %4034 = vmatpush1.msra.mxu0 0.0
        %4035 = vmatprep.subr.mxu0 0.0
        %4036 = vmatpush1.msra.mxu0 0.0
        %4037 = vmatprep.subr.mxu0 0.0
        %4038 = vmatpush1.msra.mxu0 0.0
        %4039 = vmatprep.subr.mxu0 0.0
        %4040 = vmatpush1.msra.mxu0 0.0
        %4041 = vmatprep.subr.mxu0 0.0
        %4042 = vmatpush1.msra.mxu0 0.0
        %4043 = vmatprep.subr.mxu0 0.0
        %4044 = vmatpush1.msra.mxu0 0.0
        %4045 = vmatprep.subr.mxu0 0.0
        %4046 = vmatpush1.msra.mxu0 0.0
        %4047 = vmatprep.subr.mxu0 0.0
        %4048 = vmatpush1.msra.mxu0 0.0
        %4049 = vmatprep.subr.mxu0 0.0
        %4050 = vmatpush1.msra.mxu0 0.0
        %4051 = vmatprep.subr.mxu0 0.0
        %4052 = vmatpush1.msra.mxu0 0.0
        %4053 = vmatprep.subr.mxu0 0.0
        %4054 = vmatpush1.msra.mxu0 0.0
        %4055 = vmatprep.subr.mxu0 0.0
        %4056 = vmatpush1.msra.mxu0 0.0
        %4057 = vmatprep.subr.mxu0 0.0
        %4058 = vmatpush1.msra.mxu0 0.0
        %4059 = vmatprep.subr.mxu0 0.0
        %4060 = vmatpush1.msra.mxu0 0.0
        %4061 = vmatprep.subr.mxu0 0.0
        %4062 = vmatpush1.msra.mxu0 0.0
        %4063 = vmatprep.subr.mxu0 0.0
        %4064 = vmatpush1.msra.mxu0 0.0
        %4065 = vmatprep.subr.mxu0 0.0
        %4066 = vmatpush1.msra.mxu0 0.0
        %4067 = vmatprep.subr.mxu0 0.0
        %4068 = vmatpush1.msra.mxu0 0.0
        %4069 = vmatprep.subr.mxu0 0.0
        %4070 = vmatpush1.msra.mxu0 0.0
        %4071 = vmatprep.subr.mxu0 0.0
        %4072 = vmatpush1.msra.mxu0 0.0
        %4073 = vmatprep.subr.mxu0 0.0
        %4074 = vmatpush1.msra.mxu0 0.0
        %4075 = vmatprep.subr.mxu0 0.0
        %4076 = vmatpush1.msra.mxu0 0.0
        %4077 = vmatprep.subr.mxu0 0.0
        %4078 = vmatpush1.msra.mxu0 0.0
        %4079 = vmatprep.subr.mxu0 0.0
        %4080 = vmatpush1.msra.mxu0 0.0
        %4081 = vmatprep.subr.mxu0 0.0
        %4082 = vmatpush1.msra.mxu0 0.0
        %4083 = vmatprep.subr.mxu0 0.0
        %4084 = vmatpush1.msra.mxu0 0.0
        %4085 = vmatprep.subr.mxu0 0.0
        %4086 = vmatpush1.msra.mxu0 0.0
        %4087 = vmatprep.mubr.f32.mxu0 0.0
        %4088 = vmatmul.mubr.f32.gmra.mrb[0].mxu0 %v4021
        %v4089 = vpop.f32.mrb[0].mxu0
        %v4090 = vadd.f32 0.0, %v4089
        %v4091 = vpop.f32.mrb[0].mxu0
        %4092 = vdwg.mxu0
        %v4093 = vadd.f32 %v4016, %v4090
        %s4094 = scalar_lea.vmem %s7, 112
        %v4095 = vld [vmem:[%s4094] sm:$0xff]
        %v4096 = vld [vmem:[%s4094 + $0x8] sm:$0xff]
        %v4097 = vrot.slane %v3551, 7
        %v4098 = vsel %vm3557, %v4097, 0
        %4100 = vmatprep.subr.mxu0 0.0
        %4101 = vmatpush1.msra.mxu0 %v4095
        %4102 = vmatprep.subr.mxu0 0.0
        %4103 = vmatpush1.msra.mxu0 %v4096
        %4104 = vmatprep.subr.mxu0 0.0
        %4105 = vmatpush1.msra.mxu0 0.0
        %4106 = vmatprep.subr.mxu0 0.0
        %4107 = vmatpush1.msra.mxu0 0.0
        %4108 = vmatprep.subr.mxu0 0.0
        %4109 = vmatpush1.msra.mxu0 0.0
        %4110 = vmatprep.subr.mxu0 0.0
        %4111 = vmatpush1.msra.mxu0 0.0
        %4112 = vmatprep.subr.mxu0 0.0
        %4113 = vmatpush1.msra.mxu0 0.0
        %4114 = vmatprep.subr.mxu0 0.0
        %4115 = vmatpush1.msra.mxu0 0.0
        %4116 = vmatprep.subr.mxu0 0.0
        %4117 = vmatpush1.msra.mxu0 0.0
        %4118 = vmatprep.subr.mxu0 0.0
        %4119 = vmatpush1.msra.mxu0 0.0
        %4120 = vmatprep.subr.mxu0 0.0
        %4121 = vmatpush1.msra.mxu0 0.0
        %4122 = vmatprep.subr.mxu0 0.0
        %4123 = vmatpush1.msra.mxu0 0.0
        %4124 = vmatprep.subr.mxu0 0.0
        %4125 = vmatpush1.msra.mxu0 0.0
        %4126 = vmatprep.subr.mxu0 0.0
        %4127 = vmatpush1.msra.mxu0 0.0
        %4128 = vmatprep.subr.mxu0 0.0
        %4129 = vmatpush1.msra.mxu0 0.0
        %4130 = vmatprep.subr.mxu0 0.0
        %4131 = vmatpush1.msra.mxu0 0.0
        %4132 = vmatprep.subr.mxu0 0.0
        %4133 = vmatpush1.msra.mxu0 0.0
        %4134 = vmatprep.subr.mxu0 0.0
        %4135 = vmatpush1.msra.mxu0 0.0
        %4136 = vmatprep.subr.mxu0 0.0
        %4137 = vmatpush1.msra.mxu0 0.0
        %4138 = vmatprep.subr.mxu0 0.0
        %4139 = vmatpush1.msra.mxu0 0.0
        %4140 = vmatprep.subr.mxu0 0.0
        %4141 = vmatpush1.msra.mxu0 0.0
        %4142 = vmatprep.subr.mxu0 0.0
        %4143 = vmatpush1.msra.mxu0 0.0
        %4144 = vmatprep.subr.mxu0 0.0
        %4145 = vmatpush1.msra.mxu0 0.0
        %4146 = vmatprep.subr.mxu0 0.0
        %4147 = vmatpush1.msra.mxu0 0.0
        %4148 = vmatprep.subr.mxu0 0.0
        %4149 = vmatpush1.msra.mxu0 0.0
        %4150 = vmatprep.subr.mxu0 0.0
        %4151 = vmatpush1.msra.mxu0 0.0
        %4152 = vmatprep.subr.mxu0 0.0
        %4153 = vmatpush1.msra.mxu0 0.0
        %4154 = vmatprep.subr.mxu0 0.0
        %4155 = vmatpush1.msra.mxu0 0.0
        %4156 = vmatprep.subr.mxu0 0.0
        %4157 = vmatpush1.msra.mxu0 0.0
        %4158 = vmatprep.subr.mxu0 0.0
        %4159 = vmatpush1.msra.mxu0 0.0
        %4160 = vmatprep.subr.mxu0 0.0
        %4161 = vmatpush1.msra.mxu0 0.0
        %4162 = vmatprep.subr.mxu0 0.0
        %4163 = vmatpush1.msra.mxu0 0.0
        %4164 = vmatprep.mubr.f32.mxu0 0.0
        %4165 = vmatmul.mubr.f32.gmra.mrb[0].mxu0 %v4098
        %v4166 = vpop.f32.mrb[0].mxu0
        %v4167 = vadd.f32 0.0, %v4166
        %v4168 = vpop.f32.mrb[0].mxu0
        %4169 = vdwg.mxu0
        %v4170 = vadd.f32 %v4093, %v4167
        %s4171 = scalar_lea.vmem %s7, 128
        %v4172 = vld [vmem:[%s4171] sm:$0xff]
        %v4173 = vld [vmem:[%s4171 + $0x8] sm:$0xff]
        %v4175 = vsel %vm3557, %v3552, 0
        %4177 = vmatprep.subr.mxu0 0.0
        %4178 = vmatpush1.msra.mxu0 %v4172
        %4179 = vmatprep.subr.mxu0 0.0
        %4180 = vmatpush1.msra.mxu0 %v4173
        %4181 = vmatprep.subr.mxu0 0.0
        %4182 = vmatpush1.msra.mxu0 0.0
        %4183 = vmatprep.subr.mxu0 0.0
        %4184 = vmatpush1.msra.mxu0 0.0
        %4185 = vmatprep.subr.mxu0 0.0
        %4186 = vmatpush1.msra.mxu0 0.0
        %4187 = vmatprep.subr.mxu0 0.0
        %4188 = vmatpush1.msra.mxu0 0.0
        %4189 = vmatprep.subr.mxu0 0.0
        %4190 = vmatpush1.msra.mxu0 0.0
        %4191 = vmatprep.subr.mxu0 0.0
        %4192 = vmatpush1.msra.mxu0 0.0
        %4193 = vmatprep.subr.mxu0 0.0
        %4194 = vmatpush1.msra.mxu0 0.0
        %4195 = vmatprep.subr.mxu0 0.0
        %4196 = vmatpush1.msra.mxu0 0.0
        %4197 = vmatprep.subr.mxu0 0.0
        %4198 = vmatpush1.msra.mxu0 0.0
        %4199 = vmatprep.subr.mxu0 0.0
        %4200 = vmatpush1.msra.mxu0 0.0
        %4201 = vmatprep.subr.mxu0 0.0
        %4202 = vmatpush1.msra.mxu0 0.0
        %4203 = vmatprep.subr.mxu0 0.0
        %4204 = vmatpush1.msra.mxu0 0.0
        %4205 = vmatprep.subr.mxu0 0.0
        %4206 = vmatpush1.msra.mxu0 0.0
        %4207 = vmatprep.subr.mxu0 0.0
        %4208 = vmatpush1.msra.mxu0 0.0
        %4209 = vmatprep.subr.mxu0 0.0
        %4210 = vmatpush1.msra.mxu0 0.0
        %4211 = vmatprep.subr.mxu0 0.0
        %4212 = vmatpush1.msra.mxu0 0.0
        %4213 = vmatprep.subr.mxu0 0.0
        %4214 = vmatpush1.msra.mxu0 0.0
        %4215 = vmatprep.subr.mxu0 0.0
        %4216 = vmatpush1.msra.mxu0 0.0
        %4217 = vmatprep.subr.mxu0 0.0
        %4218 = vmatpush1.msra.mxu0 0.0
        %4219 = vmatprep.subr.mxu0 0.0
        %4220 = vmatpush1.msra.mxu0 0.0
        %4221 = vmatprep.subr.mxu0 0.0
        %4222 = vmatpush1.msra.mxu0 0.0
        %4223 = vmatprep.subr.mxu0 0.0
        %4224 = vmatpush1.msra.mxu0 0.0
        %4225 = vmatprep.subr.mxu0 0.0
        %4226 = vmatpush1.msra.mxu0 0.0
        %4227 = vmatprep.subr.mxu0 0.0
        %4228 = vmatpush1.msra.mxu0 0.0
        %4229 = vmatprep.subr.mxu0 0.0
        %4230 = vmatpush1.msra.mxu0 0.0
        %4231 = vmatprep.subr.mxu0 0.0
        %4232 = vmatpush1.msra.mxu0 0.0
        %4233 = vmatprep.subr.mxu0 0.0
        %4234 = vmatpush1.msra.mxu0 0.0
        %4235 = vmatprep.subr.mxu0 0.0
        %4236 = vmatpush1.msra.mxu0 0.0
        %4237 = vmatprep.subr.mxu0 0.0
        %4238 = vmatpush1.msra.mxu0 0.0
        %4239 = vmatprep.subr.mxu0 0.0
        %4240 = vmatpush1.msra.mxu0 0.0
        %4241 = vmatprep.mubr.f32.mxu0 0.0
        %4242 = vmatmul.mubr.f32.gmra.mrb[0].mxu0 %v4175
        %v4243 = vpop.f32.mrb[0].mxu0
        %v4244 = vadd.f32 0.0, %v4243
        %v4245 = vpop.f32.mrb[0].mxu0
        %4246 = vdwg.mxu0
        %v4247 = vadd.f32 %v4170, %v4244
        %s4248 = scalar_lea.vmem %s7, 144
        %v4249 = vld [vmem:[%s4248] sm:$0xff]
        %v4250 = vld [vmem:[%s4248 + $0x8] sm:$0xff]
        %v4251 = vrot.slane %v3552, 1
        %v4252 = vsel %vm3557, %v4251, 0
        %4254 = vmatprep.subr.mxu0 0.0
        %4255 = vmatpush1.msra.mxu0 %v4249
        %4256 = vmatprep.subr.mxu0 0.0
        %4257 = vmatpush1.msra.mxu0 %v4250
        %4258 = vmatprep.subr.mxu0 0.0
        %4259 = vmatpush1.msra.mxu0 0.0
        %4260 = vmatprep.subr.mxu0 0.0
        %4261 = vmatpush1.msra.mxu0 0.0
        %4262 = vmatprep.subr.mxu0 0.0
        %4263 = vmatpush1.msra.mxu0 0.0
        %4264 = vmatprep.subr.mxu0 0.0
        %4265 = vmatpush1.msra.mxu0 0.0
        %4266 = vmatprep.subr.mxu0 0.0
        %4267 = vmatpush1.msra.mxu0 0.0
        %4268 = vmatprep.subr.mxu0 0.0
        %4269 = vmatpush1.msra.mxu0 0.0
        %4270 = vmatprep.subr.mxu0 0.0
        %4271 = vmatpush1.msra.mxu0 0.0
        %4272 = vmatprep.subr.mxu0 0.0
        %4273 = vmatpush1.msra.mxu0 0.0
        %4274 = vmatprep.subr.mxu0 0.0
        %4275 = vmatpush1.msra.mxu0 0.0
        %4276 = vmatprep.subr.mxu0 0.0
        %4277 = vmatpush1.msra.mxu0 0.0
        %4278 = vmatprep.subr.mxu0 0.0
        %4279 = vmatpush1.msra.mxu0 0.0
        %4280 = vmatprep.subr.mxu0 0.0
        %4281 = vmatpush1.msra.mxu0 0.0
        %4282 = vmatprep.subr.mxu0 0.0
        %4283 = vmatpush1.msra.mxu0 0.0
        %4284 = vmatprep.subr.mxu0 0.0
        %4285 = vmatpush1.msra.mxu0 0.0
        %4286 = vmatprep.subr.mxu0 0.0
        %4287 = vmatpush1.msra.mxu0 0.0
        %4288 = vmatprep.subr.mxu0 0.0
        %4289 = vmatpush1.msra.mxu0 0.0
        %4290 = vmatprep.subr.mxu0 0.0
        %4291 = vmatpush1.msra.mxu0 0.0
        %4292 = vmatprep.subr.mxu0 0.0
        %4293 = vmatpush1.msra.mxu0 0.0
        %4294 = vmatprep.subr.mxu0 0.0
        %4295 = vmatpush1.msra.mxu0 0.0
        %4296 = vmatprep.subr.mxu0 0.0
        %4297 = vmatpush1.msra.mxu0 0.0
        %4298 = vmatprep.subr.mxu0 0.0
        %4299 = vmatpush1.msra.mxu0 0.0
        %4300 = vmatprep.subr.mxu0 0.0
        %4301 = vmatpush1.msra.mxu0 0.0
        %4302 = vmatprep.subr.mxu0 0.0
        %4303 = vmatpush1.msra.mxu0 0.0
        %4304 = vmatprep.subr.mxu0 0.0
        %4305 = vmatpush1.msra.mxu0 0.0
        %4306 = vmatprep.subr.mxu0 0.0
        %4307 = vmatpush1.msra.mxu0 0.0
        %4308 = vmatprep.subr.mxu0 0.0
        %4309 = vmatpush1.msra.mxu0 0.0
        %4310 = vmatprep.subr.mxu0 0.0
        %4311 = vmatpush1.msra.mxu0 0.0
        %4312 = vmatprep.subr.mxu0 0.0
        %4313 = vmatpush1.msra.mxu0 0.0
        %4314 = vmatprep.subr.mxu0 0.0
        %4315 = vmatpush1.msra.mxu0 0.0
        %4316 = vmatprep.subr.mxu0 0.0
        %4317 = vmatpush1.msra.mxu0 0.0
        %4318 = vmatprep.mubr.f32.mxu0 0.0
        %4319 = vmatmul.mubr.f32.gmra.mrb[0].mxu0 %v4252
        %v4320 = vpop.f32.mrb[0].mxu0
        %v4321 = vadd.f32 0.0, %v4320
        %v4322 = vpop.f32.mrb[0].mxu0
        %4323 = vdwg.mxu0
        %v4324 = vadd.f32 %v4247, %v4321
        %s4325 = scalar_lea.vmem %s7, 160
        %v4326 = vld [vmem:[%s4325] sm:$0xff]
        %v4327 = vld [vmem:[%s4325 + $0x8] sm:$0xff]
        %v4328 = vrot.slane %v3552, 2
        %v4329 = vsel %vm3557, %v4328, 0
        %4331 = vmatprep.subr.mxu0 0.0
        %4332 = vmatpush1.msra.mxu0 %v4326
        %4333 = vmatprep.subr.mxu0 0.0
        %4334 = vmatpush1.msra.mxu0 %v4327
        %4335 = vmatprep.subr.mxu0 0.0
        %4336 = vmatpush1.msra.mxu0 0.0
        %4337 = vmatprep.subr.mxu0 0.0
        %4338 = vmatpush1.msra.mxu0 0.0
        %4339 = vmatprep.subr.mxu0 0.0
        %4340 = vmatpush1.msra.mxu0 0.0
        %4341 = vmatprep.subr.mxu0 0.0
        %4342 = vmatpush1.msra.mxu0 0.0
        %4343 = vmatprep.subr.mxu0 0.0
        %4344 = vmatpush1.msra.mxu0 0.0
        %4345 = vmatprep.subr.mxu0 0.0
        %4346 = vmatpush1.msra.mxu0 0.0
        %4347 = vmatprep.subr.mxu0 0.0
        %4348 = vmatpush1.msra.mxu0 0.0
        %4349 = vmatprep.subr.mxu0 0.0
        %4350 = vmatpush1.msra.mxu0 0.0
        %4351 = vmatprep.subr.mxu0 0.0
        %4352 = vmatpush1.msra.mxu0 0.0
        %4353 = vmatprep.subr.mxu0 0.0
        %4354 = vmatpush1.msra.mxu0 0.0
        %4355 = vmatprep.subr.mxu0 0.0
        %4356 = vmatpush1.msra.mxu0 0.0
        %4357 = vmatprep.subr.mxu0 0.0
        %4358 = vmatpush1.msra.mxu0 0.0
        %4359 = vmatprep.subr.mxu0 0.0
        %4360 = vmatpush1.msra.mxu0 0.0
        %4361 = vmatprep.subr.mxu0 0.0
        %4362 = vmatpush1.msra.mxu0 0.0
        %4363 = vmatprep.subr.mxu0 0.0
        %4364 = vmatpush1.msra.mxu0 0.0
        %4365 = vmatprep.subr.mxu0 0.0
        %4366 = vmatpush1.msra.mxu0 0.0
        %4367 = vmatprep.subr.mxu0 0.0
        %4368 = vmatpush1.msra.mxu0 0.0
        %4369 = vmatprep.subr.mxu0 0.0
        %4370 = vmatpush1.msra.mxu0 0.0
        %4371 = vmatprep.subr.mxu0 0.0
        %4372 = vmatpush1.msra.mxu0 0.0
        %4373 = vmatprep.subr.mxu0 0.0
        %4374 = vmatpush1.msra.mxu0 0.0
        %4375 = vmatprep.subr.mxu0 0.0
        %4376 = vmatpush1.msra.mxu0 0.0
        %4377 = vmatprep.subr.mxu0 0.0
        %4378 = vmatpush1.msra.mxu0 0.0
        %4379 = vmatprep.subr.mxu0 0.0
        %4380 = vmatpush1.msra.mxu0 0.0
        %4381 = vmatprep.subr.mxu0 0.0
        %4382 = vmatpush1.msra.mxu0 0.0
        %4383 = vmatprep.subr.mxu0 0.0
        %4384 = vmatpush1.msra.mxu0 0.0
        %4385 = vmatprep.subr.mxu0 0.0
        %4386 = vmatpush1.msra.mxu0 0.0
        %4387 = vmatprep.subr.mxu0 0.0
        %4388 = vmatpush1.msra.mxu0 0.0
        %4389 = vmatprep.subr.mxu0 0.0
        %4390 = vmatpush1.msra.mxu0 0.0
        %4391 = vmatprep.subr.mxu0 0.0
        %4392 = vmatpush1.msra.mxu0 0.0
        %4393 = vmatprep.subr.mxu0 0.0
        %4394 = vmatpush1.msra.mxu0 0.0
        %4395 = vmatprep.mubr.f32.mxu0 0.0
        %4396 = vmatmul.mubr.f32.gmra.mrb[0].mxu0 %v4329
        %v4397 = vpop.f32.mrb[0].mxu0
        %v4398 = vadd.f32 0.0, %v4397
        %v4399 = vpop.f32.mrb[0].mxu0
        %4400 = vdwg.mxu0
        %v4401 = vadd.f32 %v4324, %v4398
        %s4402 = scalar_lea.vmem %s7, 176
        %v4403 = vld [vmem:[%s4402] sm:$0xff]
        %v4404 = vld [vmem:[%s4402 + $0x8] sm:$0xff]
        %v4405 = vrot.slane %v3552, 3
        %v4406 = vsel %vm3557, %v4405, 0
        %4408 = vmatprep.subr.mxu0 0.0
        %4409 = vmatpush1.msra.mxu0 %v4403
        %4410 = vmatprep.subr.mxu0 0.0
        %4411 = vmatpush1.msra.mxu0 %v4404
        %4412 = vmatprep.subr.mxu0 0.0
        %4413 = vmatpush1.msra.mxu0 0.0
        %4414 = vmatprep.subr.mxu0 0.0
        %4415 = vmatpush1.msra.mxu0 0.0
        %4416 = vmatprep.subr.mxu0 0.0
        %4417 = vmatpush1.msra.mxu0 0.0
        %4418 = vmatprep.subr.mxu0 0.0
        %4419 = vmatpush1.msra.mxu0 0.0
        %4420 = vmatprep.subr.mxu0 0.0
        %4421 = vmatpush1.msra.mxu0 0.0
        %4422 = vmatprep.subr.mxu0 0.0
        %4423 = vmatpush1.msra.mxu0 0.0
        %4424 = vmatprep.subr.mxu0 0.0
        %4425 = vmatpush1.msra.mxu0 0.0
        %4426 = vmatprep.subr.mxu0 0.0
        %4427 = vmatpush1.msra.mxu0 0.0
        %4428 = vmatprep.subr.mxu0 0.0
        %4429 = vmatpush1.msra.mxu0 0.0
        %4430 = vmatprep.subr.mxu0 0.0
        %4431 = vmatpush1.msra.mxu0 0.0
        %4432 = vmatprep.subr.mxu0 0.0
        %4433 = vmatpush1.msra.mxu0 0.0
        %4434 = vmatprep.subr.mxu0 0.0
        %4435 = vmatpush1.msra.mxu0 0.0
        %4436 = vmatprep.subr.mxu0 0.0
        %4437 = vmatpush1.msra.mxu0 0.0
        %4438 = vmatprep.subr.mxu0 0.0
        %4439 = vmatpush1.msra.mxu0 0.0
        %4440 = vmatprep.subr.mxu0 0.0
        %4441 = vmatpush1.msra.mxu0 0.0
        %4442 = vmatprep.subr.mxu0 0.0
        %4443 = vmatpush1.msra.mxu0 0.0
        %4444 = vmatprep.subr.mxu0 0.0
        %4445 = vmatpush1.msra.mxu0 0.0
        %4446 = vmatprep.subr.mxu0 0.0
        %4447 = vmatpush1.msra.mxu0 0.0
        %4448 = vmatprep.subr.mxu0 0.0
        %4449 = vmatpush1.msra.mxu0 0.0
        %4450 = vmatprep.subr.mxu0 0.0
        %4451 = vmatpush1.msra.mxu0 0.0
        %4452 = vmatprep.subr.mxu0 0.0
        %4453 = vmatpush1.msra.mxu0 0.0
        %4454 = vmatprep.subr.mxu0 0.0
        %4455 = vmatpush1.msra.mxu0 0.0
        %4456 = vmatprep.subr.mxu0 0.0
        %4457 = vmatpush1.msra.mxu0 0.0
        %4458 = vmatprep.subr.mxu0 0.0
        %4459 = vmatpush1.msra.mxu0 0.0
        %4460 = vmatprep.subr.mxu0 0.0
        %4461 = vmatpush1.msra.mxu0 0.0
        %4462 = vmatprep.subr.mxu0 0.0
        %4463 = vmatpush1.msra.mxu0 0.0
        %4464 = vmatprep.subr.mxu0 0.0
        %4465 = vmatpush1.msra.mxu0 0.0
        %4466 = vmatprep.subr.mxu0 0.0
        %4467 = vmatpush1.msra.mxu0 0.0
        %4468 = vmatprep.subr.mxu0 0.0
        %4469 = vmatpush1.msra.mxu0 0.0
        %4470 = vmatprep.subr.mxu0 0.0
        %4471 = vmatpush1.msra.mxu0 0.0
        %4472 = vmatprep.mubr.f32.mxu0 0.0
        %4473 = vmatmul.mubr.f32.gmra.mrb[0].mxu0 %v4406
        %v4474 = vpop.f32.mrb[0].mxu0
        %v4475 = vadd.f32 0.0, %v4474
        %v4476 = vpop.f32.mrb[0].mxu0
        %4477 = vdwg.mxu0
        %v4478 = vadd.f32 %v4401, %v4475
        %s4479 = scalar_lea.vmem %s7, 192
        %v4480 = vld [vmem:[%s4479] sm:$0xff]
        %v4481 = vld [vmem:[%s4479 + $0x8] sm:$0xff]
        %v4482 = vrot.slane %v3552, 4
        %v4483 = vsel %vm3557, %v4482, 0
        %4485 = vmatprep.subr.mxu0 0.0
        %4486 = vmatpush1.msra.mxu0 %v4480
        %4487 = vmatprep.subr.mxu0 0.0
        %4488 = vmatpush1.msra.mxu0 %v4481
        %4489 = vmatprep.subr.mxu0 0.0
        %4490 = vmatpush1.msra.mxu0 0.0
        %4491 = vmatprep.subr.mxu0 0.0
        %4492 = vmatpush1.msra.mxu0 0.0
        %4493 = vmatprep.subr.mxu0 0.0
        %4494 = vmatpush1.msra.mxu0 0.0
        %4495 = vmatprep.subr.mxu0 0.0
        %4496 = vmatpush1.msra.mxu0 0.0
        %4497 = vmatprep.subr.mxu0 0.0
        %4498 = vmatpush1.msra.mxu0 0.0
        %4499 = vmatprep.subr.mxu0 0.0
        %4500 = vmatpush1.msra.mxu0 0.0
        %4501 = vmatprep.subr.mxu0 0.0
        %4502 = vmatpush1.msra.mxu0 0.0
        %4503 = vmatprep.subr.mxu0 0.0
        %4504 = vmatpush1.msra.mxu0 0.0
        %4505 = vmatprep.subr.mxu0 0.0
        %4506 = vmatpush1.msra.mxu0 0.0
        %4507 = vmatprep.subr.mxu0 0.0
        %4508 = vmatpush1.msra.mxu0 0.0
        %4509 = vmatprep.subr.mxu0 0.0
        %4510 = vmatpush1.msra.mxu0 0.0
        %4511 = vmatprep.subr.mxu0 0.0
        %4512 = vmatpush1.msra.mxu0 0.0
        %4513 = vmatprep.subr.mxu0 0.0
        %4514 = vmatpush1.msra.mxu0 0.0
        %4515 = vmatprep.subr.mxu0 0.0
        %4516 = vmatpush1.msra.mxu0 0.0
        %4517 = vmatprep.subr.mxu0 0.0
        %4518 = vmatpush1.msra.mxu0 0.0
        %4519 = vmatprep.subr.mxu0 0.0
        %4520 = vmatpush1.msra.mxu0 0.0
        %4521 = vmatprep.subr.mxu0 0.0
        %4522 = vmatpush1.msra.mxu0 0.0
        %4523 = vmatprep.subr.mxu0 0.0
        %4524 = vmatpush1.msra.mxu0 0.0
        %4525 = vmatprep.subr.mxu0 0.0
        %4526 = vmatpush1.msra.mxu0 0.0
        %4527 = vmatprep.subr.mxu0 0.0
        %4528 = vmatpush1.msra.mxu0 0.0
        %4529 = vmatprep.subr.mxu0 0.0
        %4530 = vmatpush1.msra.mxu0 0.0
        %4531 = vmatprep.subr.mxu0 0.0
        %4532 = vmatpush1.msra.mxu0 0.0
        %4533 = vmatprep.subr.mxu0 0.0
        %4534 = vmatpush1.msra.mxu0 0.0
        %4535 = vmatprep.subr.mxu0 0.0
        %4536 = vmatpush1.msra.mxu0 0.0
        %4537 = vmatprep.subr.mxu0 0.0
        %4538 = vmatpush1.msra.mxu0 0.0
        %4539 = vmatprep.subr.mxu0 0.0
        %4540 = vmatpush1.msra.mxu0 0.0
        %4541 = vmatprep.subr.mxu0 0.0
        %4542 = vmatpush1.msra.mxu0 0.0
        %4543 = vmatprep.subr.mxu0 0.0
        %4544 = vmatpush1.msra.mxu0 0.0
        %4545 = vmatprep.subr.mxu0 0.0
        %4546 = vmatpush1.msra.mxu0 0.0
        %4547 = vmatprep.subr.mxu0 0.0
        %4548 = vmatpush1.msra.mxu0 0.0
        %4549 = vmatprep.mubr.f32.mxu0 0.0
        %4550 = vmatmul.mubr.f32.gmra.mrb[0].mxu0 %v4483
        %v4551 = vpop.f32.mrb[0].mxu0
        %v4552 = vadd.f32 0.0, %v4551
        %v4553 = vpop.f32.mrb[0].mxu0
        %4554 = vdwg.mxu0
        %v4555 = vadd.f32 %v4478, %v4552
        %s4556 = scalar_lea.vmem %s7, 208
        %v4557 = vld [vmem:[%s4556] sm:$0xff]
        %v4558 = vld [vmem:[%s4556 + $0x8] sm:$0xff]
        %v4559 = vrot.slane %v3552, 5
        %v4560 = vsel %vm3557, %v4559, 0
        %4562 = vmatprep.subr.mxu0 0.0
        %4563 = vmatpush1.msra.mxu0 %v4557
        %4564 = vmatprep.subr.mxu0 0.0
        %4565 = vmatpush1.msra.mxu0 %v4558
        %4566 = vmatprep.subr.mxu0 0.0
        %4567 = vmatpush1.msra.mxu0 0.0
        %4568 = vmatprep.subr.mxu0 0.0
        %4569 = vmatpush1.msra.mxu0 0.0
        %4570 = vmatprep.subr.mxu0 0.0
        %4571 = vmatpush1.msra.mxu0 0.0
        %4572 = vmatprep.subr.mxu0 0.0
        %4573 = vmatpush1.msra.mxu0 0.0
        %4574 = vmatprep.subr.mxu0 0.0
        %4575 = vmatpush1.msra.mxu0 0.0
        %4576 = vmatprep.subr.mxu0 0.0
        %4577 = vmatpush1.msra.mxu0 0.0
        %4578 = vmatprep.subr.mxu0 0.0
        %4579 = vmatpush1.msra.mxu0 0.0
        %4580 = vmatprep.subr.mxu0 0.0
        %4581 = vmatpush1.msra.mxu0 0.0
        %4582 = vmatprep.subr.mxu0 0.0
        %4583 = vmatpush1.msra.mxu0 0.0
        %4584 = vmatprep.subr.mxu0 0.0
        %4585 = vmatpush1.msra.mxu0 0.0
        %4586 = vmatprep.subr.mxu0 0.0
        %4587 = vmatpush1.msra.mxu0 0.0
        %4588 = vmatprep.subr.mxu0 0.0
        %4589 = vmatpush1.msra.mxu0 0.0
        %4590 = vmatprep.subr.mxu0 0.0
        %4591 = vmatpush1.msra.mxu0 0.0
        %4592 = vmatprep.subr.mxu0 0.0
        %4593 = vmatpush1.msra.mxu0 0.0
        %4594 = vmatprep.subr.mxu0 0.0
        %4595 = vmatpush1.msra.mxu0 0.0
        %4596 = vmatprep.subr.mxu0 0.0
        %4597 = vmatpush1.msra.mxu0 0.0
        %4598 = vmatprep.subr.mxu0 0.0
        %4599 = vmatpush1.msra.mxu0 0.0
        %4600 = vmatprep.subr.mxu0 0.0
        %4601 = vmatpush1.msra.mxu0 0.0
        %4602 = vmatprep.subr.mxu0 0.0
        %4603 = vmatpush1.msra.mxu0 0.0
        %4604 = vmatprep.subr.mxu0 0.0
        %4605 = vmatpush1.msra.mxu0 0.0
        %4606 = vmatprep.subr.mxu0 0.0
        %4607 = vmatpush1.msra.mxu0 0.0
        %4608 = vmatprep.subr.mxu0 0.0
        %4609 = vmatpush1.msra.mxu0 0.0
        %4610 = vmatprep.subr.mxu0 0.0
        %4611 = vmatpush1.msra.mxu0 0.0
        %4612 = vmatprep.subr.mxu0 0.0
        %4613 = vmatpush1.msra.mxu0 0.0
        %4614 = vmatprep.subr.mxu0 0.0
        %4615 = vmatpush1.msra.mxu0 0.0
        %4616 = vmatprep.subr.mxu0 0.0
        %4617 = vmatpush1.msra.mxu0 0.0
        %4618 = vmatprep.subr.mxu0 0.0
        %4619 = vmatpush1.msra.mxu0 0.0
        %4620 = vmatprep.subr.mxu0 0.0
        %4621 = vmatpush1.msra.mxu0 0.0
        %4622 = vmatprep.subr.mxu0 0.0
        %4623 = vmatpush1.msra.mxu0 0.0
        %4624 = vmatprep.subr.mxu0 0.0
        %4625 = vmatpush1.msra.mxu0 0.0
        %4626 = vmatprep.mubr.f32.mxu0 0.0
        %4627 = vmatmul.mubr.f32.gmra.mrb[0].mxu0 %v4560
        %v4628 = vpop.f32.mrb[0].mxu0
        %v4629 = vadd.f32 0.0, %v4628
        %v4630 = vpop.f32.mrb[0].mxu0
        %4631 = vdwg.mxu0
        %v4632 = vadd.f32 %v4555, %v4629
        %s4633 = scalar_lea.vmem %s7, 224
        %v4634 = vld [vmem:[%s4633] sm:$0xff]
        %v4635 = vld [vmem:[%s4633 + $0x8] sm:$0xff]
        %v4636 = vrot.slane %v3552, 6
        %v4637 = vsel %vm3557, %v4636, 0
        %4639 = vmatprep.subr.mxu0 0.0
        %4640 = vmatpush1.msra.mxu0 %v4634
        %4641 = vmatprep.subr.mxu0 0.0
        %4642 = vmatpush1.msra.mxu0 %v4635
        %4643 = vmatprep.subr.mxu0 0.0
        %4644 = vmatpush1.msra.mxu0 0.0
        %4645 = vmatprep.subr.mxu0 0.0
        %4646 = vmatpush1.msra.mxu0 0.0
        %4647 = vmatprep.subr.mxu0 0.0
        %4648 = vmatpush1.msra.mxu0 0.0
        %4649 = vmatprep.subr.mxu0 0.0
        %4650 = vmatpush1.msra.mxu0 0.0
        %4651 = vmatprep.subr.mxu0 0.0
        %4652 = vmatpush1.msra.mxu0 0.0
        %4653 = vmatprep.subr.mxu0 0.0
        %4654 = vmatpush1.msra.mxu0 0.0
        %4655 = vmatprep.subr.mxu0 0.0
        %4656 = vmatpush1.msra.mxu0 0.0
        %4657 = vmatprep.subr.mxu0 0.0
        %4658 = vmatpush1.msra.mxu0 0.0
        %4659 = vmatprep.subr.mxu0 0.0
        %4660 = vmatpush1.msra.mxu0 0.0
        %4661 = vmatprep.subr.mxu0 0.0
        %4662 = vmatpush1.msra.mxu0 0.0
        %4663 = vmatprep.subr.mxu0 0.0
        %4664 = vmatpush1.msra.mxu0 0.0
        %4665 = vmatprep.subr.mxu0 0.0
        %4666 = vmatpush1.msra.mxu0 0.0
        %4667 = vmatprep.subr.mxu0 0.0
        %4668 = vmatpush1.msra.mxu0 0.0
        %4669 = vmatprep.subr.mxu0 0.0
        %4670 = vmatpush1.msra.mxu0 0.0
        %4671 = vmatprep.subr.mxu0 0.0
        %4672 = vmatpush1.msra.mxu0 0.0
        %4673 = vmatprep.subr.mxu0 0.0
        %4674 = vmatpush1.msra.mxu0 0.0
        %4675 = vmatprep.subr.mxu0 0.0
        %4676 = vmatpush1.msra.mxu0 0.0
        %4677 = vmatprep.subr.mxu0 0.0
        %4678 = vmatpush1.msra.mxu0 0.0
        %4679 = vmatprep.subr.mxu0 0.0
        %4680 = vmatpush1.msra.mxu0 0.0
        %4681 = vmatprep.subr.mxu0 0.0
        %4682 = vmatpush1.msra.mxu0 0.0
        %4683 = vmatprep.subr.mxu0 0.0
        %4684 = vmatpush1.msra.mxu0 0.0
        %4685 = vmatprep.subr.mxu0 0.0
        %4686 = vmatpush1.msra.mxu0 0.0
        %4687 = vmatprep.subr.mxu0 0.0
        %4688 = vmatpush1.msra.mxu0 0.0
        %4689 = vmatprep.subr.mxu0 0.0
        %4690 = vmatpush1.msra.mxu0 0.0
        %4691 = vmatprep.subr.mxu0 0.0
        %4692 = vmatpush1.msra.mxu0 0.0
        %4693 = vmatprep.subr.mxu0 0.0
        %4694 = vmatpush1.msra.mxu0 0.0
        %4695 = vmatprep.subr.mxu0 0.0
        %4696 = vmatpush1.msra.mxu0 0.0
        %4697 = vmatprep.subr.mxu0 0.0
        %4698 = vmatpush1.msra.mxu0 0.0
        %4699 = vmatprep.subr.mxu0 0.0
        %4700 = vmatpush1.msra.mxu0 0.0
        %4701 = vmatprep.subr.mxu0 0.0
        %4702 = vmatpush1.msra.mxu0 0.0
        %4703 = vmatprep.mubr.f32.mxu0 0.0
        %4704 = vmatmul.mubr.f32.gmra.mrb[0].mxu0 %v4637
        %v4705 = vpop.f32.mrb[0].mxu0
        %v4706 = vadd.f32 0.0, %v4705
        %v4707 = vpop.f32.mrb[0].mxu0
        %4708 = vdwg.mxu0
        %v4709 = vadd.f32 %v4632, %v4706
        %s4710 = scalar_lea.vmem %s7, 240
        %v4711 = vld [vmem:[%s4710] sm:$0xff]
        %v4712 = vld [vmem:[%s4710 + $0x8] sm:$0xff]
        %v4713 = vrot.slane %v3552, 7
        %v4714 = vsel %vm3557, %v4713, 0
        %4716 = vmatprep.subr.mxu0 0.0
        %4717 = vmatpush1.msra.mxu0 %v4711
        %4718 = vmatprep.subr.mxu0 0.0
        %4719 = vmatpush1.msra.mxu0 %v4712
        %4720 = vmatprep.subr.mxu0 0.0
        %4721 = vmatpush1.msra.mxu0 0.0
        %4722 = vmatprep.subr.mxu0 0.0
        %4723 = vmatpush1.msra.mxu0 0.0
        %4724 = vmatprep.subr.mxu0 0.0
        %4725 = vmatpush1.msra.mxu0 0.0
        %4726 = vmatprep.subr.mxu0 0.0
        %4727 = vmatpush1.msra.mxu0 0.0
        %4728 = vmatprep.subr.mxu0 0.0
        %4729 = vmatpush1.msra.mxu0 0.0
        %4730 = vmatprep.subr.mxu0 0.0
        %4731 = vmatpush1.msra.mxu0 0.0
        %4732 = vmatprep.subr.mxu0 0.0
        %4733 = vmatpush1.msra.mxu0 0.0
        %4734 = vmatprep.subr.mxu0 0.0
        %4735 = vmatpush1.msra.mxu0 0.0
        %4736 = vmatprep.subr.mxu0 0.0
        %4737 = vmatpush1.msra.mxu0 0.0
        %4738 = vmatprep.subr.mxu0 0.0
        %4739 = vmatpush1.msra.mxu0 0.0
        %4740 = vmatprep.subr.mxu0 0.0
        %4741 = vmatpush1.msra.mxu0 0.0
        %4742 = vmatprep.subr.mxu0 0.0
        %4743 = vmatpush1.msra.mxu0 0.0
        %4744 = vmatprep.subr.mxu0 0.0
        %4745 = vmatpush1.msra.mxu0 0.0
        %4746 = vmatprep.subr.mxu0 0.0
        %4747 = vmatpush1.msra.mxu0 0.0
        %4748 = vmatprep.subr.mxu0 0.0
        %4749 = vmatpush1.msra.mxu0 0.0
        %4750 = vmatprep.subr.mxu0 0.0
        %4751 = vmatpush1.msra.mxu0 0.0
        %4752 = vmatprep.subr.mxu0 0.0
        %4753 = vmatpush1.msra.mxu0 0.0
        %4754 = vmatprep.subr.mxu0 0.0
        %4755 = vmatpush1.msra.mxu0 0.0
        %4756 = vmatprep.subr.mxu0 0.0
        %4757 = vmatpush1.msra.mxu0 0.0
        %4758 = vmatprep.subr.mxu0 0.0
        %4759 = vmatpush1.msra.mxu0 0.0
        %4760 = vmatprep.subr.mxu0 0.0
        %4761 = vmatpush1.msra.mxu0 0.0
        %4762 = vmatprep.subr.mxu0 0.0
        %4763 = vmatpush1.msra.mxu0 0.0
        %4764 = vmatprep.subr.mxu0 0.0
        %4765 = vmatpush1.msra.mxu0 0.0
        %4766 = vmatprep.subr.mxu0 0.0
        %4767 = vmatpush1.msra.mxu0 0.0
        %4768 = vmatprep.subr.mxu0 0.0
        %4769 = vmatpush1.msra.mxu0 0.0
        %4770 = vmatprep.subr.mxu0 0.0
        %4771 = vmatpush1.msra.mxu0 0.0
        %4772 = vmatprep.subr.mxu0 0.0
        %4773 = vmatpush1.msra.mxu0 0.0
        %4774 = vmatprep.subr.mxu0 0.0
        %4775 = vmatpush1.msra.mxu0 0.0
        %4776 = vmatprep.subr.mxu0 0.0
        %4777 = vmatpush1.msra.mxu0 0.0
        %4778 = vmatprep.subr.mxu0 0.0
        %4779 = vmatpush1.msra.mxu0 0.0
        %4780 = vmatprep.mubr.f32.mxu0 0.0
        %4781 = vmatmul.mubr.f32.gmra.mrb[0].mxu0 %v4714
        %v4782 = vpop.f32.mrb[0].mxu0
        %v4783 = vadd.f32 0.0, %v4782
        %v4784 = vpop.f32.mrb[0].mxu0
        %4785 = vdwg.mxu0
        %v4786 = vadd.f32 %v4709, %v4783
        %s4787 = scalar_lea.vmem %s7, 256
        %v4788 = vld [vmem:[%s4787] sm:$0xff]
        %v4789 = vld [vmem:[%s4787 + $0x8] sm:$0xff]
        %v4791 = vsel %vm3557, %v3553, 0
        %4793 = vmatprep.subr.mxu0 0.0
        %4794 = vmatpush1.msra.mxu0 %v4788
        %4795 = vmatprep.subr.mxu0 0.0
        %4796 = vmatpush1.msra.mxu0 %v4789
        %4797 = vmatprep.subr.mxu0 0.0
        %4798 = vmatpush1.msra.mxu0 0.0
        %4799 = vmatprep.subr.mxu0 0.0
        %4800 = vmatpush1.msra.mxu0 0.0
        %4801 = vmatprep.subr.mxu0 0.0
        %4802 = vmatpush1.msra.mxu0 0.0
        %4803 = vmatprep.subr.mxu0 0.0
        %4804 = vmatpush1.msra.mxu0 0.0
        %4805 = vmatprep.subr.mxu0 0.0
        %4806 = vmatpush1.msra.mxu0 0.0
        %4807 = vmatprep.subr.mxu0 0.0
        %4808 = vmatpush1.msra.mxu0 0.0
        %4809 = vmatprep.subr.mxu0 0.0
        %4810 = vmatpush1.msra.mxu0 0.0
        %4811 = vmatprep.subr.mxu0 0.0
        %4812 = vmatpush1.msra.mxu0 0.0
        %4813 = vmatprep.subr.mxu0 0.0
        %4814 = vmatpush1.msra.mxu0 0.0
        %4815 = vmatprep.subr.mxu0 0.0
        %4816 = vmatpush1.msra.mxu0 0.0
        %4817 = vmatprep.subr.mxu0 0.0
        %4818 = vmatpush1.msra.mxu0 0.0
        %4819 = vmatprep.subr.mxu0 0.0
        %4820 = vmatpush1.msra.mxu0 0.0
        %4821 = vmatprep.subr.mxu0 0.0
        %4822 = vmatpush1.msra.mxu0 0.0
        %4823 = vmatprep.subr.mxu0 0.0
        %4824 = vmatpush1.msra.mxu0 0.0
        %4825 = vmatprep.subr.mxu0 0.0
        %4826 = vmatpush1.msra.mxu0 0.0
        %4827 = vmatprep.subr.mxu0 0.0
        %4828 = vmatpush1.msra.mxu0 0.0
        %4829 = vmatprep.subr.mxu0 0.0
        %4830 = vmatpush1.msra.mxu0 0.0
        %4831 = vmatprep.subr.mxu0 0.0
        %4832 = vmatpush1.msra.mxu0 0.0
        %4833 = vmatprep.subr.mxu0 0.0
        %4834 = vmatpush1.msra.mxu0 0.0
        %4835 = vmatprep.subr.mxu0 0.0
        %4836 = vmatpush1.msra.mxu0 0.0
        %4837 = vmatprep.subr.mxu0 0.0
        %4838 = vmatpush1.msra.mxu0 0.0
        %4839 = vmatprep.subr.mxu0 0.0
        %4840 = vmatpush1.msra.mxu0 0.0
        %4841 = vmatprep.subr.mxu0 0.0
        %4842 = vmatpush1.msra.mxu0 0.0
        %4843 = vmatprep.subr.mxu0 0.0
        %4844 = vmatpush1.msra.mxu0 0.0
        %4845 = vmatprep.subr.mxu0 0.0
        %4846 = vmatpush1.msra.mxu0 0.0
        %4847 = vmatprep.subr.mxu0 0.0
        %4848 = vmatpush1.msra.mxu0 0.0
        %4849 = vmatprep.subr.mxu0 0.0
        %4850 = vmatpush1.msra.mxu0 0.0
        %4851 = vmatprep.subr.mxu0 0.0
        %4852 = vmatpush1.msra.mxu0 0.0
        %4853 = vmatprep.subr.mxu0 0.0
        %4854 = vmatpush1.msra.mxu0 0.0
        %4855 = vmatprep.subr.mxu0 0.0
        %4856 = vmatpush1.msra.mxu0 0.0
        %4857 = vmatprep.mubr.f32.mxu0 0.0
        %4858 = vmatmul.mubr.f32.gmra.mrb[0].mxu0 %v4791
        %v4859 = vpop.f32.mrb[0].mxu0
        %v4860 = vadd.f32 0.0, %v4859
        %v4861 = vpop.f32.mrb[0].mxu0
        %4862 = vdwg.mxu0
        %v4863 = vadd.f32 %v4786, %v4860
        %s4864 = scalar_lea.vmem %s7, 272
        %v4865 = vld [vmem:[%s4864] sm:$0xff]
        %v4866 = vld [vmem:[%s4864 + $0x8] sm:$0xff]
        %v4867 = vrot.slane %v3553, 1
        %v4868 = vsel %vm3557, %v4867, 0
        %4870 = vmatprep.subr.mxu0 0.0
        %4871 = vmatpush1.msra.mxu0 %v4865
        %4872 = vmatprep.subr.mxu0 0.0
        %4873 = vmatpush1.msra.mxu0 %v4866
        %4874 = vmatprep.subr.mxu0 0.0
        %4875 = vmatpush1.msra.mxu0 0.0
        %4876 = vmatprep.subr.mxu0 0.0
        %4877 = vmatpush1.msra.mxu0 0.0
        %4878 = vmatprep.subr.mxu0 0.0
        %4879 = vmatpush1.msra.mxu0 0.0
        %4880 = vmatprep.subr.mxu0 0.0
        %4881 = vmatpush1.msra.mxu0 0.0
        %4882 = vmatprep.subr.mxu0 0.0
        %4883 = vmatpush1.msra.mxu0 0.0
        %4884 = vmatprep.subr.mxu0 0.0
        %4885 = vmatpush1.msra.mxu0 0.0
        %4886 = vmatprep.subr.mxu0 0.0
        %4887 = vmatpush1.msra.mxu0 0.0
        %4888 = vmatprep.subr.mxu0 0.0
        %4889 = vmatpush1.msra.mxu0 0.0
        %4890 = vmatprep.subr.mxu0 0.0
        %4891 = vmatpush1.msra.mxu0 0.0
        %4892 = vmatprep.subr.mxu0 0.0
        %4893 = vmatpush1.msra.mxu0 0.0
        %4894 = vmatprep.subr.mxu0 0.0
        %4895 = vmatpush1.msra.mxu0 0.0
        %4896 = vmatprep.subr.mxu0 0.0
        %4897 = vmatpush1.msra.mxu0 0.0
        %4898 = vmatprep.subr.mxu0 0.0
        %4899 = vmatpush1.msra.mxu0 0.0
        %4900 = vmatprep.subr.mxu0 0.0
        %4901 = vmatpush1.msra.mxu0 0.0
        %4902 = vmatprep.subr.mxu0 0.0
        %4903 = vmatpush1.msra.mxu0 0.0
        %4904 = vmatprep.subr.mxu0 0.0
        %4905 = vmatpush1.msra.mxu0 0.0
        %4906 = vmatprep.subr.mxu0 0.0
        %4907 = vmatpush1.msra.mxu0 0.0
        %4908 = vmatprep.subr.mxu0 0.0
        %4909 = vmatpush1.msra.mxu0 0.0
        %4910 = vmatprep.subr.mxu0 0.0
        %4911 = vmatpush1.msra.mxu0 0.0
        %4912 = vmatprep.subr.mxu0 0.0
        %4913 = vmatpush1.msra.mxu0 0.0
        %4914 = vmatprep.subr.mxu0 0.0
        %4915 = vmatpush1.msra.mxu0 0.0
        %4916 = vmatprep.subr.mxu0 0.0
        %4917 = vmatpush1.msra.mxu0 0.0
        %4918 = vmatprep.subr.mxu0 0.0
        %4919 = vmatpush1.msra.mxu0 0.0
        %4920 = vmatprep.subr.mxu0 0.0
        %4921 = vmatpush1.msra.mxu0 0.0
        %4922 = vmatprep.subr.mxu0 0.0
        %4923 = vmatpush1.msra.mxu0 0.0
        %4924 = vmatprep.subr.mxu0 0.0
        %4925 = vmatpush1.msra.mxu0 0.0
        %4926 = vmatprep.subr.mxu0 0.0
        %4927 = vmatpush1.msra.mxu0 0.0
        %4928 = vmatprep.subr.mxu0 0.0
        %4929 = vmatpush1.msra.mxu0 0.0
        %4930 = vmatprep.subr.mxu0 0.0
        %4931 = vmatpush1.msra.mxu0 0.0
        %4932 = vmatprep.subr.mxu0 0.0
        %4933 = vmatpush1.msra.mxu0 0.0
        %4934 = vmatprep.mubr.f32.mxu0 0.0
        %4935 = vmatmul.mubr.f32.gmra.mrb[0].mxu0 %v4868
        %v4936 = vpop.f32.mrb[0].mxu0
        %v4937 = vadd.f32 0.0, %v4936
        %v4938 = vpop.f32.mrb[0].mxu0
        %4939 = vdwg.mxu0
        %v4940 = vadd.f32 %v4863, %v4937
        %s4941 = scalar_lea.vmem %s7, 288
        %v4942 = vld [vmem:[%s4941] sm:$0xff]
        %v4943 = vld [vmem:[%s4941 + $0x8] sm:$0xff]
        %v4944 = vrot.slane %v3553, 2
        %v4945 = vsel %vm3557, %v4944, 0
        %4947 = vmatprep.subr.mxu0 0.0
        %4948 = vmatpush1.msra.mxu0 %v4942
        %4949 = vmatprep.subr.mxu0 0.0
        %4950 = vmatpush1.msra.mxu0 %v4943
        %4951 = vmatprep.subr.mxu0 0.0
        %4952 = vmatpush1.msra.mxu0 0.0
        %4953 = vmatprep.subr.mxu0 0.0
        %4954 = vmatpush1.msra.mxu0 0.0
        %4955 = vmatprep.subr.mxu0 0.0
        %4956 = vmatpush1.msra.mxu0 0.0
        %4957 = vmatprep.subr.mxu0 0.0
        %4958 = vmatpush1.msra.mxu0 0.0
        %4959 = vmatprep.subr.mxu0 0.0
        %4960 = vmatpush1.msra.mxu0 0.0
        %4961 = vmatprep.subr.mxu0 0.0
        %4962 = vmatpush1.msra.mxu0 0.0
        %4963 = vmatprep.subr.mxu0 0.0
        %4964 = vmatpush1.msra.mxu0 0.0
        %4965 = vmatprep.subr.mxu0 0.0
        %4966 = vmatpush1.msra.mxu0 0.0
        %4967 = vmatprep.subr.mxu0 0.0
        %4968 = vmatpush1.msra.mxu0 0.0
        %4969 = vmatprep.subr.mxu0 0.0
        %4970 = vmatpush1.msra.mxu0 0.0
        %4971 = vmatprep.subr.mxu0 0.0
        %4972 = vmatpush1.msra.mxu0 0.0
        %4973 = vmatprep.subr.mxu0 0.0
        %4974 = vmatpush1.msra.mxu0 0.0
        %4975 = vmatprep.subr.mxu0 0.0
        %4976 = vmatpush1.msra.mxu0 0.0
        %4977 = vmatprep.subr.mxu0 0.0
        %4978 = vmatpush1.msra.mxu0 0.0
        %4979 = vmatprep.subr.mxu0 0.0
        %4980 = vmatpush1.msra.mxu0 0.0
        %4981 = vmatprep.subr.mxu0 0.0
        %4982 = vmatpush1.msra.mxu0 0.0
        %4983 = vmatprep.subr.mxu0 0.0
        %4984 = vmatpush1.msra.mxu0 0.0
        %4985 = vmatprep.subr.mxu0 0.0
        %4986 = vmatpush1.msra.mxu0 0.0
        %4987 = vmatprep.subr.mxu0 0.0
        %4988 = vmatpush1.msra.mxu0 0.0
        %4989 = vmatprep.subr.mxu0 0.0
        %4990 = vmatpush1.msra.mxu0 0.0
        %4991 = vmatprep.subr.mxu0 0.0
        %4992 = vmatpush1.msra.mxu0 0.0
        %4993 = vmatprep.subr.mxu0 0.0
        %4994 = vmatpush1.msra.mxu0 0.0
        %4995 = vmatprep.subr.mxu0 0.0
        %4996 = vmatpush1.msra.mxu0 0.0
        %4997 = vmatprep.subr.mxu0 0.0
        %4998 = vmatpush1.msra.mxu0 0.0
        %4999 = vmatprep.subr.mxu0 0.0
        %5000 = vmatpush1.msra.mxu0 0.0
        %5001 = vmatprep.subr.mxu0 0.0
        %5002 = vmatpush1.msra.mxu0 0.0
        %5003 = vmatprep.subr.mxu0 0.0
        %5004 = vmatpush1.msra.mxu0 0.0
        %5005 = vmatprep.subr.mxu0 0.0
        %5006 = vmatpush1.msra.mxu0 0.0
        %5007 = vmatprep.subr.mxu0 0.0
        %5008 = vmatpush1.msra.mxu0 0.0
        %5009 = vmatprep.subr.mxu0 0.0
        %5010 = vmatpush1.msra.mxu0 0.0
        %5011 = vmatprep.mubr.f32.mxu0 0.0
        %5012 = vmatmul.mubr.f32.gmra.mrb[0].mxu0 %v4945
        %v5013 = vpop.f32.mrb[0].mxu0
        %v5014 = vadd.f32 0.0, %v5013
        %v5015 = vpop.f32.mrb[0].mxu0
        %5016 = vdwg.mxu0
        %v5017 = vadd.f32 %v4940, %v5014
        %s5018 = scalar_lea.vmem %s7, 304
        %v5019 = vld [vmem:[%s5018] sm:$0xff]
        %v5020 = vld [vmem:[%s5018 + $0x8] sm:$0xff]
        %v5021 = vrot.slane %v3553, 3
        %v5022 = vsel %vm3557, %v5021, 0
        %5024 = vmatprep.subr.mxu0 0.0
        %5025 = vmatpush1.msra.mxu0 %v5019
        %5026 = vmatprep.subr.mxu0 0.0
        %5027 = vmatpush1.msra.mxu0 %v5020
        %5028 = vmatprep.subr.mxu0 0.0
        %5029 = vmatpush1.msra.mxu0 0.0
        %5030 = vmatprep.subr.mxu0 0.0
        %5031 = vmatpush1.msra.mxu0 0.0
        %5032 = vmatprep.subr.mxu0 0.0
        %5033 = vmatpush1.msra.mxu0 0.0
        %5034 = vmatprep.subr.mxu0 0.0
        %5035 = vmatpush1.msra.mxu0 0.0
        %5036 = vmatprep.subr.mxu0 0.0
        %5037 = vmatpush1.msra.mxu0 0.0
        %5038 = vmatprep.subr.mxu0 0.0
        %5039 = vmatpush1.msra.mxu0 0.0
        %5040 = vmatprep.subr.mxu0 0.0
        %5041 = vmatpush1.msra.mxu0 0.0
        %5042 = vmatprep.subr.mxu0 0.0
        %5043 = vmatpush1.msra.mxu0 0.0
        %5044 = vmatprep.subr.mxu0 0.0
        %5045 = vmatpush1.msra.mxu0 0.0
        %5046 = vmatprep.subr.mxu0 0.0
        %5047 = vmatpush1.msra.mxu0 0.0
        %5048 = vmatprep.subr.mxu0 0.0
        %5049 = vmatpush1.msra.mxu0 0.0
        %5050 = vmatprep.subr.mxu0 0.0
        %5051 = vmatpush1.msra.mxu0 0.0
        %5052 = vmatprep.subr.mxu0 0.0
        %5053 = vmatpush1.msra.mxu0 0.0
        %5054 = vmatprep.subr.mxu0 0.0
        %5055 = vmatpush1.msra.mxu0 0.0
        %5056 = vmatprep.subr.mxu0 0.0
        %5057 = vmatpush1.msra.mxu0 0.0
        %5058 = vmatprep.subr.mxu0 0.0
        %5059 = vmatpush1.msra.mxu0 0.0
        %5060 = vmatprep.subr.mxu0 0.0
        %5061 = vmatpush1.msra.mxu0 0.0
        %5062 = vmatprep.subr.mxu0 0.0
        %5063 = vmatpush1.msra.mxu0 0.0
        %5064 = vmatprep.subr.mxu0 0.0
        %5065 = vmatpush1.msra.mxu0 0.0
        %5066 = vmatprep.subr.mxu0 0.0
        %5067 = vmatpush1.msra.mxu0 0.0
        %5068 = vmatprep.subr.mxu0 0.0
        %5069 = vmatpush1.msra.mxu0 0.0
        %5070 = vmatprep.subr.mxu0 0.0
        %5071 = vmatpush1.msra.mxu0 0.0
        %5072 = vmatprep.subr.mxu0 0.0
        %5073 = vmatpush1.msra.mxu0 0.0
        %5074 = vmatprep.subr.mxu0 0.0
        %5075 = vmatpush1.msra.mxu0 0.0
        %5076 = vmatprep.subr.mxu0 0.0
        %5077 = vmatpush1.msra.mxu0 0.0
        %5078 = vmatprep.subr.mxu0 0.0
        %5079 = vmatpush1.msra.mxu0 0.0
        %5080 = vmatprep.subr.mxu0 0.0
        %5081 = vmatpush1.msra.mxu0 0.0
        %5082 = vmatprep.subr.mxu0 0.0
        %5083 = vmatpush1.msra.mxu0 0.0
        %5084 = vmatprep.subr.mxu0 0.0
        %5085 = vmatpush1.msra.mxu0 0.0
        %5086 = vmatprep.subr.mxu0 0.0
        %5087 = vmatpush1.msra.mxu0 0.0
        %5088 = vmatprep.mubr.f32.mxu0 0.0
        %5089 = vmatmul.mubr.f32.gmra.mrb[0].mxu0 %v5022
        %v5090 = vpop.f32.mrb[0].mxu0
        %v5091 = vadd.f32 0.0, %v5090
        %v5092 = vpop.f32.mrb[0].mxu0
        %5093 = vdwg.mxu0
        %v5094 = vadd.f32 %v5017, %v5091
        %v5095 = vmax.f32 %v5094, 0.0
        %v5096 = vld [vmem:[%s9] sm:$0xff]
        %v5097 = vld [vmem:[%s9 + $0x8] sm:$0xff]
        %v5098 = vld [vmem:[%s9 + $0x10] sm:$0xff]
        %v5099 = vld [vmem:[%s9 + $0x18] sm:$0xff]
        %v5100 = vld [vmem:[%s10] sm:$0x1]
        %vm5101 = vcmask 261120
        %v5103 = vsel %vm5101, %v5095, 0
        %5105 = vmatprep.subr.mxu0 0.0
        %5106 = vmatpush1.msra.mxu0 %v5096
        %5107 = vmatprep.subr.mxu0 0.0
        %5108 = vmatpush1.msra.mxu0 %v5097
        %5109 = vmatprep.subr.mxu0 0.0
        %5110 = vmatpush1.msra.mxu0 %v5098
        %5111 = vmatprep.subr.mxu0 0.0
        %5112 = vmatpush1.msra.mxu0 %v5099
        %5113 = vmatprep.subr.mxu0 0.0
        %5114 = vmatpush1.msra.mxu0 0.0
        %5115 = vmatprep.subr.mxu0 0.0
        %5116 = vmatpush1.msra.mxu0 0.0
        %5117 = vmatprep.subr.mxu0 0.0
        %5118 = vmatpush1.msra.mxu0 0.0
        %5119 = vmatprep.subr.mxu0 0.0
        %5120 = vmatpush1.msra.mxu0 0.0
        %5121 = vmatprep.subr.mxu0 0.0
        %5122 = vmatpush1.msra.mxu0 0.0
        %5123 = vmatprep.subr.mxu0 0.0
        %5124 = vmatpush1.msra.mxu0 0.0
        %5125 = vmatprep.subr.mxu0 0.0
        %5126 = vmatpush1.msra.mxu0 0.0
        %5127 = vmatprep.subr.mxu0 0.0
        %5128 = vmatpush1.msra.mxu0 0.0
        %5129 = vmatprep.subr.mxu0 0.0
        %5130 = vmatpush1.msra.mxu0 0.0
        %5131 = vmatprep.subr.mxu0 0.0
        %5132 = vmatpush1.msra.mxu0 0.0
        %5133 = vmatprep.subr.mxu0 0.0
        %5134 = vmatpush1.msra.mxu0 0.0
        %5135 = vmatprep.subr.mxu0 0.0
        %5136 = vmatpush1.msra.mxu0 0.0
        %5137 = vmatprep.subr.mxu0 0.0
        %5138 = vmatpush1.msra.mxu0 0.0
        %5139 = vmatprep.subr.mxu0 0.0
        %5140 = vmatpush1.msra.mxu0 0.0
        %5141 = vmatprep.subr.mxu0 0.0
        %5142 = vmatpush1.msra.mxu0 0.0
        %5143 = vmatprep.subr.mxu0 0.0
        %5144 = vmatpush1.msra.mxu0 0.0
        %5145 = vmatprep.subr.mxu0 0.0
        %5146 = vmatpush1.msra.mxu0 0.0
        %5147 = vmatprep.subr.mxu0 0.0
        %5148 = vmatpush1.msra.mxu0 0.0
        %5149 = vmatprep.subr.mxu0 0.0
        %5150 = vmatpush1.msra.mxu0 0.0
        %5151 = vmatprep.subr.mxu0 0.0
        %5152 = vmatpush1.msra.mxu0 0.0
        %5153 = vmatprep.subr.mxu0 0.0
        %5154 = vmatpush1.msra.mxu0 0.0
        %5155 = vmatprep.subr.mxu0 0.0
        %5156 = vmatpush1.msra.mxu0 0.0
        %5157 = vmatprep.subr.mxu0 0.0
        %5158 = vmatpush1.msra.mxu0 0.0
        %5159 = vmatprep.subr.mxu0 0.0
        %5160 = vmatpush1.msra.mxu0 0.0
        %5161 = vmatprep.subr.mxu0 0.0
        %5162 = vmatpush1.msra.mxu0 0.0
        %5163 = vmatprep.subr.mxu0 0.0
        %5164 = vmatpush1.msra.mxu0 0.0
        %5165 = vmatprep.subr.mxu0 0.0
        %5166 = vmatpush1.msra.mxu0 0.0
        %5167 = vmatprep.subr.mxu0 0.0
        %5168 = vmatpush1.msra.mxu0 0.0
        %5169 = vmatprep.mubr.f32.mxu0 0.0
        %5170 = vmatmul.mubr.f32.gmra.mrb[0].mxu0 %v5103
        %v5171 = vpop.f32.mrb[0].mxu0
        %v5172 = vadd.f32 %v5100, %v5171
        %v5173 = vpop.f32.mrb[0].mxu0
        %5174 = vdwg.mxu0
        %vm5175 = vcmask 73728
        %v5176 = vsel %vm5175, %v5172, -inf
        %5177 = vmax.xlane.f32.xlu0 %v5176
        %v5178 = vpop.xlane.xlu0 %5177
        %v5179 = vsub.f32 %v5172, %v5178
        %v5180 = vmul.f32 %v5179, 1.442695
        %v5181 = vpow.pop %v5180
        %v5182 = vsel %vm5175, %v5181, 0.0
        %5183 = vadd.xlane.f32.xlu0 %v5182
        %v5184 = vpop.xlane.xlu0 %5183
        %v5185 = vlog2.pop %v5184
        %v5186 = vmul.f32 %v5185, 0.6931472
        %v5187 = vadd.f32 %v5186, %v5178
        %v5188 = vsub.f32 %v5172, %v5187
        %5189 = vst.msk [vmem:[%s378] sm:$0x1] %vm5175, %v5188
        %s5190 = sand.u32 %s269, 1
        %s5191 = scalar_lea.sflag [#allocation3], %s5190
        %s5192 = sand.u32 %s269, 1
        %s5193 = scalar_lea.vmem [#allocation2], %s5192
        // Predicated region
        $region65: #{clsnet_forward.1} parent=63 // pred_check
          %p5194 = pneg %p279
        $region66: #{clsnet_forward.1} parent=63 // pred_check_branch
          %5196 = sbr.rel (%p5194) target = $region68
        $region67: #{clsnet_forward.1} parent=63 // pred_region
          %s5198 = ssub.s32 16, 16
          %5199 = vsyncadd %s5191, %s5198
          %s5200 = smul.addr %s25, 16
          %s5201 = scalar_lea.hbm %s11, %s5200
          %s5203 = sshll.u32 %s5193, 4
          %s5204 = int_to_ptr.vmem [resolvable:$true] %s5203
          %5206 = dma.vmem_to_hbm [thread:$0]  %s5204, 16, %s5201, %s5191
        $region68: #{clsnet_forward.1} parent=63 // pred_fallthru
          _
      $region64: #{clsnet_forward.1} parent=5 // pred_fallthru
        _
      %p5207 = scmp.le.s32.totalorder 2, %s20
      // Predicated region
      $region69: #{clsnet_forward.1} parent=5 // pred_check
        %p5208 = pneg %p5207
      $region70: #{clsnet_forward.1} parent=5 // pred_check_branch
        %5210 = sbr.rel (%p5208) target = $region72
      $region71: #{clsnet_forward.1} parent=5 // pred_region
        %s5211 = ssub.s32 %s20, 2
        // Predicated region
        $region73: #{clsnet_forward.1} parent=71 // pred_check
          %p5212 = pneg %p285
        $region74: #{clsnet_forward.1} parent=71 // pred_check_branch
          %5214 = sbr.rel (%p5212) target = $region76
        $region75: #{clsnet_forward.1} parent=71 // pred_region
          %s5215 = sand.u32 %s270, 1
          %s5216 = scalar_lea.sflag [#allocation3], %s5215
          %s5217 = sand.u32 %s270, 1
          %s5218 = scalar_lea.vmem [#allocation2], %s5217
          %5219 = dma.done %s5216, 16
        $region76: #{clsnet_forward.1} parent=71 // pred_fallthru
          _
      $region72: #{clsnet_forward.1} parent=5 // pred_fallthru
        _
    $region6: #{clsnet_forward.1} parent=1 // loop_footer
      %s24 = sadd.s32 1, %s20
    $region7: #{clsnet_forward.1} parent=1 // loop_footer_branch
      %19 = sbr.rel target = $region3
    $region8: #{clsnet_forward.1} parent=1 // loop_exit
      _
    %5220 = vsyncpa [#allocation3], 1
    %s5221 = scalar_lea.sflag [#allocation3], 1
    %5222 = vsyncpa %s5221, 1

</llo_original>
